<compile_context>
chip_gen: v6e
topology: v6e:2x2x1
jax: 0.10.0
libtpu: 0.0.40
codegen_flags: <defaults>
</compile_context>

<pallas_src>
import jax
import jax.numpy as jnp
from jax.experimental import pallas as pl
from jax.experimental.pallas import tpu as pltpu


# --------------------------------------------------------------------------------------
# Kernel: synthetic 2D pose head + MXU soft-argmax for one (batch, view) grid step.
# TODO(synk): the real get_pose_net backbone (ResNet + deconv heads, loaded from a
# checkpoint) is not reproducible from the reference; replaced by a deterministic
# synthetic head with the same output contract (per-view, per-joint 2D keypoints).
# --------------------------------------------------------------------------------------
def _pose2d_kernel(img_ref, wrow_ref, wcol_ref, scale_ref, wblk_ref, hred_ref, kp_ref):
    J = scale_ref.shape[0]

    img = img_ref[0, 0]                                                    # [H, W] bf16
    # column mixing: [H, W] @ [W, W]   (MXU, bf16 operands -> f32 accumulate)
    mid = jnp.dot(img, wcol_ref[...],
                  preferred_element_type=jnp.float32).astype(jnp.bfloat16)  # [H, W]
    # row mixing:    [H, H] @ [H, W]
    feat = jnp.dot(wrow_ref[...], mid, preferred_element_type=jnp.float32)  # [H, W] f32
    # f32 epilogue (portable: v5e VPU/EUP have no bf16 arithmetic).
    feat = jnp.tanh(feat)

    # per-joint softmax stabilizer is scale_j*max(feat) or scale_j*min(feat);
    # two full reductions over [H, W] instead of J of them.
    fmax = jnp.max(jnp.max(feat, axis=1, keepdims=True), axis=0, keepdims=True)
    fmin = jnp.min(jnp.min(feat, axis=1, keepdims=True), axis=0, keepdims=True)

    hred = hred_ref[...]                                                    # [2, H] bf16

    # Reassociated fold: reduce each e_j over H immediately (only one [H, W] exp map
    # live at a time), then fold all joints over W with one lane-dense MXU matmul.
    strips = []
    for j in range(J):
        s = scale_ref[j]                                                    # SMEM scalar
        m = jnp.maximum(s * fmax, s * fmin)                                 # (1, 1)
        e_j = jnp.exp(s * feat - m)                                         # [H, W] f32 (EUP)
        # H-fold on the MXU: row 0 = sum_h e, row 1 = sum_h h*e  (per column w)
        strips.append(jnp.dot(hred, e_j.astype(jnp.bfloat16),
                              preferred_element_type=jnp.float32))          # [2, W]
    r_all = jnp.concatenate(strips, axis=1).astype(jnp.bfloat16)            # [2, J*W]

    # W-fold on the MXU: per joint, columns give (sum_w w*., sum_w .)
    R = jnp.dot(r_all, wblk_ref[...], preferred_element_type=jnp.float32)   # [2, 2J]

    xnum = R[0:1, 0:J]                                                      # sum w*e
    z = R[0:1, J:2 * J]                                                     # sum e
    ynum = R[1:2, J:2 * J]                                                  # sum h*e
    inv_z = 1.0 / z                                                         # exact reciprocal
    row = jnp.concatenate([xnum * inv_z, ynum * inv_z], axis=1)             # [1, 2J]
    kp_ref[...] = row.reshape(1, 1, 1, 2 * J)


def _fold_matrices(H, W, J):
    """Constant fold matrices for the MXU soft-argmax (entries exact in bf16)."""
    xs = jnp.arange(W, dtype=jnp.float32)
    eye_j = jnp.eye(J, dtype=jnp.float32)
    # wblk[j*W + w, j]     = x coordinate w   (x-numerator column for joint j)
    # wblk[j*W + w, J + j] = 1                (partition-function column for joint j)
    xcols = jnp.kron(eye_j, xs[:, None])                                    # [J*W, J]
    ocols = jnp.kron(eye_j, jnp.ones((W, 1), jnp.float32))                  # [J*W, J]
    wblk = jnp.concatenate([xcols, ocols], axis=1)                          # [J*W, 2J]
    hred = jnp.stack([jnp.ones((H,), jnp.float32),
                      jnp.arange(H, dtype=jnp.float32)], axis=0)            # [2, H]
    return wblk.astype(jnp.bfloat16), hred.astype(jnp.bfloat16)


def pose2d_pallas(imgs, wrow, wcol, scale, wblk, hred):
    """imgs: [B, V, H, W] bf16 -> keypoint rows [B, V, 1, 2*J] f32 ([kx... | ky...])."""
    B, V, H, W = imgs.shape
    J = scale.shape[0]
    return pl.pallas_call(
        _pose2d_kernel,
        out_shape=jax.ShapeDtypeStruct((B, V, 1, 2 * J), jnp.float32),
        grid=(B, V),
        in_specs=[
            pl.BlockSpec((1, 1, H, W), lambda b, v: (b, v, 0, 0)),          # image (one view)
            pl.BlockSpec((H, H), lambda b, v: (0, 0)),                      # wrow
            pl.BlockSpec((W, W), lambda b, v: (0, 0)),                      # wcol
            pl.BlockSpec(memory_space=pltpu.MemorySpace.SMEM),              # scale (J,)
            pl.BlockSpec((J * W, 2 * J), lambda b, v: (0, 0)),              # W-fold matrix
            pl.BlockSpec((2, H), lambda b, v: (0, 0)),                      # H-fold matrix
        ],
        out_specs=pl.BlockSpec((1, 1, 1, 2 * J), lambda b, v: (b, v, 0, 0)),
        compiler_params=pltpu.CompilerParams(
            dimension_semantics=("parallel", "parallel")),
    )(imgs, wrow, wcol, scale, wblk, hred)


# --------------------------------------------------------------------------------------
# Full forward (mirrors AlgResNet.forward, use_confidences=False path)
# --------------------------------------------------------------------------------------
def alg_resnet_forward(AP_img, AP_K, AP_T, LAT_img, LAT_K, LAT_T, params):
    B, H, W = AP_img.shape
    J = params['scale'].shape[0]
    V = 2

    imgs = jnp.stack([AP_img, LAT_img], axis=1).astype(jnp.bfloat16)        # [B, 2, H, W]
    wrow = params['wrow'].astype(jnp.bfloat16)
    wcol = params['wcol'].astype(jnp.bfloat16)
    scale = params['scale'].astype(jnp.float32)
    wblk, hred = _fold_matrices(H, W, J)

    kp_rows = pose2d_pallas(imgs, wrow, wcol, scale, wblk, hred)            # [B, V, 1, 2J]
    kp = kp_rows.reshape(B, V, 2, J)                                        # [B, V, (x,y), J]
    # (the module's torch.flip(keypoints, [2]) is a (row,col)->(x,y) convention swap;
    #  the synthetic head emits (x, y) directly for the DLT rows below)
    keypoints_2d = jnp.swapaxes(kp, 2, 3)                                   # [B, V, J, 2]

    # projection matrices P = K @ T
    Ks = jnp.stack([AP_K, LAT_K], axis=1).astype(jnp.float32)               # [B, 2, 3, 3]
    Ts = jnp.stack([AP_T, LAT_T], axis=1).astype(jnp.float32)               # [B, 2, 3, 4]
    P = jnp.einsum('bvij,bvjk->bvik', Ks, Ts)                               # [B, 2, 3, 4]

    # use_confidences=False -> uniform confidences, normalized over views, + 1e-5
    conf = jnp.ones((B, V, J), jnp.float32)
    conf = conf / jnp.sum(conf, axis=1, keepdims=True) + 1e-5

    # confidence-weighted DLT matrices A[b, j] (4x4), rows ordered (view, coord)
    term = (keypoints_2d[..., None] * P[:, :, None, 2:3, :]
            - P[:, :, None, 0:2, :])                                        # [B, V, J, 2, 4]
    A = conf[..., None, None] * term                                        # [B, V, J, 2, 4]
    A = jnp.transpose(A, (0, 2, 1, 3, 4)).reshape(B, J, 4, 4)               # [B, J, 4, 4]

    # TODO(synk): the batched 4x4 SVD null-space solve (torch.svd inside
    # multiview.triangulate_batch_of_points) has no clean Pallas equivalent; done in JAX.
    _, _, vt = jnp.linalg.svd(A)
    homo = -vt[..., 3, :]                                                   # last right sing. vec
    # homogeneous divide without epsilon guard -- matches the reference behavior.
    keypoints_3d = homo[..., :3] / homo[..., 3:4]
    return keypoints_3d


if __name__ == "__main__":
    key = jax.random.PRNGKey(0)
    B, H, W, J = 2, 64, 128, 8
    keys = jax.random.split(key, 8)

    AP_img = jax.random.normal(keys[0], (B, H, W), jnp.float32)
    LAT_img = jax.random.normal(keys[1], (B, H, W), jnp.float32)

    K_base = jnp.array([[100.0, 0.0, W / 2.0],
                        [0.0, 100.0, H / 2.0],
                        [0.0, 0.0, 1.0]], jnp.float32)
    AP_K = jnp.broadcast_to(K_base, (B, 3, 3)) + 0.01 * jax.random.normal(keys[2], (B, 3, 3))
    LAT_K = jnp.broadcast_to(K_base, (B, 3, 3)) + 0.01 * jax.random.normal(keys[3], (B, 3, 3))

    eye_rt = jnp.concatenate(
        [jnp.eye(3, dtype=jnp.float32), jnp.array([[0.0], [0.0], [5.0]], jnp.float32)], axis=1)
    rot90 = jnp.array([[0.0, 0.0, 1.0],
                       [0.0, 1.0, 0.0],
                       [-1.0, 0.0, 0.0]], jnp.float32)
    lat_rt = jnp.concatenate([rot90, jnp.array([[0.0], [0.0], [5.0]], jnp.float32)], axis=1)
    AP_T = jnp.broadcast_to(eye_rt, (B, 3, 4)) + 0.01 * jax.random.normal(keys[4], (B, 3, 4))
    LAT_T = jnp.broadcast_to(lat_rt, (B, 3, 4)) + 0.01 * jax.random.normal(keys[5], (B, 3, 4))

    # deterministic synthetic "weights" for the stand-in pose head
    params = {
        'wrow': jax.random.normal(keys[6], (H, H), jnp.float32) / jnp.sqrt(float(H)),
        'wcol': jax.random.normal(keys[7], (W, W), jnp.float32) / jnp.sqrt(float(W)),
        'scale': jnp.linspace(0.5, 2.0, J, dtype=jnp.float32),
    }

    fwd = jax.jit(alg_resnet_forward)
    keypoints_3d = fwd(AP_img, AP_K, AP_T, LAT_img, LAT_K, LAT_T, params)
    jax.block_until_ready(keypoints_3d)
    assert keypoints_3d.shape == (B, J, 3)
    assert bool(jnp.all(jnp.isfinite(keypoints_3d)))
    print("KERNEL_OK")
</pallas_src>

<mosaic_0001>
module attributes {stable_mosaic.version = 11 : i64} {
  func.func @_pose2d_kernel(%arg0: i32, %arg1: i32, %arg2: memref<1x1x64x128xbf16, #tpu.memory_space<vmem>>, %arg3: memref<64x64xbf16, #tpu.memory_space<vmem>>, %arg4: memref<128x128xbf16, #tpu.memory_space<vmem>>, %arg5: memref<8xf32, #tpu.memory_space<smem>>, %arg6: memref<1024x16xbf16, #tpu.memory_space<vmem>>, %arg7: memref<2x64xbf16, #tpu.memory_space<vmem>>, %arg8: memref<1x1x1x16xf32, #tpu.memory_space<vmem>>) attributes {dimension_semantics = [#tpu.dimension_semantics<parallel>, #tpu.dimension_semantics<parallel>], iteration_bounds = array<i64: 2, 2>, scalar_prefetch = 0 : i64, scratch_operands = 0 : i64, tpu.core_type = #tpu.core_type<tc>, window_params = [{transform_indices = @transform_0, window_bounds = array<i64: 1, 1, 64, 128>}, {pipeline_mode = #tpu.pipeline_mode<synchronous>, transform_indices = @transform_1, window_bounds = array<i64: 64, 64>}, {pipeline_mode = #tpu.pipeline_mode<synchronous>, transform_indices = @transform_2, window_bounds = array<i64: 128, 128>}, {transform_indices = @transform_3, window_bounds = array<i64: 8>}, {pipeline_mode = #tpu.pipeline_mode<synchronous>, transform_indices = @transform_4, window_bounds = array<i64: 1024, 16>}, {pipeline_mode = #tpu.pipeline_mode<synchronous>, transform_indices = @transform_5, window_bounds = array<i64: 2, 64>}, {transform_indices = @transform_6, window_bounds = array<i64: 1, 1, 1, 16>}]} {
    %c0 = arith.constant 0 : index
    %c0_0 = arith.constant 0 : index
    %c0_1 = arith.constant 0 : index
    %c0_2 = arith.constant 0 : index
    %0 = vector.load %arg2[%c0, %c0_0, %c0_1, %c0_2] : memref<1x1x64x128xbf16, #tpu.memory_space<vmem>>, vector<1x1x64x128xbf16>
    %1 = vector.shape_cast %0 : vector<1x1x64x128xbf16> to vector<64x128xbf16>
    %c0_3 = arith.constant 0 : index
    %c0_4 = arith.constant 0 : index
    %2 = vector.load %arg4[%c0_3, %c0_4] : memref<128x128xbf16, #tpu.memory_space<vmem>>, vector<128x128xbf16>
    %cst = arith.constant dense<0.000000e+00> : vector<64x128xf32>
    %3 = tpu.matmul %1, %2, %cst {dimension_numbers = #tpu.dot_dimension_numbers<[1], [0], [0], [1], [0, 0, 1, 1], [], []>} : vector<64x128xbf16>, vector<128x128xbf16>, vector<64x128xf32> -> vector<64x128xf32>
    %4 = arith.truncf %3 : vector<64x128xf32> to vector<64x128xbf16>
    %c0_5 = arith.constant 0 : index
    %c0_6 = arith.constant 0 : index
    %5 = vector.load %arg3[%c0_5, %c0_6] : memref<64x64xbf16, #tpu.memory_space<vmem>>, vector<64x64xbf16>
    %cst_7 = arith.constant dense<0.000000e+00> : vector<64x128xf32>
    %6 = tpu.matmul %5, %4, %cst_7 {dimension_numbers = #tpu.dot_dimension_numbers<[1], [0], [0], [1], [0, 0, 1, 1], [], []>} : vector<64x64xbf16>, vector<64x128xbf16>, vector<64x128xf32> -> vector<64x128xf32>
    %7 = math.tanh %6 : vector<64x128xf32>
    %cst_8 = arith.constant dense<0xFF800000> : vector<64xf32>
    %8 = vector.multi_reduction <maximumf>, %7, %cst_8 [1] : vector<64x128xf32> to vector<64xf32>
    %9 = vector.shape_cast %8 : vector<64xf32> to vector<64x1xf32>
    %cst_9 = arith.constant dense<0xFF800000> : vector<1xf32>
    %10 = vector.multi_reduction <maximumf>, %9, %cst_9 [0] : vector<64x1xf32> to vector<1xf32>
    %11 = vector.shape_cast %10 : vector<1xf32> to vector<1x1xf32>
    %cst_10 = arith.constant dense<0x7F800000> : vector<64xf32>
    %12 = vector.multi_reduction <minimumf>, %7, %cst_10 [1] : vector<64x128xf32> to vector<64xf32>
    %13 = vector.shape_cast %12 : vector<64xf32> to vector<64x1xf32>
    %cst_11 = arith.constant dense<0x7F800000> : vector<1xf32>
    %14 = vector.multi_reduction <minimumf>, %13, %cst_11 [0] : vector<64x1xf32> to vector<1xf32>
    %15 = vector.shape_cast %14 : vector<1xf32> to vector<1x1xf32>
    %c0_12 = arith.constant 0 : index
    %c0_13 = arith.constant 0 : index
    %16 = vector.load %arg7[%c0_12, %c0_13] : memref<2x64xbf16, #tpu.memory_space<vmem>>, vector<2x64xbf16>
    %c0_14 = arith.constant 0 : index
    %17 = memref.load %arg5[%c0_14] : memref<8xf32, #tpu.memory_space<smem>>
    %18 = vector.broadcast %17 : f32 to vector<1x1xf32>
    %19 = arith.mulf %18, %11 : vector<1x1xf32>
    %20 = vector.broadcast %17 : f32 to vector<1x1xf32>
    %21 = arith.mulf %20, %15 : vector<1x1xf32>
    %22 = arith.maximumf %19, %21 : vector<1x1xf32>
    %23 = vector.broadcast %17 : f32 to vector<64x128xf32>
    %24 = arith.mulf %23, %7 : vector<64x128xf32>
    %25 = vector.broadcast %22 : vector<1x1xf32> to vector<64x128xf32>
    %26 = arith.subf %24, %25 : vector<64x128xf32>
    %27 = math.exp %26 : vector<64x128xf32>
    %28 = arith.truncf %27 : vector<64x128xf32> to vector<64x128xbf16>
    %cst_15 = arith.constant dense<0.000000e+00> : vector<2x128xf32>
    %29 = tpu.matmul %16, %28, %cst_15 {dimension_numbers = #tpu.dot_dimension_numbers<[1], [0], [0], [1], [0, 0, 1, 1], [], []>} : vector<2x64xbf16>, vector<64x128xbf16>, vector<2x128xf32> -> vector<2x128xf32>
    %c1 = arith.constant 1 : index
    %30 = memref.load %arg5[%c1] : memref<8xf32, #tpu.memory_space<smem>>
    %31 = vector.broadcast %30 : f32 to vector<1x1xf32>
    %32 = arith.mulf %31, %11 : vector<1x1xf32>
    %33 = vector.broadcast %30 : f32 to vector<1x1xf32>
    %34 = arith.mulf %33, %15 : vector<1x1xf32>
    %35 = arith.maximumf %32, %34 : vector<1x1xf32>
    %36 = vector.broadcast %30 : f32 to vector<64x128xf32>
    %37 = arith.mulf %36, %7 : vector<64x128xf32>
    %38 = vector.broadcast %35 : vector<1x1xf32> to vector<64x128xf32>
    %39 = arith.subf %37, %38 : vector<64x128xf32>
    %40 = math.exp %39 : vector<64x128xf32>
    %41 = arith.truncf %40 : vector<64x128xf32> to vector<64x128xbf16>
    %cst_16 = arith.constant dense<0.000000e+00> : vector<2x128xf32>
    %42 = tpu.matmul %16, %41, %cst_16 {dimension_numbers = #tpu.dot_dimension_numbers<[1], [0], [0], [1], [0, 0, 1, 1], [], []>} : vector<2x64xbf16>, vector<64x128xbf16>, vector<2x128xf32> -> vector<2x128xf32>
    %c2 = arith.constant 2 : index
    %43 = memref.load %arg5[%c2] : memref<8xf32, #tpu.memory_space<smem>>
    %44 = vector.broadcast %43 : f32 to vector<1x1xf32>
    %45 = arith.mulf %44, %11 : vector<1x1xf32>
    %46 = vector.broadcast %43 : f32 to vector<1x1xf32>
    %47 = arith.mulf %46, %15 : vector<1x1xf32>
    %48 = arith.maximumf %45, %47 : vector<1x1xf32>
    %49 = vector.broadcast %43 : f32 to vector<64x128xf32>
    %50 = arith.mulf %49, %7 : vector<64x128xf32>
    %51 = vector.broadcast %48 : vector<1x1xf32> to vector<64x128xf32>
    %52 = arith.subf %50, %51 : vector<64x128xf32>
    %53 = math.exp %52 : vector<64x128xf32>
    %54 = arith.truncf %53 : vector<64x128xf32> to vector<64x128xbf16>
    %cst_17 = arith.constant dense<0.000000e+00> : vector<2x128xf32>
    %55 = tpu.matmul %16, %54, %cst_17 {dimension_numbers = #tpu.dot_dimension_numbers<[1], [0], [0], [1], [0, 0, 1, 1], [], []>} : vector<2x64xbf16>, vector<64x128xbf16>, vector<2x128xf32> -> vector<2x128xf32>
    %c3 = arith.constant 3 : index
    %56 = memref.load %arg5[%c3] : memref<8xf32, #tpu.memory_space<smem>>
    %57 = vector.broadcast %56 : f32 to vector<1x1xf32>
    %58 = arith.mulf %57, %11 : vector<1x1xf32>
    %59 = vector.broadcast %56 : f32 to vector<1x1xf32>
    %60 = arith.mulf %59, %15 : vector<1x1xf32>
    %61 = arith.maximumf %58, %60 : vector<1x1xf32>
    %62 = vector.broadcast %56 : f32 to vector<64x128xf32>
    %63 = arith.mulf %62, %7 : vector<64x128xf32>
    %64 = vector.broadcast %61 : vector<1x1xf32> to vector<64x128xf32>
    %65 = arith.subf %63, %64 : vector<64x128xf32>
    %66 = math.exp %65 : vector<64x128xf32>
    %67 = arith.truncf %66 : vector<64x128xf32> to vector<64x128xbf16>
    %cst_18 = arith.constant dense<0.000000e+00> : vector<2x128xf32>
    %68 = tpu.matmul %16, %67, %cst_18 {dimension_numbers = #tpu.dot_dimension_numbers<[1], [0], [0], [1], [0, 0, 1, 1], [], []>} : vector<2x64xbf16>, vector<64x128xbf16>, vector<2x128xf32> -> vector<2x128xf32>
    %c4 = arith.constant 4 : index
    %69 = memref.load %arg5[%c4] : memref<8xf32, #tpu.memory_space<smem>>
    %70 = vector.broadcast %69 : f32 to vector<1x1xf32>
    %71 = arith.mulf %70, %11 : vector<1x1xf32>
    %72 = vector.broadcast %69 : f32 to vector<1x1xf32>
    %73 = arith.mulf %72, %15 : vector<1x1xf32>
    %74 = arith.maximumf %71, %73 : vector<1x1xf32>
    %75 = vector.broadcast %69 : f32 to vector<64x128xf32>
    %76 = arith.mulf %75, %7 : vector<64x128xf32>
    %77 = vector.broadcast %74 : vector<1x1xf32> to vector<64x128xf32>
    %78 = arith.subf %76, %77 : vector<64x128xf32>
    %79 = math.exp %78 : vector<64x128xf32>
    %80 = arith.truncf %79 : vector<64x128xf32> to vector<64x128xbf16>
    %cst_19 = arith.constant dense<0.000000e+00> : vector<2x128xf32>
    %81 = tpu.matmul %16, %80, %cst_19 {dimension_numbers = #tpu.dot_dimension_numbers<[1], [0], [0], [1], [0, 0, 1, 1], [], []>} : vector<2x64xbf16>, vector<64x128xbf16>, vector<2x128xf32> -> vector<2x128xf32>
    %c5 = arith.constant 5 : index
    %82 = memref.load %arg5[%c5] : memref<8xf32, #tpu.memory_space<smem>>
    %83 = vector.broadcast %82 : f32 to vector<1x1xf32>
    %84 = arith.mulf %83, %11 : vector<1x1xf32>
    %85 = vector.broadcast %82 : f32 to vector<1x1xf32>
    %86 = arith.mulf %85, %15 : vector<1x1xf32>
    %87 = arith.maximumf %84, %86 : vector<1x1xf32>
    %88 = vector.broadcast %82 : f32 to vector<64x128xf32>
    %89 = arith.mulf %88, %7 : vector<64x128xf32>
    %90 = vector.broadcast %87 : vector<1x1xf32> to vector<64x128xf32>
    %91 = arith.subf %89, %90 : vector<64x128xf32>
    %92 = math.exp %91 : vector<64x128xf32>
    %93 = arith.truncf %92 : vector<64x128xf32> to vector<64x128xbf16>
    %cst_20 = arith.constant dense<0.000000e+00> : vector<2x128xf32>
    %94 = tpu.matmul %16, %93, %cst_20 {dimension_numbers = #tpu.dot_dimension_numbers<[1], [0], [0], [1], [0, 0, 1, 1], [], []>} : vector<2x64xbf16>, vector<64x128xbf16>, vector<2x128xf32> -> vector<2x128xf32>
    %c6 = arith.constant 6 : index
    %95 = memref.load %arg5[%c6] : memref<8xf32, #tpu.memory_space<smem>>
    %96 = vector.broadcast %95 : f32 to vector<1x1xf32>
    %97 = arith.mulf %96, %11 : vector<1x1xf32>
    %98 = vector.broadcast %95 : f32 to vector<1x1xf32>
    %99 = arith.mulf %98, %15 : vector<1x1xf32>
    %100 = arith.maximumf %97, %99 : vector<1x1xf32>
    %101 = vector.broadcast %95 : f32 to vector<64x128xf32>
    %102 = arith.mulf %101, %7 : vector<64x128xf32>
    %103 = vector.broadcast %100 : vector<1x1xf32> to vector<64x128xf32>
    %104 = arith.subf %102, %103 : vector<64x128xf32>
    %105 = math.exp %104 : vector<64x128xf32>
    %106 = arith.truncf %105 : vector<64x128xf32> to vector<64x128xbf16>
    %cst_21 = arith.constant dense<0.000000e+00> : vector<2x128xf32>
    %107 = tpu.matmul %16, %106, %cst_21 {dimension_numbers = #tpu.dot_dimension_numbers<[1], [0], [0], [1], [0, 0, 1, 1], [], []>} : vector<2x64xbf16>, vector<64x128xbf16>, vector<2x128xf32> -> vector<2x128xf32>
    %c7 = arith.constant 7 : index
    %108 = memref.load %arg5[%c7] : memref<8xf32, #tpu.memory_space<smem>>
    %109 = vector.broadcast %108 : f32 to vector<1x1xf32>
    %110 = arith.mulf %109, %11 : vector<1x1xf32>
    %111 = vector.broadcast %108 : f32 to vector<1x1xf32>
    %112 = arith.mulf %111, %15 : vector<1x1xf32>
    %113 = arith.maximumf %110, %112 : vector<1x1xf32>
    %114 = vector.broadcast %108 : f32 to vector<64x128xf32>
    %115 = arith.mulf %114, %7 : vector<64x128xf32>
    %116 = vector.broadcast %113 : vector<1x1xf32> to vector<64x128xf32>
    %117 = arith.subf %115, %116 : vector<64x128xf32>
    %118 = math.exp %117 : vector<64x128xf32>
    %119 = arith.truncf %118 : vector<64x128xf32> to vector<64x128xbf16>
    %cst_22 = arith.constant dense<0.000000e+00> : vector<2x128xf32>
    %120 = tpu.matmul %16, %119, %cst_22 {dimension_numbers = #tpu.dot_dimension_numbers<[1], [0], [0], [1], [0, 0, 1, 1], [], []>} : vector<2x64xbf16>, vector<64x128xbf16>, vector<2x128xf32> -> vector<2x128xf32>
    %121 = tpu.concatenate %29, %42, %55, %68, %81, %94, %107, %120 in 1 : vector<2x128xf32>, vector<2x128xf32>, vector<2x128xf32>, vector<2x128xf32>, vector<2x128xf32>, vector<2x128xf32>, vector<2x128xf32>, vector<2x128xf32> -> vector<2x1024xf32>
    %122 = arith.truncf %121 : vector<2x1024xf32> to vector<2x1024xbf16>
    %c0_23 = arith.constant 0 : index
    %c0_24 = arith.constant 0 : index
    %123 = vector.load %arg6[%c0_23, %c0_24] : memref<1024x16xbf16, #tpu.memory_space<vmem>>, vector<1024x16xbf16>
    %cst_25 = arith.constant dense<0.000000e+00> : vector<2x16xf32>
    %124 = tpu.matmul %122, %123, %cst_25 {dimension_numbers = #tpu.dot_dimension_numbers<[1], [0], [0], [1], [0, 0, 1, 1], [], []>} : vector<2x1024xbf16>, vector<1024x16xbf16>, vector<2x16xf32> -> vector<2x16xf32>
    %125 = vector.extract_strided_slice %124 {offsets = [0, 0], sizes = [1, 8], strides = [1, 1]} : vector<2x16xf32> to vector<1x8xf32>
    %126 = vector.extract_strided_slice %124 {offsets = [0, 8], sizes = [1, 8], strides = [1, 1]} : vector<2x16xf32> to vector<1x8xf32>
    %127 = vector.extract_strided_slice %124 {offsets = [1, 8], sizes = [1, 8], strides = [1, 1]} : vector<2x16xf32> to vector<1x8xf32>
    %cst_26 = arith.constant 1.000000e+00 : f32
    %128 = vector.broadcast %cst_26 : f32 to vector<1x8xf32>
    %129 = arith.divf %128, %126 : vector<1x8xf32>
    %130 = arith.mulf %125, %129 : vector<1x8xf32>
    %131 = arith.mulf %127, %129 : vector<1x8xf32>
    %132 = tpu.concatenate %130, %131 in 1 : vector<1x8xf32>, vector<1x8xf32> -> vector<1x16xf32>
    %133 = vector.shape_cast %132 : vector<1x16xf32> to vector<1x1x1x16xf32>
    %c0_27 = arith.constant 0 : index
    %c0_28 = arith.constant 0 : index
    %c0_29 = arith.constant 0 : index
    %c0_30 = arith.constant 0 : index
    %134 = vector.load %arg8[%c0_27, %c0_28, %c0_29, %c0_30] : memref<1x1x1x16xf32, #tpu.memory_space<vmem>>, vector<1x1x1x16xf32>
    tpu.vector_store %arg8[%c0_27, %c0_28, %c0_29, %c0_30], %133 {strides = array<i32>} : memref<1x1x1x16xf32, #tpu.memory_space<vmem>>, vector<1x1x1x16xf32>,
    return
  }
  func.func @transform_0(%arg0: i32, %arg1: i32) -> (i32, i32, i32, i32) {
    %c0_i32 = arith.constant 0 : i32
    %c0_i32_0 = arith.constant 0 : i32
    %c0_i32_1 = arith.constant 0 : i32
    return %arg0, %arg1, %c0_i32, %c0_i32_0 : i32, i32, i32, i32
  }
  func.func @transform_1(%arg0: i32, %arg1: i32) -> (i32, i32) {
    %c0_i32 = arith.constant 0 : i32
    %c0_i32_0 = arith.constant 0 : i32
    %c0_i32_1 = arith.constant 0 : i32
    return %c0_i32, %c0_i32_0 : i32, i32
  }
  func.func @transform_2(%arg0: i32, %arg1: i32) -> (i32, i32) {
    %c0_i32 = arith.constant 0 : i32
    %c0_i32_0 = arith.constant 0 : i32
    %c0_i32_1 = arith.constant 0 : i32
    return %c0_i32, %c0_i32_0 : i32, i32
  }
  func.func @transform_3(%arg0: i32, %arg1: i32) -> i32 {
    %c0_i32 = arith.constant 0 : i32
    %c0_i32_0 = arith.constant 0 : i32
    return %c0_i32 : i32
  }
  func.func @transform_4(%arg0: i32, %arg1: i32) -> (i32, i32) {
    %c0_i32 = arith.constant 0 : i32
    %c0_i32_0 = arith.constant 0 : i32
    %c0_i32_1 = arith.constant 0 : i32
    return %c0_i32, %c0_i32_0 : i32, i32
  }
  func.func @transform_5(%arg0: i32, %arg1: i32) -> (i32, i32) {
    %c0_i32 = arith.constant 0 : i32
    %c0_i32_0 = arith.constant 0 : i32
    %c0_i32_1 = arith.constant 0 : i32
    return %c0_i32, %c0_i32_0 : i32, i32
  }
  func.func @transform_6(%arg0: i32, %arg1: i32) -> (i32, i32, i32, i32) {
    %c0_i32 = arith.constant 0 : i32
    %c0_i32_0 = arith.constant 0 : i32
    %c0_i32_1 = arith.constant 0 : i32
    return %arg0, %arg1, %c0_i32, %c0_i32_0 : i32, i32, i32, i32
  }
}

</mosaic_0001>

<llo_original>
// kernel: custom-call.53
$region0: #{custom-call.53}
  %s0 = inlined_call_operand.vmem [shape: f32[2,8,8,4], index: 0, kind: input, shape index: {}]
  %s1 = inlined_call_operand.vmem [shape: f32[2,8,8,4], index: 1, kind: output, shape index: {0}]
  %s2 = inlined_call_operand.vmem [shape: f32[2,8,4], index: 2, kind: output, shape index: {1}]
  %3 = xla_tuple %s1, %s2
  $region1: #{custom-call.53} parent=0
    #allocation0 [shape = 'u8[8192]{0}', space=vmem, size = 0x2000, scoped, tag = 'operand span for operand 0']
    #allocation1 [shape = 'u8[8192]{0}', space=vmem, size = 0x2000, scoped, tag = 'operand span for operand 1']
    #allocation2 [shape = 'u8[8192]{0}', space=vmem, size = 0x2000, scoped, tag = 'operand span for operand 2']
    loop: start=0, step=1, limit=18
    $region2: #{custom-call.53} parent=1 // loop_pre_header
      _
    $region3: #{custom-call.53} parent=1 // loop_header
      %s5 = sphi 0, %s9
      %p6 = scmp.ge.s32.totalorder %s5, 18
      %s12 = sphi 0, %s38
      %s13 = sphi 0, %s34
      %s14 = sphi 0, %s30
      %s15 = sphi 0, %s26
      %s16 = sphi 0, %s12
      %s17 = sphi 0, %s13
      %s18 = sphi 0, %s14
      %s19 = sphi 0, %s15
      %s20 = sphi 0, %s16
      %s21 = sphi 0, %s17
      %s22 = sphi 0, %s18
      %s23 = sphi 0, %s19
      %s55 = sphi 0, %s57
      %s58 = sphi 0, %s55
      %s59 = sphi 0, %s58
      %s75 = sphi 0, %s59
    $region4: #{custom-call.53} parent=1 // loop_header_branch
      %8 = sbr.rel (%p6) target = $region8
    $region5: #{custom-call.53} parent=1 // loop_body
      %s10 = ssub.s32 %s5, 1
      %s11 = ssub.s32 %s5, 2
      %s24 = sadd.s32 1, %s15
      %p25 = scmp.ge.s32.totalorder %s24, 1
      %s26 = scalar_select %p25, 0, %s24
      %s27 = sadd.s32 1, %s14
      %s28 = scalar_select %p25, %s27, %s14
      %p29 = scmp.ge.s32.totalorder %s28, 1
      %s30 = scalar_select %p29, 0, %s28
      %s31 = sadd.s32 1, %s13
      %s32 = scalar_select %p29, %s31, %s13
      %p33 = scmp.ge.s32.totalorder %s32, 8
      %s34 = scalar_select %p33, 0, %s32
      %s35 = sadd.s32 1, %s12
      %s36 = scalar_select %p33, %s35, %s12
      %p37 = scmp.ge.s32.totalorder %s36, 2
      %s38 = scalar_select %p37, 0, %s36
      %p39 = scmp.lt.s32.totalorder %s13, 0
      %s40 = ssub.s32 0, %s13
      %s41 = scalar_select %p39, %s40, %s13
      %s42 = sshrl.u32 %s41, 3
      %s43 = ssub.s32 0, %s42
      %s44 = scalar_select %p39, %s43, %s42
      %p45 = scmp.lt.s32.totalorder %s34, 0
      %s46 = ssub.s32 0, %s34
      %s47 = scalar_select %p45, %s46, %s34
      %s48 = sshrl.u32 %s47, 3
      %s49 = ssub.s32 0, %s48
      %s50 = scalar_select %p45, %s49, %s48
      %s51 = ssub.s32 %s12, %s38
      %s52 = ssub.s32 %s44, %s50
      %s53 = sor.u32 %s51, %s52
      %p54 = scmp.eq.s32.totalorder %s53, 0
      %s56 = sadd.s32 %s55, 1
      %s57 = scalar_select %p54, %s55, %s56
      %p60 = pneg %p54
      %p61 = scmp.eq.s32.totalorder %s5, 15
      %p62 = por %p60, %p61
      %p63 = scmp.ne.s32.totalorder %s55, %s58
      %p64 = scmp.eq.s32.totalorder %s5, 0
      %p65 = por %p63, %p64
      %p66 = scmp.ne.s32.totalorder %s55, %s58
      %p67 = scmp.eq.s32.totalorder %s10, 15
      %p68 = por %p66, %p67
      %p69 = scmp.ne.s32.totalorder %s58, %s59
      %p70 = scmp.eq.s32.totalorder %s10, 0
      %p71 = por %p69, %p70
      %p72 = scmp.ne.s32.totalorder %s58, %s59
      %p73 = scmp.eq.s32.totalorder %s11, 15
      %p74 = por %p72, %p73
      %p76 = scmp.ne.s32.totalorder %s59, %s75
      %p77 = scmp.eq.s32.totalorder %s11, 0
      %p78 = por %p76, %p77
      %p79 = scmp.le.s32.totalorder 1, %s5
      %p80 = scmp.lt.s32.totalorder %s5, 17
      %p81 = pnand %p79, %p80
      %p82 = pneg %p81
      // Predicated region
      $region9: #{custom-call.53} parent=5 // pred_check
        _
      $region10: #{custom-call.53} parent=5 // pred_check_branch
        %84 = sbr.rel (%p81) target = $region12
      $region11: #{custom-call.53} parent=5 // pred_region
        %s85 = ssub.s32 %s5, 1
      $region12: #{custom-call.53} parent=5 // pred_fallthru
        _
      %p86 = scmp.lt.s32.totalorder %s5, 16
      // Predicated region
      $region13: #{custom-call.53} parent=5 // pred_check
        %p87 = pneg %p86
      $region14: #{custom-call.53} parent=5 // pred_check_branch
        %89 = sbr.rel (%p87) target = $region16
      $region15: #{custom-call.53} parent=5 // pred_region
        %s90 = sand.u32 %s5, 1
        %s91 = sand.u32 %s5, 1
        %s92 = smul.addr %s91, 8
        %s93 = scalar_lea.vmem [#allocation0], %s92
        %s94 = sadd.s32 %s15, %s14
        %s95 = sadd.s32 %s94, %s13
        %s96 = smul.addr %s12, 8
        %s97 = sadd.s32 %s95, %s96
        %s98 = smul.addr %s97, 8
        %s99 = scalar_lea.vmem %s0, %s98
        // Predicated region
        $region17: #{custom-call.53} parent=15 // pred_check
          _
        $region18: #{custom-call.53} parent=15 // pred_check_branch
          %101 = sbr.rel (0) target = $region20
        $region19: #{custom-call.53} parent=15 // pred_region
          // Predicated region
          $region21: #{custom-call.53} parent=19 // pred_check
            _
          $region22: #{custom-call.53} parent=19 // pred_check_branch
            %103 = sbr.rel (0) target = $region24
          $region23: #{custom-call.53} parent=19 // pred_region
            // Predicated region
            $region36: #{custom-call.53} parent=23 // pred_check
              _
            $region37: #{custom-call.53} parent=23 // pred_check_branch
              %119 = sbr.rel (0) target = $region39
            $region38: #{custom-call.53} parent=23 // pred_region
              loop: start=0, step=1, limit=1
              $region40: #{custom-call.53} parent=38 // loop_pre_header
                _
              $region41: #{custom-call.53} parent=38 // loop_header
                %s121 = sphi 0, %s125
                %p122 = scmp.ge.s32.totalorder %s121, 1
                %s126 = sphi %s99, %s99
                %s127 = sphi %s93, %s93
              $region42: #{custom-call.53} parent=38 // loop_header_branch
                %124 = sbr.rel (%p122) target = $region46
              $region43: #{custom-call.53} parent=38 // loop_body
                %v128 = vld [vmem:[%s126] sm:$0xff]
                %129 = vst [vmem:[%s127] sm:$0xff] %v128
              $region44: #{custom-call.53} parent=38 // loop_footer
                %s125 = sadd.s32 1, %s121
              $region45: #{custom-call.53} parent=38 // loop_footer_branch
                %120 = sbr.rel target = $region41
              $region46: #{custom-call.53} parent=38 // loop_exit
                _
            $region39: #{custom-call.53} parent=23 // pred_fallthru
              _
            // Predicated region
            $region47: #{custom-call.53} parent=23 // pred_check
              _
            $region48: #{custom-call.53} parent=23 // pred_check_branch
              %131 = sbr.rel target = $region50
            $region49: #{custom-call.53} parent=23 // pred_region
              _
            $region50: #{custom-call.53} parent=23 // pred_fallthru
              _
          $region24: #{custom-call.53} parent=19 // pred_fallthru
            _
          // Predicated region
          $region25: #{custom-call.53} parent=19 // pred_check
            _
          $region26: #{custom-call.53} parent=19 // pred_check_branch
            %105 = sbr.rel target = $region28
          $region27: #{custom-call.53} parent=19 // pred_region
            %s107 = ssub.s32 256, 1
            loop: start=0, step=1, limit=1
            $region29: #{custom-call.53} parent=27 // loop_pre_header
              _
            $region30: #{custom-call.53} parent=27 // loop_header
              %s109 = sphi 0, %s113
              %p110 = scmp.ge.s32.totalorder %s109, 1
              %s114 = sphi %s99, %s99
              %s115 = sphi %s93, %s93
            $region31: #{custom-call.53} parent=27 // loop_header_branch
              %112 = sbr.rel (%p110) target = $region35
            $region32: #{custom-call.53} parent=27 // loop_body
              %v116 = vld [vmem:[%s114] sm:%s107]
              %117 = vst [vmem:[%s115] sm:%s107] %v116
            $region33: #{custom-call.53} parent=27 // loop_footer
              %s113 = sadd.s32 1, %s109
            $region34: #{custom-call.53} parent=27 // loop_footer_branch
              %108 = sbr.rel target = $region30
            $region35: #{custom-call.53} parent=27 // loop_exit
              _
          $region28: #{custom-call.53} parent=19 // pred_fallthru
            _
        $region20: #{custom-call.53} parent=15 // pred_fallthru
          _
        %132 = vnop
      $region16: #{custom-call.53} parent=5 // pred_fallthru
        _
      %p133 = scmp.le.s32.totalorder 1, %s5
      %p134 = scmp.lt.s32.totalorder %s5, 17
      %p135 = pnand %p133, %p134
      %p136 = pneg %p135
      // Predicated region
      $region51: #{custom-call.53} parent=5 // pred_check
        _
      $region52: #{custom-call.53} parent=5 // pred_check_branch
        %138 = sbr.rel (%p135) target = $region54
      $region53: #{custom-call.53} parent=5 // pred_region
        #allocation3 [shape = 'f32[8,128]{1,0}', space=vmem, size = 0x1000, scoped, tag = 'scratch for Householder reflectors']
        %s139 = ssub.s32 %s5, 1
        %s140 = sand.u32 %s10, 1
        %s141 = sand.u32 %s10, 1
        %s142 = smul.addr %s141, 8
        %s143 = scalar_lea.vmem [#allocation0], %s142
        %s144 = sand.u32 %s10, 1
        %s145 = sand.u32 %s10, 1
        %s146 = smul.addr %s145, 8
        %s147 = scalar_lea.vmem [#allocation0], %s146
        %s148 = sand.u32 %s10, 1
        %s149 = sand.u32 %s10, 1
        %s150 = smul.addr %s149, 8
        %s151 = scalar_lea.vmem [#allocation1], %s150
        %p152 = pneg %p71
        %p153 = pneg %p68
        %s154 = sand.u32 %s58, 1
        %s155 = sand.u32 %s58, 1
        %s156 = smul.addr %s155, 8
        %s157 = scalar_lea.vmem [#allocation2], %s156
        %p158 = scmp.lt.s32.totalorder %s17, 0
        %s159 = ssub.s32 0, %s17
        %s160 = scalar_select %p158, %s159, %s17
        %s161 = sshrl.u32 %s160, 3
        %s162 = ssub.s32 0, %s161
        %s163 = scalar_select %p158, %s162, %s161
        %s164 = sand.u32 %s17, 7
        %s165 = scalar_lea.vmem %s157, %s164 [#allocation2]
        %v166 = vld [vmem:[%s143] sm:$0xff]
        %167 = vst [vmem:[%s151] sm:$0xff] %v166
        %168 = vst [vmem:[%s165] sm:$0x1] 0.0
        loop: start=0, step=1, limit=4
        $region55: #{custom-call.53} parent=53 // loop_pre_header
          _
        $region56: #{custom-call.53} parent=53 // loop_header
          %s170 = sphi 0, %s174
          %p171 = scmp.ge.s32.totalorder %s170, 4
        $region57: #{custom-call.53} parent=53 // loop_header_branch
          %173 = sbr.rel (%p171) target = $region61
        $region58: #{custom-call.53} parent=53 // loop_body
          %v175 = vld [vmem:[%s151] sm:$0xff]
          %v176 = vlaneseq
          %v177 = vshrl.u32 %v176, 7
          %v179 = vstv %s170
          %vm180 = vcmp.gt.s32.totalorder %v177, %v179
          %vm181 = vcmp.lt.s32.totalorder %v177, 8
          %vm182 = vmand %vm180, %vm181
          %v183 = vsel %vm182, %v175, 0.0
          %v184 = vmul.f32 %v183, %v183
          %v185 = vrot.slane %v184, 4
          %v186 = vadd.f32 %v184, %v185
          %v187 = vrot.slane %v186, 2
          %v188 = vadd.f32 %v186, %v187
          %v189 = vrot.slane %v188, 1
          %v190 = vadd.f32 %v188, %v189
          %v191 = vrsqrt.pop %v190
          %v192 = vmul.f32 %v190, %v191
          %vm193 = vcmp.eq.f32.partialorder %v190, inf
          %v194 = vsel %vm193, %v190, %v192
          %vm195 = vcmp.eq.f32.partialorder %v190, 0.0
          %v196 = vand.u32 %v190, 2147483648
          %v197 = vsel %vm195, %v196, %v194
          %vm198 = vcmp.eq.f32.partialorder %v190, 0.0
          %s199 = sshrl.u32 %s170, 3
          %s200 = sand.u32 %s170, 7
          %s201 = smul.addr %s199, 8
          %s202 = sadd.s32 %s200, %s201
          %s203 = scalar_lea.vmem %s151, %s202 [#allocation1]
          %v204 = vld [vmem:[%s203] ss:$0 sm:$0xff]
          %v205 = vand.u32 2147483647, %v204
          %v206 = vmax.f32 %v205, 0.0
          %v207 = vand.u32 2147483647, %v197
          %v208 = vmax.f32 %v206, %v207
          %v209 = vrcp.pop %v208
          %v210 = vmul.f32 %v205, %v209
          %v211 = vmul.f32 %v210, %v210
          %v212 = vrcp.pop %v208
          %v213 = vmul.f32 0.0, %v212
          %v214 = vmul.f32 %v213, %v213
          %v215 = vadd.f32 %v211, %v214
          %v216 = vrcp.pop %v208
          %v217 = vmul.f32 %v207, %v216
          %v218 = vmul.f32 %v217, %v217
          %v219 = vadd.f32 %v215, %v218
          %vm220 = vcmp.eq.f32.partialorder %v208, 0.0
          %v221 = vrsqrt.pop %v219
          %v222 = vmul.f32 %v219, %v221
          %vm223 = vcmp.eq.f32.partialorder %v219, inf
          %v224 = vsel %vm223, %v219, %v222
          %vm225 = vcmp.eq.f32.partialorder %v219, 0.0
          %v226 = vand.u32 %v219, 2147483648
          %v227 = vsel %vm225, %v226, %v224
          %v228 = vmul.f32 %v208, %v227
          %v229 = vsel %vm220, 0.0, %v228
          %vm230 = vcmp.lt.f32.partialorder %v204, 0.0
          %v231 = vxor.u32 %v229, 2147483648
          %v232 = vsel %vm230, %v229, %v231
          %v233 = vsub.f32 %v232, %v204
          %v234 = vrcp.pop %v232
          %v235 = vmul.f32 %v233, %v234
          %v236 = vsel %vm198, %v204, %v232
          %v237 = vsel %vm198, 0.0, %v235
          %v238 = vsub.f32 %v204, %v236
          %s239 = smov %s151
          %v240 = vlaneseq
          %v241 = vshrl.u32 %v240, 7
          %v242 = vmov %v241
          %v243 = vld [vmem:[%s239] sm:$0xff]
          %v245 = vstv %s170
          %vm246 = vcmp.gt.s32.totalorder %v242, %v245
          %vm247 = vcmp.lt.s32.totalorder %v242, 8
          %vm248 = vmand %vm246, %vm247
          %v249 = vsel %vm248, %v243, 0.0
          %v250 = vrcp.pop %v238
          %v251 = vmul.f32 %v249, %v250
          %v252 = vsel %vm198, 0.0, %v251
          %v253 = vstv %s170
          %v254 = vlaneseq
          %v255 = vand.u32 %v254, 127
          %vm256 = vcmp.eq.s32.totalorder %v255, %v253
          %v257 = vsel %vm256, %v252, 0.0
          %258 = vadd.xlane.f32.xlu0 %v257
          %v259 = vpop.xlane.xlu0 %258
          %260 = vst [vmem:[#allocation3] sm:$0xff] %v259
          %s261 = scalar_lea.vmem [#allocation3], %s170
          %262 = vst [vmem:[%s261] sm:$0x1] 1.0
          %v263 = vstv %s170
          %v264 = vlaneseq
          %v265 = vand.u32 %v264, 127
          %vm266 = vcmp.eq.s32.totalorder %v265, %v263
          %v267 = vsel %vm266, %v237, 0.0
          %268 = vadd.xlane.f32.xlu0 %v267
          %v269 = vpop.xlane.xlu0 %268
          %v270 = vstv %s170
          %v271 = vlaneseq
          %v272 = vand.u32 %v271, 127
          %vm273 = vcmp.eq.s32.totalorder %v272, %v270
          %v274 = vld [vmem:[%s165] ss:$0 sm:$0xff]
          %v275 = vsel %vm273, %v269, %v274
          %276 = vst [vmem:[%s165] sm:$0x1] %v275
          %s277 = smov %s151
          %s278 = smov [#allocation3]
          %v279 = vlaneseq
          %v280 = vshrl.u32 %v279, 7
          %v281 = vmov %v280
          %v283 = vld [vmem:[%s278] sm:$0xff]
          %v284 = vld [vmem:[%s277] sm:$0xff]
          %v285 = vmul.f32 %v283, %v284
          %vm286 = vcmp.lt.s32.totalorder %v281, 8
          %v287 = vsel %vm286, %v285, 0.0
          %v288 = vrot.slane %v287, 4
          %v289 = vadd.f32 %v287, %v288
          %v290 = vrot.slane %v289, 2
          %v291 = vadd.f32 %v289, %v290
          %v292 = vrot.slane %v291, 1
          %v293 = vadd.f32 %v291, %v292
          %s294 = smov %s277
          %s295 = smov %s278
          %v296 = vlaneseq
          %v297 = vshrl.u32 %v296, 7
          %v298 = vmov %v297
          %v299 = vmul.f32 %v293, %v269
          %v301 = vlaneseq
          %v302 = vand.u32 %v301, 127
          %v303 = vld [vmem:[%s295] sm:$0xff]
          %v304 = vmul.f32 %v303, %v299
          %v305 = vld [vmem:[%s294] sm:$0xff]
          %v306 = vstv %s170
          %vm307 = vcmp.gt.s32.totalorder %v302, %v306
          %v308 = vsub.f32 %v305, %v304
          %v309 = vsel %vm307, %v308, %v305
          %v310 = vstv %s170
          %v311 = vlaneseq
          %v312 = vand.u32 %v311, 127
          %vm313 = vcmp.eq.s32.totalorder %v312, %v310
          %v314 = vstv %s170
          %vm315 = vcmp.ge.s32.totalorder %v298, %v314
          %vm316 = vmand %vm313, %vm315
          %v317 = vsel %vm316, %v303, %v309
          %318 = vst [vmem:[%s294] sm:$0xff] %v317
          %s319 = scalar_lea.vmem %s294, %s170
          %v320 = vld [vmem:[%s319] ss:$0 sm:$0xff]
          %v321 = vstv %s170
          %v322 = vlaneseq
          %v323 = vand.u32 %v322, 127
          %vm324 = vcmp.eq.s32.totalorder %v323, %v321
          %v325 = vsel %vm324, %v236, %v320
          %326 = vst [vmem:[%s319] sm:$0x1] %v325
        $region59: #{custom-call.53} parent=53 // loop_footer
          %s174 = sadd.s32 1, %s170
        $region60: #{custom-call.53} parent=53 // loop_footer_branch
          %169 = sbr.rel target = $region56
        $region61: #{custom-call.53} parent=53 // loop_exit
          _
        %s327 = sand.u32 %s10, 1
        %s328 = sand.u32 %s10, 1
        %s329 = smul.addr %s328, 8
        %s330 = scalar_lea.vmem [#allocation1], %s329
        %s331 = sand.u32 %s58, 1
        %s332 = sand.u32 %s58, 1
        %s333 = smul.addr %s332, 8
        %s334 = scalar_lea.vmem [#allocation2], %s333
        %s335 = sadd.s32 %s19, %s18
        %s336 = sadd.s32 %s335, %s17
        %s337 = smul.addr %s16, 8
        %s338 = sadd.s32 %s336, %s337
        %s339 = smul.addr %s338, 8
        %s340 = scalar_lea.vmem %s1, %s339
        // Predicated region
        $region62: #{custom-call.53} parent=53 // pred_check
          _
        $region63: #{custom-call.53} parent=53 // pred_check_branch
          %342 = sbr.rel (0) target = $region65
        $region64: #{custom-call.53} parent=53 // pred_region
          // Predicated region
          $region66: #{custom-call.53} parent=64 // pred_check
            _
          $region67: #{custom-call.53} parent=64 // pred_check_branch
            %344 = sbr.rel (0) target = $region69
          $region68: #{custom-call.53} parent=64 // pred_region
            // Predicated region
            $region81: #{custom-call.53} parent=68 // pred_check
              _
            $region82: #{custom-call.53} parent=68 // pred_check_branch
              %360 = sbr.rel (0) target = $region84
            $region83: #{custom-call.53} parent=68 // pred_region
              loop: start=0, step=1, limit=1
              $region85: #{custom-call.53} parent=83 // loop_pre_header
                _
              $region86: #{custom-call.53} parent=83 // loop_header
                %s362 = sphi 0, %s366
                %p363 = scmp.ge.s32.totalorder %s362, 1
                %s367 = sphi %s330, %s330
                %s368 = sphi %s340, %s340
              $region87: #{custom-call.53} parent=83 // loop_header_branch
                %365 = sbr.rel (%p363) target = $region91
              $region88: #{custom-call.53} parent=83 // loop_body
                %v369 = vld [vmem:[%s367] sm:$0xff]
                %370 = vst [vmem:[%s368] sm:$0xff] %v369
              $region89: #{custom-call.53} parent=83 // loop_footer
                %s366 = sadd.s32 1, %s362
              $region90: #{custom-call.53} parent=83 // loop_footer_branch
                %361 = sbr.rel target = $region86
              $region91: #{custom-call.53} parent=83 // loop_exit
                _
            $region84: #{custom-call.53} parent=68 // pred_fallthru
              _
            // Predicated region
            $region92: #{custom-call.53} parent=68 // pred_check
              _
            $region93: #{custom-call.53} parent=68 // pred_check_branch
              %372 = sbr.rel target = $region95
            $region94: #{custom-call.53} parent=68 // pred_region
              _
            $region95: #{custom-call.53} parent=68 // pred_fallthru
              _
          $region69: #{custom-call.53} parent=64 // pred_fallthru
            _
          // Predicated region
          $region70: #{custom-call.53} parent=64 // pred_check
            _
          $region71: #{custom-call.53} parent=64 // pred_check_branch
            %346 = sbr.rel target = $region73
          $region72: #{custom-call.53} parent=64 // pred_region
            %s348 = ssub.s32 256, 1
            loop: start=0, step=1, limit=1
            $region74: #{custom-call.53} parent=72 // loop_pre_header
              _
            $region75: #{custom-call.53} parent=72 // loop_header
              %s350 = sphi 0, %s354
              %p351 = scmp.ge.s32.totalorder %s350, 1
              %s355 = sphi %s330, %s330
              %s356 = sphi %s340, %s340
            $region76: #{custom-call.53} parent=72 // loop_header_branch
              %353 = sbr.rel (%p351) target = $region80
            $region77: #{custom-call.53} parent=72 // loop_body
              %v357 = vld [vmem:[%s355] sm:%s348]
              %358 = vst [vmem:[%s356] sm:%s348] %v357
            $region78: #{custom-call.53} parent=72 // loop_footer
              %s354 = sadd.s32 1, %s350
            $region79: #{custom-call.53} parent=72 // loop_footer_branch
              %349 = sbr.rel target = $region75
            $region80: #{custom-call.53} parent=72 // loop_exit
              _
          $region73: #{custom-call.53} parent=64 // pred_fallthru
            _
        $region65: #{custom-call.53} parent=53 // pred_fallthru
          _
        %373 = vnop
        // Predicated region
        $region96: #{custom-call.53} parent=53 // pred_check
          %p374 = pneg %p68
        $region97: #{custom-call.53} parent=53 // pred_check_branch
          %376 = sbr.rel (%p374) target = $region99
        $region98: #{custom-call.53} parent=53 // pred_region
          %p377 = scmp.lt.s32.totalorder %s17, 0
          %s378 = ssub.s32 0, %s17
          %s379 = scalar_select %p377, %s378, %s17
          %s380 = sshrl.u32 %s379, 3
          %s381 = ssub.s32 0, %s380
          %s382 = scalar_select %p377, %s381, %s380
          %s383 = sadd.s32 %s382, %s16
          %s384 = smul.addr %s383, 8
          %s385 = scalar_lea.vmem %s2, %s384
          // Predicated region
          $region100: #{custom-call.53} parent=98 // pred_check
            _
          $region101: #{custom-call.53} parent=98 // pred_check_branch
            %387 = sbr.rel (0) target = $region103
          $region102: #{custom-call.53} parent=98 // pred_region
            // Predicated region
            $region104: #{custom-call.53} parent=102 // pred_check
              _
            $region105: #{custom-call.53} parent=102 // pred_check_branch
              %389 = sbr.rel (0) target = $region107
            $region106: #{custom-call.53} parent=102 // pred_region
              // Predicated region
              $region119: #{custom-call.53} parent=106 // pred_check
                _
              $region120: #{custom-call.53} parent=106 // pred_check_branch
                %405 = sbr.rel (0) target = $region122
              $region121: #{custom-call.53} parent=106 // pred_region
                loop: start=0, step=1, limit=1
                $region123: #{custom-call.53} parent=121 // loop_pre_header
                  _
                $region124: #{custom-call.53} parent=121 // loop_header
                  %s407 = sphi 0, %s411
                  %p408 = scmp.ge.s32.totalorder %s407, 1
                  %s412 = sphi %s334, %s334
                  %s413 = sphi %s385, %s385
                $region125: #{custom-call.53} parent=121 // loop_header_branch
                  %410 = sbr.rel (%p408) target = $region129
                $region126: #{custom-call.53} parent=121 // loop_body
                  %v414 = vld [vmem:[%s412] sm:$0xff]
                  %415 = vst [vmem:[%s413] sm:$0xff] %v414
                $region127: #{custom-call.53} parent=121 // loop_footer
                  %s411 = sadd.s32 1, %s407
                $region128: #{custom-call.53} parent=121 // loop_footer_branch
                  %406 = sbr.rel target = $region124
                $region129: #{custom-call.53} parent=121 // loop_exit
                  _
              $region122: #{custom-call.53} parent=106 // pred_fallthru
                _
              // Predicated region
              $region130: #{custom-call.53} parent=106 // pred_check
                _
              $region131: #{custom-call.53} parent=106 // pred_check_branch
                %417 = sbr.rel target = $region133
              $region132: #{custom-call.53} parent=106 // pred_region
                _
              $region133: #{custom-call.53} parent=106 // pred_fallthru
                _
            $region107: #{custom-call.53} parent=102 // pred_fallthru
              _
            // Predicated region
            $region108: #{custom-call.53} parent=102 // pred_check
              _
            $region109: #{custom-call.53} parent=102 // pred_check_branch
              %391 = sbr.rel target = $region111
            $region110: #{custom-call.53} parent=102 // pred_region
              %s393 = ssub.s32 256, 1
              loop: start=0, step=1, limit=1
              $region112: #{custom-call.53} parent=110 // loop_pre_header
                _
              $region113: #{custom-call.53} parent=110 // loop_header
                %s395 = sphi 0, %s399
                %p396 = scmp.ge.s32.totalorder %s395, 1
                %s400 = sphi %s334, %s334
                %s401 = sphi %s385, %s385
              $region114: #{custom-call.53} parent=110 // loop_header_branch
                %398 = sbr.rel (%p396) target = $region118
              $region115: #{custom-call.53} parent=110 // loop_body
                %v402 = vld [vmem:[%s400] sm:%s393]
                %403 = vst [vmem:[%s401] sm:%s393] %v402
              $region116: #{custom-call.53} parent=110 // loop_footer
                %s399 = sadd.s32 1, %s395
              $region117: #{custom-call.53} parent=110 // loop_footer_branch
                %394 = sbr.rel target = $region113
              $region118: #{custom-call.53} parent=110 // loop_exit
                _
            $region111: #{custom-call.53} parent=102 // pred_fallthru
              _
          $region103: #{custom-call.53} parent=98 // pred_fallthru
            _
          %418 = vnop
        $region99: #{custom-call.53} parent=53 // pred_fallthru
          _
      $region54: #{custom-call.53} parent=5 // pred_fallthru
        _
      %p419 = scmp.le.s32.totalorder 2, %s5
      // Predicated region
      $region134: #{custom-call.53} parent=5 // pred_check
        %p420 = pneg %p419
      $region135: #{custom-call.53} parent=5 // pred_check_branch
        %422 = sbr.rel (%p420) target = $region137
      $region136: #{custom-call.53} parent=5 // pred_region
        %s423 = ssub.s32 %s5, 2
        %s424 = sand.u32 %s11, 1
        %s425 = sand.u32 %s11, 1
        %s426 = smul.addr %s425, 8
        %s427 = scalar_lea.vmem [#allocation1], %s426
        // Predicated region
        $region138: #{custom-call.53} parent=136 // pred_check
          %p428 = pneg %p74
        $region139: #{custom-call.53} parent=136 // pred_check_branch
          %430 = sbr.rel (%p428) target = $region141
        $region140: #{custom-call.53} parent=136 // pred_region
          %s431 = sand.u32 %s59, 1
          %s432 = sand.u32 %s59, 1
          %s433 = smul.addr %s432, 8
          %s434 = scalar_lea.vmem [#allocation2], %s433
        $region141: #{custom-call.53} parent=136 // pred_fallthru
          _
      $region137: #{custom-call.53} parent=5 // pred_fallthru
        _
    $region6: #{custom-call.53} parent=1 // loop_footer
      %s9 = sadd.s32 1, %s5
    $region7: #{custom-call.53} parent=1 // loop_footer_branch
      %4 = sbr.rel target = $region3
    $region8: #{custom-call.53} parent=1 // loop_exit
      _

// kernel: custom-call.54
$region0: #{custom-call.54}
  %s0 = inlined_call_operand.vmem [shape: f32[2,8,4,4], index: 0, kind: input, shape index: {}]
  %s1 = inlined_call_operand.vmem [shape: f32[2,8,4,4], index: 1, kind: output, shape index: {}]
  $region1: #{custom-call.54} parent=0
    #allocation0 [shape = 'u8[4096]{0}', space=vmem, size = 0x1000, scoped, tag = 'operand span for operand 0']
    #allocation1 [shape = 'u8[4096]{0}', space=vmem, size = 0x1000, scoped, tag = 'packed  for operand 0']
    #allocation2 [shape = 'u8[4096]{0}', space=vmem, size = 0x1000, scoped, tag = 'operand span for operand 1']
    #allocation3 [shape = 'u8[4096]{0}', space=vmem, size = 0x1000, scoped, tag = 'packed  for operand 1']
    loop: start=0, step=1, limit=18
    $region2: #{custom-call.54} parent=1 // loop_pre_header
      _
    $region3: #{custom-call.54} parent=1 // loop_header
      %s3 = sphi 0, %s7
      %p4 = scmp.ge.s32.totalorder %s3, 18
      %s10 = sphi 0, %s22
      %s11 = sphi 0, %s18
      %s12 = sphi 0, %s10
      %s13 = sphi 0, %s11
      %s14 = sphi 0, %s12
      %s15 = sphi 0, %s13
    $region4: #{custom-call.54} parent=1 // loop_header_branch
      %6 = sbr.rel (%p4) target = $region8
    $region5: #{custom-call.54} parent=1 // loop_body
      %s8 = ssub.s32 %s3, 1
      %s9 = ssub.s32 %s3, 2
      %s16 = sadd.s32 1, %s11
      %p17 = scmp.ge.s32.totalorder %s16, 8
      %s18 = scalar_select %p17, 0, %s16
      %s19 = sadd.s32 1, %s10
      %s20 = scalar_select %p17, %s19, %s10
      %p21 = scmp.ge.s32.totalorder %s20, 2
      %s22 = scalar_select %p21, 0, %s20
      %p23 = scmp.le.s32.totalorder 1, %s3
      %p24 = scmp.lt.s32.totalorder %s3, 17
      %p25 = pnand %p23, %p24
      %p26 = pneg %p25
      // Predicated region
      $region9: #{custom-call.54} parent=5 // pred_check
        _
      $region10: #{custom-call.54} parent=5 // pred_check_branch
        %28 = sbr.rel (%p25) target = $region12
      $region11: #{custom-call.54} parent=5 // pred_region
        %s29 = ssub.s32 %s3, 1
      $region12: #{custom-call.54} parent=5 // pred_fallthru
        _
      %p30 = scmp.lt.s32.totalorder %s3, 16
      // Predicated region
      $region13: #{custom-call.54} parent=5 // pred_check
        %p31 = pneg %p30
      $region14: #{custom-call.54} parent=5 // pred_check_branch
        %33 = sbr.rel (%p31) target = $region16
      $region15: #{custom-call.54} parent=5 // pred_region
        %s34 = sand.u32 %s3, 1
        %s35 = sand.u32 %s3, 1
        %s36 = smul.addr %s35, 4
        %s37 = scalar_lea.vmem [#allocation1], %s36
        %s38 = smul.addr %s10, 8
        %s39 = sadd.s32 %s11, %s38
        %s40 = smul.addr %s39, 4
        %s41 = scalar_lea.vmem %s0, %s40
        // Predicated region
        $region17: #{custom-call.54} parent=15 // pred_check
          _
        $region18: #{custom-call.54} parent=15 // pred_check_branch
          %43 = sbr.rel (0) target = $region20
        $region19: #{custom-call.54} parent=15 // pred_region
          // Predicated region
          $region21: #{custom-call.54} parent=19 // pred_check
            _
          $region22: #{custom-call.54} parent=19 // pred_check_branch
            %45 = sbr.rel target = $region24
          $region23: #{custom-call.54} parent=19 // pred_region
            // Predicated region
            $region36: #{custom-call.54} parent=23 // pred_check
              _
            $region37: #{custom-call.54} parent=23 // pred_check_branch
              %61 = sbr.rel (0) target = $region39
            $region38: #{custom-call.54} parent=23 // pred_region
              %s63 = ssub.s32 16, 1
              loop: start=0, step=1, limit=1
              $region40: #{custom-call.54} parent=38 // loop_pre_header
                _
              $region41: #{custom-call.54} parent=38 // loop_header
                %s65 = sphi 0, %s69
                %p66 = scmp.ge.s32.totalorder %s65, 1
                %s70 = sphi %s41, %s41
                %s71 = sphi %s37, %s37
              $region42: #{custom-call.54} parent=38 // loop_header_branch
                %68 = sbr.rel (%p66) target = $region46
              $region43: #{custom-call.54} parent=38 // loop_body
                %v72 = vld [vmem:[%s70] sm:%s63]
                %73 = vst [vmem:[%s71] sm:%s63] %v72
              $region44: #{custom-call.54} parent=38 // loop_footer
                %s69 = sadd.s32 1, %s65
              $region45: #{custom-call.54} parent=38 // loop_footer_branch
                %64 = sbr.rel target = $region41
              $region46: #{custom-call.54} parent=38 // loop_exit
                _
            $region39: #{custom-call.54} parent=23 // pred_fallthru
              _
          $region24: #{custom-call.54} parent=19 // pred_fallthru
            _
          // Predicated region
          $region25: #{custom-call.54} parent=19 // pred_check
            _
          $region26: #{custom-call.54} parent=19 // pred_check_branch
            %47 = sbr.rel (0) target = $region28
          $region27: #{custom-call.54} parent=19 // pred_region
            %s49 = ssub.s32 16, 1
            loop: start=0, step=1, limit=1
            $region29: #{custom-call.54} parent=27 // loop_pre_header
              _
            $region30: #{custom-call.54} parent=27 // loop_header
              %s51 = sphi 0, %s55
              %p52 = scmp.ge.s32.totalorder %s51, 1
              %s56 = sphi %s41, %s41
              %s57 = sphi %s37, %s37
            $region31: #{custom-call.54} parent=27 // loop_header_branch
              %54 = sbr.rel (%p52) target = $region35
            $region32: #{custom-call.54} parent=27 // loop_body
              %v58 = vld [vmem:[%s56] sm:%s49]
              %59 = vst [vmem:[%s57] sm:%s49] %v58
            $region33: #{custom-call.54} parent=27 // loop_footer
              %s55 = sadd.s32 1, %s51
            $region34: #{custom-call.54} parent=27 // loop_footer_branch
              %50 = sbr.rel target = $region30
            $region35: #{custom-call.54} parent=27 // loop_exit
              _
          $region28: #{custom-call.54} parent=19 // pred_fallthru
            _
        $region20: #{custom-call.54} parent=15 // pred_fallthru
          _
        %74 = vnop
      $region16: #{custom-call.54} parent=5 // pred_fallthru
        _
      %p75 = scmp.le.s32.totalorder 1, %s3
      %p76 = scmp.lt.s32.totalorder %s3, 17
      %p77 = pnand %p75, %p76
      %p78 = pneg %p77
      // Predicated region
      $region47: #{custom-call.54} parent=5 // pred_check
        _
      $region48: #{custom-call.54} parent=5 // pred_check_branch
        %80 = sbr.rel (%p77) target = $region50
      $region49: #{custom-call.54} parent=5 // pred_region
        %s81 = ssub.s32 %s3, 1
        %s82 = sand.u32 %s8, 1
        %s83 = sand.u32 %s8, 1
        %s84 = smul.addr %s83, 4
        %s85 = scalar_lea.vmem [#allocation1], %s84
        %s86 = sand.u32 %s8, 1
        %s87 = sand.u32 %s8, 1
        %s88 = smul.addr %s87, 4
        %s89 = scalar_lea.vmem [#allocation1], %s88
        %s90 = sand.u32 %s8, 1
        %s91 = sand.u32 %s8, 1
        %s92 = smul.addr %s91, 4
        %s93 = scalar_lea.vmem [#allocation3], %s92
        %s95 = sshll.u32 1, 4
        %s96 = ssub.s32 %s95, 1
        %v97 = vld [vmem:[%s89] sm:%s96]
        %98 = vst [vmem:[#allocation0] sm:%s96] %v97
        %v99 = vlaneseq
        %v100 = vand.u32 %v99, 127
        %v101 = vlaneseq
        %v102 = vshrl.u32 %v101, 7
        %vm104 = vcmp.eq.s32.totalorder %v100, %v102
        %v105 = vld [vmem:[#allocation0] sm:$0xff]
        %v106 = vlaneseq
        %v107 = vand.u32 %v106, 127
        %vm108 = vcmp.eq.s32.totalorder %v107, 0
        %v109 = vsel %vm108, %v105, 1.0
        %v110 = vsel %vm104, %v109, 0.0
        %s111 = scalar_lea.vmem [#allocation0], 1
        %v112 = vld [vmem:[%s111] ss:$0 sm:$0xff]
        %vm113 = vcmask 31744
        %v114 = vsel %vm113, %v112, 0.0
        %v115 = vlaneseq
        %v116 = vand.u32 %v115, 127
        %vm117 = vcmp.eq.s32.totalorder %v116, 1
        %v118 = vmul.f32 %v114, %v110
        %119 = vadd.xlane.f32.xlu0 %v118
        %v120 = vpop.xlane.xlu0 %119
        %v121 = vsel %vm117, %v120, %v110
        %s122 = scalar_lea.vmem [#allocation0], 2
        %v123 = vld [vmem:[%s122] ss:$0 sm:$0xff]
        %vm124 = vcmask 31744
        %v125 = vsel %vm124, %v123, 0.0
        %v126 = vlaneseq
        %v127 = vand.u32 %v126, 127
        %vm128 = vcmp.eq.s32.totalorder %v127, 2
        %v129 = vmul.f32 %v125, %v121
        %130 = vadd.xlane.f32.xlu0 %v129
        %v131 = vpop.xlane.xlu0 %130
        %v132 = vsel %vm128, %v131, %v121
        %s133 = scalar_lea.vmem [#allocation0], 3
        %v134 = vld [vmem:[%s133] ss:$0 sm:$0xff]
        %vm135 = vcmask 31744
        %v136 = vsel %vm135, %v134, 0.0
        %v137 = vlaneseq
        %v138 = vand.u32 %v137, 127
        %vm139 = vcmp.eq.s32.totalorder %v138, 3
        %v140 = vmul.f32 %v136, %v132
        %141 = vadd.xlane.f32.xlu0 %v140
        %v142 = vpop.xlane.xlu0 %141
        %v143 = vsel %vm139, %v142, %v132
        %144 = vst [vmem:[#allocation2] sm:$0xff] %v143
        %s146 = sshll.u32 1, 4
        %s147 = ssub.s32 %s146, 1
        %v149 = vld [vmem:[#allocation2] sm:%s147]
        %s150 = sshll.u32 1, 4
        %s151 = ssub.s32 %s150, 1
        %152 = vst [vmem:[%s93] sm:%s151] %v149
        %s153 = sand.u32 %s8, 1
        %s154 = sand.u32 %s8, 1
        %s155 = smul.addr %s154, 4
        %s156 = scalar_lea.vmem [#allocation3], %s155
        %s157 = smul.addr %s12, 8
        %s158 = sadd.s32 %s13, %s157
        %s159 = smul.addr %s158, 4
        %s160 = scalar_lea.vmem %s1, %s159
        // Predicated region
        $region51: #{custom-call.54} parent=49 // pred_check
          _
        $region52: #{custom-call.54} parent=49 // pred_check_branch
          %162 = sbr.rel (0) target = $region54
        $region53: #{custom-call.54} parent=49 // pred_region
          // Predicated region
          $region55: #{custom-call.54} parent=53 // pred_check
            _
          $region56: #{custom-call.54} parent=53 // pred_check_branch
            %164 = sbr.rel target = $region58
          $region57: #{custom-call.54} parent=53 // pred_region
            // Predicated region
            $region70: #{custom-call.54} parent=57 // pred_check
              _
            $region71: #{custom-call.54} parent=57 // pred_check_branch
              %180 = sbr.rel (0) target = $region73
            $region72: #{custom-call.54} parent=57 // pred_region
              %s182 = ssub.s32 16, 1
              loop: start=0, step=1, limit=1
              $region74: #{custom-call.54} parent=72 // loop_pre_header
                _
              $region75: #{custom-call.54} parent=72 // loop_header
                %s184 = sphi 0, %s188
                %p185 = scmp.ge.s32.totalorder %s184, 1
                %s189 = sphi %s156, %s156
                %s190 = sphi %s160, %s160
              $region76: #{custom-call.54} parent=72 // loop_header_branch
                %187 = sbr.rel (%p185) target = $region80
              $region77: #{custom-call.54} parent=72 // loop_body
                %v191 = vld [vmem:[%s189] sm:%s182]
                %192 = vst [vmem:[%s190] sm:%s182] %v191
              $region78: #{custom-call.54} parent=72 // loop_footer
                %s188 = sadd.s32 1, %s184
              $region79: #{custom-call.54} parent=72 // loop_footer_branch
                %183 = sbr.rel target = $region75
              $region80: #{custom-call.54} parent=72 // loop_exit
                _
            $region73: #{custom-call.54} parent=57 // pred_fallthru
              _
          $region58: #{custom-call.54} parent=53 // pred_fallthru
            _
          // Predicated region
          $region59: #{custom-call.54} parent=53 // pred_check
            _
          $region60: #{custom-call.54} parent=53 // pred_check_branch
            %166 = sbr.rel (0) target = $region62
          $region61: #{custom-call.54} parent=53 // pred_region
            %s168 = ssub.s32 16, 1
            loop: start=0, step=1, limit=1
            $region63: #{custom-call.54} parent=61 // loop_pre_header
              _
            $region64: #{custom-call.54} parent=61 // loop_header
              %s170 = sphi 0, %s174
              %p171 = scmp.ge.s32.totalorder %s170, 1
              %s175 = sphi %s156, %s156
              %s176 = sphi %s160, %s160
            $region65: #{custom-call.54} parent=61 // loop_header_branch
              %173 = sbr.rel (%p171) target = $region69
            $region66: #{custom-call.54} parent=61 // loop_body
              %v177 = vld [vmem:[%s175] sm:%s168]
              %178 = vst [vmem:[%s176] sm:%s168] %v177
            $region67: #{custom-call.54} parent=61 // loop_footer
              %s174 = sadd.s32 1, %s170
            $region68: #{custom-call.54} parent=61 // loop_footer_branch
              %169 = sbr.rel target = $region64
            $region69: #{custom-call.54} parent=61 // loop_exit
              _
          $region62: #{custom-call.54} parent=53 // pred_fallthru
            _
        $region54: #{custom-call.54} parent=49 // pred_fallthru
          _
        %193 = vnop
      $region50: #{custom-call.54} parent=5 // pred_fallthru
        _
      %p194 = scmp.le.s32.totalorder 2, %s3
      // Predicated region
      $region81: #{custom-call.54} parent=5 // pred_check
        %p195 = pneg %p194
      $region82: #{custom-call.54} parent=5 // pred_check_branch
        %197 = sbr.rel (%p195) target = $region84
      $region83: #{custom-call.54} parent=5 // pred_region
        %s198 = ssub.s32 %s3, 2
        %s199 = sand.u32 %s9, 1
        %s200 = sand.u32 %s9, 1
        %s201 = smul.addr %s200, 4
        %s202 = scalar_lea.vmem [#allocation3], %s201
      $region84: #{custom-call.54} parent=5 // pred_fallthru
        _
    $region6: #{custom-call.54} parent=1 // loop_footer
      %s7 = sadd.s32 1, %s3
    $region7: #{custom-call.54} parent=1 // loop_footer_branch
      %2 = sbr.rel target = $region3
    $region8: #{custom-call.54} parent=1 // loop_exit
      _

// kernel: custom-call.46
$region0: #{custom-call.46}
  %s0 = inlined_call_operand.hbm [shape: pred[2,8], index: 0, kind: output, shape index: {}]

// kernel: alg_resnet_forward.1
$region0: #{alg_resnet_forward.1}
  #allocation0 [shape = 'u32[]', space=smem, size = 0x4, offset = 0x4, fixed_abs, tag = 'smem constant byte address 0x4 - core index']
  #allocation1 [shape = 'u32[144,128]{1,0:T(1,128)}', space=vmem, size = 0x12000, scoped, tag = 'internal scratch']
  %s0 = inlined_call_operand.vmem [shape: bf16[2,2,64,128], index: 0, kind: input, shape index: {}]
  %s1 = inlined_call_operand.vmem [shape: bf16[64,64], index: 1, kind: input, shape index: {}]
  %s2 = inlined_call_operand.vmem [shape: bf16[128,128], index: 2, kind: input, shape index: {}]
  %s3 = inlined_call_operand.vmem [shape: f32[8], index: 3, kind: input, shape index: {}]
  %s4 = inlined_call_operand.vmem [shape: bf16[1024,16], index: 4, kind: input, shape index: {}]
  %s5 = inlined_call_operand.vmem [shape: bf16[2,64], index: 5, kind: input, shape index: {}]
  %s6 = inlined_call_operand.vmem [shape: f32[2,2,1,16], index: 6, kind: output, shape index: {}]
  %s7 = sld [smem:[#allocation0]]
  $region61: #{alg_resnet_forward.1} parent=0
    _
  %s9 = ssub.s32 1, %s7
  %s10 = scalar_select 0, %s9, %s7
  $region1: #{alg_resnet_forward.1} parent=0
    #allocation2 [shape = 'u8[512]{0}', space=smem, size = 0x200, scoped, tag = 'input window, operand 3, single buffered']
    #allocation3 [shape = 's32[2]{0}', space=sflag, size = 0x8, scoped, tag = 'scoped memory for alg_resnet_forward.1']
    %11 = vsyncpa [#allocation3], 0
    loop: start=0, step=1, limit=6
    $region2: #{alg_resnet_forward.1} parent=1 // loop_pre_header
      _
    $region3: #{alg_resnet_forward.1} parent=1 // loop_header
      %s13 = sphi 0, %s17
      %p14 = scmp.ge.s32.totalorder %s13, 6
      %s20 = sphi 0, %s32
      %s21 = sphi 0, %s28
      %s22 = sphi 0, %s20
      %s23 = sphi 0, %s21
      %s24 = sphi 0, %s22
      %s25 = sphi 0, %s23
      %s37 = sphi 0, %s39
      %s40 = sphi 0, %s37
      %s41 = sphi 0, %s40
      %s57 = sphi 0, %s41
      %s61 = sphi 0, %s61
      %s63 = sphi 0, %s61
      %s64 = sphi 0, %s63
      %s78 = sphi 0, %s64
      %s82 = sphi 0, %s82
      %s84 = sphi 0, %s82
      %s85 = sphi 0, %s84
      %s99 = sphi 0, %s85
      %s103 = sphi 0, %s103
      %s105 = sphi 0, %s103
      %s106 = sphi 0, %s105
      %s120 = sphi 0, %s106
      %s124 = sphi 0, %s124
      %s126 = sphi 0, %s124
      %s127 = sphi 0, %s126
      %s141 = sphi 0, %s127
      %s145 = sphi 0, %s145
      %s147 = sphi 0, %s145
      %s148 = sphi 0, %s147
      %s162 = sphi 0, %s148
      %s170 = sphi 0, %s172
      %s173 = sphi 0, %s170
      %s174 = sphi 0, %s173
      %s190 = sphi 0, %s174
    $region4: #{alg_resnet_forward.1} parent=1 // loop_header_branch
      %16 = sbr.rel (%p14) target = $region8
    $region5: #{alg_resnet_forward.1} parent=1 // loop_body
      %s18 = ssub.s32 %s13, 1
      %s19 = ssub.s32 %s13, 2
      %s26 = sadd.s32 1, %s21
      %p27 = scmp.ge.s32.totalorder %s26, 2
      %s28 = scalar_select %p27, 0, %s26
      %s29 = sadd.s32 1, %s20
      %s30 = scalar_select %p27, %s29, %s20
      %p31 = scmp.ge.s32.totalorder %s30, 2
      %s32 = scalar_select %p31, 0, %s30
      %s33 = ssub.s32 %s20, %s32
      %s34 = ssub.s32 %s21, %s28
      %s35 = sor.u32 %s33, %s34
      %p36 = scmp.eq.s32.totalorder %s35, 0
      %s38 = sadd.s32 %s37, 1
      %s39 = scalar_select %p36, %s37, %s38
      %p42 = pneg %p36
      %p43 = scmp.eq.s32.totalorder %s13, 3
      %p44 = por %p42, %p43
      %p45 = scmp.ne.s32.totalorder %s37, %s40
      %p46 = scmp.eq.s32.totalorder %s13, 0
      %p47 = por %p45, %p46
      %p48 = scmp.ne.s32.totalorder %s37, %s40
      %p49 = scmp.eq.s32.totalorder %s18, 3
      %p50 = por %p48, %p49
      %p51 = scmp.ne.s32.totalorder %s40, %s41
      %p52 = scmp.eq.s32.totalorder %s18, 0
      %p53 = por %p51, %p52
      %p54 = scmp.ne.s32.totalorder %s40, %s41
      %p55 = scmp.eq.s32.totalorder %s19, 3
      %p56 = por %p54, %p55
      %p58 = scmp.ne.s32.totalorder %s41, %s57
      %p59 = scmp.eq.s32.totalorder %s19, 0
      %p60 = por %p58, %p59
      %s62 = sadd.s32 %s61, 1
      %p65 = scmp.eq.s32.totalorder %s13, 3
      %p66 = scmp.ne.s32.totalorder %s61, %s63
      %p67 = scmp.eq.s32.totalorder %s13, 0
      %p68 = por %p66, %p67
      %p69 = scmp.ne.s32.totalorder %s61, %s63
      %p70 = scmp.eq.s32.totalorder %s18, 3
      %p71 = por %p69, %p70
      %p72 = scmp.ne.s32.totalorder %s63, %s64
      %p73 = scmp.eq.s32.totalorder %s18, 0
      %p74 = por %p72, %p73
      %p75 = scmp.ne.s32.totalorder %s63, %s64
      %p76 = scmp.eq.s32.totalorder %s19, 3
      %p77 = por %p75, %p76
      %p79 = scmp.ne.s32.totalorder %s64, %s78
      %p80 = scmp.eq.s32.totalorder %s19, 0
      %p81 = por %p79, %p80
      %s83 = sadd.s32 %s82, 1
      %p86 = scmp.eq.s32.totalorder %s13, 3
      %p87 = scmp.ne.s32.totalorder %s82, %s84
      %p88 = scmp.eq.s32.totalorder %s13, 0
      %p89 = por %p87, %p88
      %p90 = scmp.ne.s32.totalorder %s82, %s84
      %p91 = scmp.eq.s32.totalorder %s18, 3
      %p92 = por %p90, %p91
      %p93 = scmp.ne.s32.totalorder %s84, %s85
      %p94 = scmp.eq.s32.totalorder %s18, 0
      %p95 = por %p93, %p94
      %p96 = scmp.ne.s32.totalorder %s84, %s85
      %p97 = scmp.eq.s32.totalorder %s19, 3
      %p98 = por %p96, %p97
      %p100 = scmp.ne.s32.totalorder %s85, %s99
      %p101 = scmp.eq.s32.totalorder %s19, 0
      %p102 = por %p100, %p101
      %s104 = sadd.s32 %s103, 1
      %p107 = scmp.eq.s32.totalorder %s13, 3
      %p108 = scmp.ne.s32.totalorder %s103, %s105
      %p109 = scmp.eq.s32.totalorder %s13, 0
      %p110 = por %p108, %p109
      %p111 = scmp.ne.s32.totalorder %s103, %s105
      %p112 = scmp.eq.s32.totalorder %s18, 3
      %p113 = por %p111, %p112
      %p114 = scmp.ne.s32.totalorder %s105, %s106
      %p115 = scmp.eq.s32.totalorder %s18, 0
      %p116 = por %p114, %p115
      %p117 = scmp.ne.s32.totalorder %s105, %s106
      %p118 = scmp.eq.s32.totalorder %s19, 3
      %p119 = por %p117, %p118
      %p121 = scmp.ne.s32.totalorder %s106, %s120
      %p122 = scmp.eq.s32.totalorder %s19, 0
      %p123 = por %p121, %p122
      %s125 = sadd.s32 %s124, 1
      %p128 = scmp.eq.s32.totalorder %s13, 3
      %p129 = scmp.ne.s32.totalorder %s124, %s126
      %p130 = scmp.eq.s32.totalorder %s13, 0
      %p131 = por %p129, %p130
      %p132 = scmp.ne.s32.totalorder %s124, %s126
      %p133 = scmp.eq.s32.totalorder %s18, 3
      %p134 = por %p132, %p133
      %p135 = scmp.ne.s32.totalorder %s126, %s127
      %p136 = scmp.eq.s32.totalorder %s18, 0
      %p137 = por %p135, %p136
      %p138 = scmp.ne.s32.totalorder %s126, %s127
      %p139 = scmp.eq.s32.totalorder %s19, 3
      %p140 = por %p138, %p139
      %p142 = scmp.ne.s32.totalorder %s127, %s141
      %p143 = scmp.eq.s32.totalorder %s19, 0
      %p144 = por %p142, %p143
      %s146 = sadd.s32 %s145, 1
      %p149 = scmp.eq.s32.totalorder %s13, 3
      %p150 = scmp.ne.s32.totalorder %s145, %s147
      %p151 = scmp.eq.s32.totalorder %s13, 0
      %p152 = por %p150, %p151
      %p153 = scmp.ne.s32.totalorder %s145, %s147
      %p154 = scmp.eq.s32.totalorder %s18, 3
      %p155 = por %p153, %p154
      %p156 = scmp.ne.s32.totalorder %s147, %s148
      %p157 = scmp.eq.s32.totalorder %s18, 0
      %p158 = por %p156, %p157
      %p159 = scmp.ne.s32.totalorder %s147, %s148
      %p160 = scmp.eq.s32.totalorder %s19, 3
      %p161 = por %p159, %p160
      %p163 = scmp.ne.s32.totalorder %s148, %s162
      %p164 = scmp.eq.s32.totalorder %s19, 0
      %p165 = por %p163, %p164
      %s166 = ssub.s32 %s20, %s32
      %s167 = ssub.s32 %s21, %s28
      %s168 = sor.u32 %s166, %s167
      %p169 = scmp.eq.s32.totalorder %s168, 0
      %s171 = sadd.s32 %s170, 1
      %s172 = scalar_select %p169, %s170, %s171
      %p175 = pneg %p169
      %p176 = scmp.eq.s32.totalorder %s13, 3
      %p177 = por %p175, %p176
      %p178 = scmp.ne.s32.totalorder %s170, %s173
      %p179 = scmp.eq.s32.totalorder %s13, 0
      %p180 = por %p178, %p179
      %p181 = scmp.ne.s32.totalorder %s170, %s173
      %p182 = scmp.eq.s32.totalorder %s18, 3
      %p183 = por %p181, %p182
      %p184 = scmp.ne.s32.totalorder %s173, %s174
      %p185 = scmp.eq.s32.totalorder %s18, 0
      %p186 = por %p184, %p185
      %p187 = scmp.ne.s32.totalorder %s173, %s174
      %p188 = scmp.eq.s32.totalorder %s19, 3
      %p189 = por %p187, %p188
      %p191 = scmp.ne.s32.totalorder %s174, %s190
      %p192 = scmp.eq.s32.totalorder %s19, 0
      %p193 = por %p191, %p192
      %p194 = scmp.le.s32.totalorder 1, %s13
      %p195 = scmp.lt.s32.totalorder %s13, 5
      %p196 = pnand %p194, %p195
      %p197 = pneg %p196
      // Predicated region
      $region9: #{alg_resnet_forward.1} parent=5 // pred_check
        _
      $region10: #{alg_resnet_forward.1} parent=5 // pred_check_branch
        %199 = sbr.rel (%p196) target = $region12
      $region11: #{alg_resnet_forward.1} parent=5 // pred_region
        %s200 = ssub.s32 %s13, 1
        // Predicated region
        $region13: #{alg_resnet_forward.1} parent=11 // pred_check
          %p201 = pneg %p74
        $region14: #{alg_resnet_forward.1} parent=11 // pred_check_branch
          %203 = sbr.rel (%p201) target = $region16
        $region15: #{alg_resnet_forward.1} parent=11 // pred_region
          _
        $region16: #{alg_resnet_forward.1} parent=11 // pred_fallthru
          _
        // Predicated region
        $region17: #{alg_resnet_forward.1} parent=11 // pred_check
          %p204 = pneg %p95
        $region18: #{alg_resnet_forward.1} parent=11 // pred_check_branch
          %206 = sbr.rel (%p204) target = $region20
        $region19: #{alg_resnet_forward.1} parent=11 // pred_region
          _
        $region20: #{alg_resnet_forward.1} parent=11 // pred_fallthru
          _
        // Predicated region
        $region21: #{alg_resnet_forward.1} parent=11 // pred_check
          %p207 = pneg %p116
        $region22: #{alg_resnet_forward.1} parent=11 // pred_check_branch
          %209 = sbr.rel (%p207) target = $region24
        $region23: #{alg_resnet_forward.1} parent=11 // pred_region
          %s211 = ssub.s32 16, 16
          %212 = vsyncadd [#allocation3], %s211
          %s214 = sshll.u32 %s3, 4
          %s215 = int_to_ptr.vmem [resolvable:$true] %s214
          %217 = dma.vmem_to_smem %s215, 16, [#allocation2], [#allocation3]
        $region24: #{alg_resnet_forward.1} parent=11 // pred_fallthru
          _
        // Predicated region
        $region25: #{alg_resnet_forward.1} parent=11 // pred_check
          %p218 = pneg %p137
        $region26: #{alg_resnet_forward.1} parent=11 // pred_check_branch
          %220 = sbr.rel (%p218) target = $region28
        $region27: #{alg_resnet_forward.1} parent=11 // pred_region
          _
        $region28: #{alg_resnet_forward.1} parent=11 // pred_fallthru
          _
        // Predicated region
        $region29: #{alg_resnet_forward.1} parent=11 // pred_check
          %p221 = pneg %p158
        $region30: #{alg_resnet_forward.1} parent=11 // pred_check_branch
          %223 = sbr.rel (%p221) target = $region32
        $region31: #{alg_resnet_forward.1} parent=11 // pred_region
          _
        $region32: #{alg_resnet_forward.1} parent=11 // pred_fallthru
          _
      $region12: #{alg_resnet_forward.1} parent=5 // pred_fallthru
        _
      %p224 = scmp.lt.s32.totalorder %s13, 4
      // Predicated region
      $region33: #{alg_resnet_forward.1} parent=5 // pred_check
        %p225 = pneg %p224
      $region34: #{alg_resnet_forward.1} parent=5 // pred_check_branch
        %227 = sbr.rel (%p225) target = $region36
      $region35: #{alg_resnet_forward.1} parent=5 // pred_region
        // Predicated region
        $region37: #{alg_resnet_forward.1} parent=35 // pred_check
          %p228 = pneg %p47
        $region38: #{alg_resnet_forward.1} parent=35 // pred_check_branch
          %230 = sbr.rel (%p228) target = $region40
        $region39: #{alg_resnet_forward.1} parent=35 // pred_region
          %p231 = scmp.lt.s32.totalorder %s20, 1
          %s232 = scalar_select %p231, %s20, 1
          %p233 = scmp.lt.s32.totalorder %s21, 1
          %s234 = scalar_select %p233, %s21, 1
          %s235 = smul.addr %s234, 8
          %s236 = smul.addr %s232, 16
          %s237 = sadd.s32 %s235, %s236
          %s238 = smul.addr %s237, 4
          %s239 = scalar_lea.vmem %s0, %s238
        $region40: #{alg_resnet_forward.1} parent=35 // pred_fallthru
          _
      $region36: #{alg_resnet_forward.1} parent=5 // pred_fallthru
        _
      %p240 = scmp.le.s32.totalorder 1, %s13
      %p241 = scmp.lt.s32.totalorder %s13, 5
      %p242 = pnand %p240, %p241
      %p243 = pneg %p242
      // Predicated region
      $region41: #{alg_resnet_forward.1} parent=5 // pred_check
        _
      $region42: #{alg_resnet_forward.1} parent=5 // pred_check_branch
        %245 = sbr.rel (%p242) target = $region44
      $region43: #{alg_resnet_forward.1} parent=5 // pred_region
        %s246 = ssub.s32 %s13, 1
        // Predicated region
        $region45: #{alg_resnet_forward.1} parent=43 // pred_check
          %p247 = pneg %p116
        $region46: #{alg_resnet_forward.1} parent=43 // pred_check_branch
          %249 = sbr.rel (%p247) target = $region48
        $region47: #{alg_resnet_forward.1} parent=43 // pred_region
          %250 = dma.done [#allocation3], 16
        $region48: #{alg_resnet_forward.1} parent=43 // pred_fallthru
          _
        %251 = sfence
        %p252 = scmp.lt.s32.totalorder %s22, 1
        %s253 = scalar_select %p252, %s22, 1
        %p254 = scmp.lt.s32.totalorder %s23, 1
        %s255 = scalar_select %p254, %s23, 1
        %s256 = smul.addr %s255, 8
        %s257 = smul.addr %s253, 16
        %s258 = sadd.s32 %s256, %s257
        %s259 = smul.addr %s258, 4
        %s260 = scalar_lea.vmem %s0, %s259
        %p261 = pneg %p53
        %p262 = pneg %p50
        %p263 = pneg %p74
        %p264 = pneg %p71
        %p265 = pneg %p95
        %p266 = pneg %p92
        %p267 = pneg %p116
        %p268 = pneg %p113
        %p269 = pneg %p137
        %p270 = pneg %p134
        %p271 = pneg %p158
        %p272 = pneg %p155
        %p273 = pneg %p186
        %p274 = pneg %p183
        %p275 = scmp.lt.s32.totalorder %s22, 1
        %s276 = scalar_select %p275, %s22, 1
        %p277 = scmp.lt.s32.totalorder %s23, 1
        %s278 = scalar_select %p277, %s23, 1
        %s279 = smul.addr %s276, 2
        %s280 = sadd.s32 %s278, %s279
        %s281 = scalar_lea.vmem %s6, %s280
        %p282 = scmp.lt.s32.totalorder %s22, 1
        %s283 = scalar_select %p282, %s22, 1
        %p284 = scmp.lt.s32.totalorder %s23, 1
        %s285 = scalar_select %p284, %s23, 1
        %s286 = smul.addr %s285, 8
        %s287 = smul.addr %s283, 16
        %s288 = sadd.s32 %s286, %s287
        %s289 = smul.addr %s288, 4
        %s290 = scalar_lea.vmem %s0, %s289
        %p291 = scmp.lt.s32.totalorder %s22, 1
        %s292 = scalar_select %p291, %s22, 1
        %p293 = scmp.lt.s32.totalorder %s23, 1
        %s294 = scalar_select %p293, %s23, 1
        %s295 = smul.addr %s292, 2
        %s296 = sadd.s32 %s294, %s295
        %s297 = scalar_lea.vmem %s6, %s296
        %v299 = vld [vmem:[%s290] sm:$0xf]
        %v300 = vld [vmem:[%s290 + $0x4] sm:$0xf]
        %v301 = vld [vmem:[%s290 + $0x8] sm:$0xf]
        %v302 = vld [vmem:[%s290 + $0xc] sm:$0xf]
        %v303 = vld [vmem:[%s290 + $0x10] sm:$0xf]
        %v304 = vld [vmem:[%s290 + $0x14] sm:$0xf]
        %v305 = vld [vmem:[%s290 + $0x18] sm:$0xf]
        %v306 = vld [vmem:[%s290 + $0x1c] sm:$0xf]
        %v307 = vld [vmem:[%s2] sm:$0xf]
        %v308 = vld [vmem:[%s2 + $0x4] sm:$0xf]
        %v309 = vld [vmem:[%s2 + $0x8] sm:$0xf]
        %v310 = vld [vmem:[%s2 + $0xc] sm:$0xf]
        %v311 = vld [vmem:[%s2 + $0x10] sm:$0xf]
        %v312 = vld [vmem:[%s2 + $0x14] sm:$0xf]
        %v313 = vld [vmem:[%s2 + $0x18] sm:$0xf]
        %v314 = vld [vmem:[%s2 + $0x1c] sm:$0xf]
        %v315 = vld [vmem:[%s2 + $0x20] sm:$0xf]
        %v316 = vld [vmem:[%s2 + $0x24] sm:$0xf]
        %v317 = vld [vmem:[%s2 + $0x28] sm:$0xf]
        %v318 = vld [vmem:[%s2 + $0x2c] sm:$0xf]
        %v319 = vld [vmem:[%s2 + $0x30] sm:$0xf]
        %v320 = vld [vmem:[%s2 + $0x34] sm:$0xf]
        %v321 = vld [vmem:[%s2 + $0x38] sm:$0xf]
        %v322 = vld [vmem:[%s2 + $0x3c] sm:$0xf]
        %v331 = vunpack.c.l.b16 %v299
        %v332 = vunpack.c.l.b16 %v300
        %v333 = vunpack.c.l.b16 %v301
        %v334 = vunpack.c.l.b16 %v302
        %v335 = vunpack.c.l.b16 %v303
        %v336 = vunpack.c.l.b16 %v304
        %v337 = vunpack.c.l.b16 %v305
        %v338 = vunpack.c.l.b16 %v306
        %v339 = vpack.c.b16 %v332, %v331
        %v340 = vpack.c.b16 %v334, %v333
        %v341 = vpack.c.b16 %v336, %v335
        %v342 = vpack.c.b16 %v338, %v337
        %v363 = vunpack.c.l.b16 %v307
        %v364 = vunpack.c.l.b16 %v308
        %v365 = vunpack.c.l.b16 %v309
        %v366 = vunpack.c.l.b16 %v310
        %v367 = vunpack.c.l.b16 %v311
        %v368 = vunpack.c.l.b16 %v312
        %v369 = vunpack.c.l.b16 %v313
        %v370 = vunpack.c.l.b16 %v314
        %v371 = vunpack.c.l.b16 %v315
        %v372 = vunpack.c.l.b16 %v316
        %v373 = vunpack.c.l.b16 %v317
        %v374 = vunpack.c.l.b16 %v318
        %v375 = vunpack.c.l.b16 %v319
        %v376 = vunpack.c.l.b16 %v320
        %v377 = vunpack.c.l.b16 %v321
        %v378 = vunpack.c.l.b16 %v322
        %v379 = vpack.c.b16 %v364, %v363
        %v380 = vpack.c.b16 %v366, %v365
        %v381 = vpack.c.b16 %v368, %v367
        %v382 = vpack.c.b16 %v370, %v369
        %v383 = vpack.c.b16 %v372, %v371
        %v384 = vpack.c.b16 %v374, %v373
        %v385 = vpack.c.b16 %v376, %v375
        %v386 = vpack.c.b16 %v378, %v377
        %395 = vmatprep.subr.bf16.mxu0 0
        %396 = vmatpush1.bf16.msra.mxu0 %v386
        %397 = vmatprep.subr.bf16.mxu0 0
        %398 = vmatpush1.bf16.msra.mxu0 %v385
        %399 = vmatprep.subr.bf16.mxu0 0
        %400 = vmatpush1.bf16.msra.mxu0 %v384
        %401 = vmatprep.subr.bf16.mxu0 0
        %402 = vmatpush1.bf16.msra.mxu0 %v383
        %403 = vmatprep.subr.bf16.mxu0 0
        %404 = vmatpush1.bf16.msra.mxu0 %v382
        %405 = vmatprep.subr.bf16.mxu0 0
        %406 = vmatpush1.bf16.msra.mxu0 %v381
        %407 = vmatprep.subr.bf16.mxu0 0
        %408 = vmatpush1.bf16.msra.mxu0 %v380
        %409 = vmatprep.subr.bf16.mxu0 0
        %410 = vmatpush1.bf16.msra.mxu0 %v379
        %411 = vmatprep.subr.bf16.mxu0 0
        %412 = vmatpush2.bf16.msra.mxu0 0
        %413 = vmatprep.subr.bf16.mxu0 0
        %414 = vmatpush2.bf16.msra.mxu0 0
        %415 = vmatprep.subr.bf16.mxu0 0
        %416 = vmatpush2.bf16.msra.mxu0 0
        %417 = vmatprep.subr.bf16.mxu0 0
        %418 = vmatpush2.bf16.msra.mxu0 0
        %419 = vmatprep.subr.bf16.mxu0 0
        %420 = vmatpush2.bf16.msra.mxu0 0
        %421 = vmatprep.subr.bf16.mxu0 0
        %422 = vmatpush2.bf16.msra.mxu0 0
        %423 = vmatprep.subr.bf16.mxu0 0
        %424 = vmatpush2.bf16.msra.mxu0 0
        %425 = vmatprep.subr.bf16.mxu0 0
        %426 = vmatpush2.bf16.msra.mxu0 0
        %427 = vmatprep.mubr.bf16.mxu0 0
        %428 = vmatmul.mubr.bf16.gmra.mxu0 %v339
        %v429 = vpop.f32.mrf.mxu0
        %v430 = vadd.f32 0.0, %v429
        %v431 = vpop.f32.mrf.mxu0
        %v432 = vpop.f32.mrf.mxu0
        %v433 = vadd.f32 0.0, %v432
        %v434 = vpop.f32.mrf.mxu0
        %435 = vmatprep.mubr.bf16.mxu0 0
        %436 = vmatmul.mubr.bf16.gmra.mxu0 %v340
        %v437 = vpop.f32.mrf.mxu0
        %v438 = vadd.f32 0.0, %v437
        %v439 = vpop.f32.mrf.mxu0
        %v440 = vpop.f32.mrf.mxu0
        %v441 = vadd.f32 0.0, %v440
        %v442 = vpop.f32.mrf.mxu0
        %443 = vmatprep.mubr.bf16.mxu0 0
        %444 = vmatmul.mubr.bf16.gmra.mxu0 %v341
        %v445 = vpop.f32.mrf.mxu0
        %v446 = vadd.f32 0.0, %v445
        %v447 = vpop.f32.mrf.mxu0
        %v448 = vpop.f32.mrf.mxu0
        %v449 = vadd.f32 0.0, %v448
        %v450 = vpop.f32.mrf.mxu0
        %451 = vmatprep.mubr.bf16.mxu0 0
        %452 = vmatmul.mubr.bf16.gmra.mxu0 %v342
        %v453 = vpop.f32.mrf.mxu0
        %v454 = vadd.f32 0.0, %v453
        %v455 = vpop.f32.mrf.mxu0
        %v456 = vpop.f32.mrf.mxu0
        %v457 = vadd.f32 0.0, %v456
        %v458 = vpop.f32.mrf.mxu0
        %459 = vdwg.mxu0
        %v460 = vpack.c.bf16 %v433, %v430
        %v461 = vpack.c.bf16 %v441, %v438
        %v462 = vpack.c.bf16 %v449, %v446
        %v463 = vpack.c.bf16 %v457, %v454
        %v464 = vld [vmem:[%s1] sm:$0xf]
        %v465 = vld [vmem:[%s1 + $0x4] sm:$0xf]
        %v466 = vld [vmem:[%s1 + $0x8] sm:$0xf]
        %v467 = vld [vmem:[%s1 + $0xc] sm:$0xf]
        %v468 = vld [vmem:[%s1 + $0x10] sm:$0xf]
        %v469 = vld [vmem:[%s1 + $0x14] sm:$0xf]
        %v470 = vld [vmem:[%s1 + $0x18] sm:$0xf]
        %v471 = vld [vmem:[%s1 + $0x1c] sm:$0xf]
        %v480 = vunpack.c.l.b16 %v464
        %v481 = vunpack.c.l.b16 %v465
        %v482 = vunpack.c.l.b16 %v466
        %v483 = vunpack.c.l.b16 %v467
        %v484 = vunpack.c.l.b16 %v468
        %v485 = vunpack.c.l.b16 %v469
        %v486 = vunpack.c.l.b16 %v470
        %v487 = vunpack.c.l.b16 %v471
        %v488 = vpack.c.b16 %v481, %v480
        %v489 = vpack.c.b16 %v483, %v482
        %v490 = vpack.c.b16 %v485, %v484
        %v491 = vpack.c.b16 %v487, %v486
        %vm492 = vcmask 523264
        %v494 = vsel %vm492, %v488, 0
        %v497 = vsel %vm492, %v489, 0
        %v500 = vsel %vm492, %v490, 0
        %v503 = vsel %vm492, %v491, 0
        %505 = vmatprep.subr.bf16.mxu0 0
        %506 = vmatpush1.bf16.msra.mxu0 0
        %507 = vmatprep.subr.bf16.mxu0 0
        %508 = vmatpush1.bf16.msra.mxu0 0
        %509 = vmatprep.subr.bf16.mxu0 0
        %510 = vmatpush1.bf16.msra.mxu0 0
        %511 = vmatprep.subr.bf16.mxu0 0
        %512 = vmatpush1.bf16.msra.mxu0 0
        %513 = vmatprep.subr.bf16.mxu0 0
        %514 = vmatpush1.bf16.msra.mxu0 %v463
        %515 = vmatprep.subr.bf16.mxu0 0
        %516 = vmatpush1.bf16.msra.mxu0 %v462
        %517 = vmatprep.subr.bf16.mxu0 0
        %518 = vmatpush1.bf16.msra.mxu0 %v461
        %519 = vmatprep.subr.bf16.mxu0 0
        %520 = vmatpush1.bf16.msra.mxu0 %v460
        %521 = vmatprep.subr.bf16.mxu0 0
        %522 = vmatpush2.bf16.msra.mxu0 0
        %523 = vmatprep.subr.bf16.mxu0 0
        %524 = vmatpush2.bf16.msra.mxu0 0
        %525 = vmatprep.subr.bf16.mxu0 0
        %526 = vmatpush2.bf16.msra.mxu0 0
        %527 = vmatprep.subr.bf16.mxu0 0
        %528 = vmatpush2.bf16.msra.mxu0 0
        %529 = vmatprep.subr.bf16.mxu0 0
        %530 = vmatpush2.bf16.msra.mxu0 0
        %531 = vmatprep.subr.bf16.mxu0 0
        %532 = vmatpush2.bf16.msra.mxu0 0
        %533 = vmatprep.subr.bf16.mxu0 0
        %534 = vmatpush2.bf16.msra.mxu0 0
        %535 = vmatprep.subr.bf16.mxu0 0
        %536 = vmatpush2.bf16.msra.mxu0 0
        %537 = vmatprep.mubr.bf16.mxu0 0
        %538 = vmatmul.mubr.bf16.gmra.mxu0 %v494
        %v539 = vpop.f32.mrf.mxu0
        %v540 = vadd.f32 0.0, %v539
        %v541 = vpop.f32.mrf.mxu0
        %v542 = vpop.f32.mrf.mxu0
        %v543 = vadd.f32 0.0, %v542
        %v544 = vpop.f32.mrf.mxu0
        %545 = vmatprep.mubr.bf16.mxu0 0
        %546 = vmatmul.mubr.bf16.gmra.mxu0 %v497
        %v547 = vpop.f32.mrf.mxu0
        %v548 = vadd.f32 0.0, %v547
        %v549 = vpop.f32.mrf.mxu0
        %v550 = vpop.f32.mrf.mxu0
        %v551 = vadd.f32 0.0, %v550
        %v552 = vpop.f32.mrf.mxu0
        %553 = vmatprep.mubr.bf16.mxu0 0
        %554 = vmatmul.mubr.bf16.gmra.mxu0 %v500
        %v555 = vpop.f32.mrf.mxu0
        %v556 = vadd.f32 0.0, %v555
        %v557 = vpop.f32.mrf.mxu0
        %v558 = vpop.f32.mrf.mxu0
        %v559 = vadd.f32 0.0, %v558
        %v560 = vpop.f32.mrf.mxu0
        %561 = vmatprep.mubr.bf16.mxu0 0
        %562 = vmatmul.mubr.bf16.gmra.mxu0 %v503
        %v563 = vpop.f32.mrf.mxu0
        %v564 = vadd.f32 0.0, %v563
        %v565 = vpop.f32.mrf.mxu0
        %v566 = vpop.f32.mrf.mxu0
        %v567 = vadd.f32 0.0, %v566
        %v568 = vpop.f32.mrf.mxu0
        %569 = vdwg.mxu0
        %v570 = vtanh.pop %v540
        %v571 = vtanh.pop %v543
        %v572 = vtanh.pop %v548
        %v573 = vtanh.pop %v551
        %v574 = vtanh.pop %v556
        %v575 = vtanh.pop %v559
        %v576 = vtanh.pop %v564
        %v577 = vtanh.pop %v567
        %578 = vmax.xlane.f32.xlu0 %v570
        %v579 = vpop.xlane.xlu0 %578
        %580 = vmax.xlane.f32.xlu0 %v571
        %v581 = vpop.xlane.xlu0 %580
        %582 = vmax.xlane.f32.xlu0 %v572
        %v583 = vpop.xlane.xlu0 %582
        %584 = vmax.xlane.f32.xlu0 %v573
        %v585 = vpop.xlane.xlu0 %584
        %586 = vmax.xlane.f32.xlu0 %v574
        %v587 = vpop.xlane.xlu0 %586
        %588 = vmax.xlane.f32.xlu0 %v575
        %v589 = vpop.xlane.xlu0 %588
        %590 = vmax.xlane.f32.xlu0 %v576
        %v591 = vpop.xlane.xlu0 %590
        %592 = vmax.xlane.f32.xlu0 %v577
        %v593 = vpop.xlane.xlu0 %592
        %v594 = vmax.f32 %v579, %v587
        %v595 = vmax.f32 %v581, %v589
        %v596 = vmax.f32 %v583, %v591
        %v597 = vmax.f32 %v585, %v593
        %v598 = vmax.f32 %v594, %v595
        %v599 = vmax.f32 %v596, %v597
        %v600 = vmax.f32 %v598, %v599
        %v601 = vrot.slane %v600, 4
        %v602 = vmax.f32 %v600, %v601
        %v603 = vrot.slane %v602, 2
        %v604 = vmax.f32 %v602, %v603
        %v605 = vrot.slane %v604, 1
        %v606 = vmax.f32 %v604, %v605
        %607 = vmin.xlane.f32.xlu0 %v570
        %v608 = vpop.xlane.xlu0 %607
        %609 = vmin.xlane.f32.xlu0 %v571
        %v610 = vpop.xlane.xlu0 %609
        %611 = vmin.xlane.f32.xlu0 %v572
        %v612 = vpop.xlane.xlu0 %611
        %613 = vmin.xlane.f32.xlu0 %v573
        %v614 = vpop.xlane.xlu0 %613
        %615 = vmin.xlane.f32.xlu0 %v574
        %v616 = vpop.xlane.xlu0 %615
        %617 = vmin.xlane.f32.xlu0 %v575
        %v618 = vpop.xlane.xlu0 %617
        %619 = vmin.xlane.f32.xlu0 %v576
        %v620 = vpop.xlane.xlu0 %619
        %621 = vmin.xlane.f32.xlu0 %v577
        %v622 = vpop.xlane.xlu0 %621
        %v623 = vmin.f32 %v608, %v616
        %v624 = vmin.f32 %v610, %v618
        %v625 = vmin.f32 %v612, %v620
        %v626 = vmin.f32 %v614, %v622
        %v627 = vmin.f32 %v623, %v624
        %v628 = vmin.f32 %v625, %v626
        %v629 = vmin.f32 %v627, %v628
        %v630 = vrot.slane %v629, 4
        %v631 = vmin.f32 %v629, %v630
        %v632 = vrot.slane %v631, 2
        %v633 = vmin.f32 %v631, %v632
        %v634 = vrot.slane %v633, 1
        %v635 = vmin.f32 %v633, %v634
        %v636 = vld [vmem:[%s5] sm:$0x1]
        %s637 = sld [smem:[#allocation2]]
        %v638 = vstv %s637
        %v639 = vmul.f32 %v638, %v606
        %v640 = vmul.f32 %v638, %v635
        %v641 = vmax.f32 %v639, %v640
        %v642 = vmul.f32 %v638, %v570
        %v643 = vmul.f32 %v638, %v571
        %v644 = vmul.f32 %v638, %v572
        %v645 = vmul.f32 %v638, %v573
        %v646 = vmul.f32 %v638, %v574
        %v647 = vmul.f32 %v638, %v575
        %v648 = vmul.f32 %v638, %v576
        %v649 = vmul.f32 %v638, %v577
        %v650 = vsub.f32 %v642, %v641
        %v651 = vsub.f32 %v643, %v641
        %v652 = vsub.f32 %v644, %v641
        %v653 = vsub.f32 %v645, %v641
        %v654 = vsub.f32 %v646, %v641
        %v655 = vsub.f32 %v647, %v641
        %v656 = vsub.f32 %v648, %v641
        %v657 = vsub.f32 %v649, %v641
        %v658 = vmul.f32 %v650, 1.442695
        %v659 = vpow.pop %v658
        %v660 = vmul.f32 %v651, 1.442695
        %v661 = vpow.pop %v660
        %v662 = vmul.f32 %v652, 1.442695
        %v663 = vpow.pop %v662
        %v664 = vmul.f32 %v653, 1.442695
        %v665 = vpow.pop %v664
        %v666 = vmul.f32 %v654, 1.442695
        %v667 = vpow.pop %v666
        %v668 = vmul.f32 %v655, 1.442695
        %v669 = vpow.pop %v668
        %v670 = vmul.f32 %v656, 1.442695
        %v671 = vpow.pop %v670
        %v672 = vmul.f32 %v657, 1.442695
        %v673 = vpow.pop %v672
        %v674 = vpack.c.bf16 %v661, %v659
        %v675 = vpack.c.bf16 %v665, %v663
        %v676 = vpack.c.bf16 %v669, %v667
        %v677 = vpack.c.bf16 %v673, %v671
        %v679 = vsel %vm492, %v636, 0
        %681 = vmatprep.subr.bf16.mxu0 0
        %682 = vmatpush1.bf16.msra.mxu0 0
        %683 = vmatprep.subr.bf16.mxu0 0
        %684 = vmatpush1.bf16.msra.mxu0 0
        %685 = vmatprep.subr.bf16.mxu0 0
        %686 = vmatpush1.bf16.msra.mxu0 0
        %687 = vmatprep.subr.bf16.mxu0 0
        %688 = vmatpush1.bf16.msra.mxu0 0
        %689 = vmatprep.subr.bf16.mxu0 0
        %690 = vmatpush1.bf16.msra.mxu0 %v677
        %691 = vmatprep.subr.bf16.mxu0 0
        %692 = vmatpush1.bf16.msra.mxu0 %v676
        %693 = vmatprep.subr.bf16.mxu0 0
        %694 = vmatpush1.bf16.msra.mxu0 %v675
        %695 = vmatprep.subr.bf16.mxu0 0
        %696 = vmatpush1.bf16.msra.mxu0 %v674
        %697 = vmatprep.subr.bf16.mxu0 0
        %698 = vmatpush2.bf16.msra.mxu0 0
        %699 = vmatprep.subr.bf16.mxu0 0
        %700 = vmatpush2.bf16.msra.mxu0 0
        %701 = vmatprep.subr.bf16.mxu0 0
        %702 = vmatpush2.bf16.msra.mxu0 0
        %703 = vmatprep.subr.bf16.mxu0 0
        %704 = vmatpush2.bf16.msra.mxu0 0
        %705 = vmatprep.subr.bf16.mxu0 0
        %706 = vmatpush2.bf16.msra.mxu0 0
        %707 = vmatprep.subr.bf16.mxu0 0
        %708 = vmatpush2.bf16.msra.mxu0 0
        %709 = vmatprep.subr.bf16.mxu0 0
        %710 = vmatpush2.bf16.msra.mxu0 0
        %711 = vmatprep.subr.bf16.mxu0 0
        %712 = vmatpush2.bf16.msra.mxu0 0
        %713 = vmatprep.mubr.bf16.mxu0 0
        %714 = vmatmul.mubr.bf16.gmra.mxu0 %v679
        %v715 = vpop.f32.mrf.mxu0
        %v716 = vadd.f32 0.0, %v715
        %v717 = vpop.f32.mrf.mxu0
        %v718 = vpop.f32.mrf.mxu0
        %v719 = vpop.f32.mrf.mxu0
        %720 = vdwg.mxu0
        %s721 = sld [smem:[#allocation2 + $0x1]]
        %v722 = vstv %s721
        %v723 = vmul.f32 %v722, %v606
        %v724 = vmul.f32 %v722, %v635
        %v725 = vmax.f32 %v723, %v724
        %v726 = vmul.f32 %v722, %v570
        %v727 = vmul.f32 %v722, %v571
        %v728 = vmul.f32 %v722, %v572
        %v729 = vmul.f32 %v722, %v573
        %v730 = vmul.f32 %v722, %v574
        %v731 = vmul.f32 %v722, %v575
        %v732 = vmul.f32 %v722, %v576
        %v733 = vmul.f32 %v722, %v577
        %v734 = vsub.f32 %v726, %v725
        %v735 = vsub.f32 %v727, %v725
        %v736 = vsub.f32 %v728, %v725
        %v737 = vsub.f32 %v729, %v725
        %v738 = vsub.f32 %v730, %v725
        %v739 = vsub.f32 %v731, %v725
        %v740 = vsub.f32 %v732, %v725
        %v741 = vsub.f32 %v733, %v725
        %v742 = vmul.f32 %v734, 1.442695
        %v743 = vpow.pop %v742
        %v744 = vmul.f32 %v735, 1.442695
        %v745 = vpow.pop %v744
        %v746 = vmul.f32 %v736, 1.442695
        %v747 = vpow.pop %v746
        %v748 = vmul.f32 %v737, 1.442695
        %v749 = vpow.pop %v748
        %v750 = vmul.f32 %v738, 1.442695
        %v751 = vpow.pop %v750
        %v752 = vmul.f32 %v739, 1.442695
        %v753 = vpow.pop %v752
        %v754 = vmul.f32 %v740, 1.442695
        %v755 = vpow.pop %v754
        %v756 = vmul.f32 %v741, 1.442695
        %v757 = vpow.pop %v756
        %v758 = vpack.c.bf16 %v745, %v743
        %v759 = vpack.c.bf16 %v749, %v747
        %v760 = vpack.c.bf16 %v753, %v751
        %v761 = vpack.c.bf16 %v757, %v755
        %762 = vmatprep.subr.bf16.mxu0 0
        %763 = vmatpush1.bf16.msra.mxu0 0
        %764 = vmatprep.subr.bf16.mxu0 0
        %765 = vmatpush1.bf16.msra.mxu0 0
        %766 = vmatprep.subr.bf16.mxu0 0
        %767 = vmatpush1.bf16.msra.mxu0 0
        %768 = vmatprep.subr.bf16.mxu0 0
        %769 = vmatpush1.bf16.msra.mxu0 0
        %770 = vmatprep.subr.bf16.mxu0 0
        %771 = vmatpush1.bf16.msra.mxu0 %v761
        %772 = vmatprep.subr.bf16.mxu0 0
        %773 = vmatpush1.bf16.msra.mxu0 %v760
        %774 = vmatprep.subr.bf16.mxu0 0
        %775 = vmatpush1.bf16.msra.mxu0 %v759
        %776 = vmatprep.subr.bf16.mxu0 0
        %777 = vmatpush1.bf16.msra.mxu0 %v758
        %778 = vmatprep.subr.bf16.mxu0 0
        %779 = vmatpush2.bf16.msra.mxu0 0
        %780 = vmatprep.subr.bf16.mxu0 0
        %781 = vmatpush2.bf16.msra.mxu0 0
        %782 = vmatprep.subr.bf16.mxu0 0
        %783 = vmatpush2.bf16.msra.mxu0 0
        %784 = vmatprep.subr.bf16.mxu0 0
        %785 = vmatpush2.bf16.msra.mxu0 0
        %786 = vmatprep.subr.bf16.mxu0 0
        %787 = vmatpush2.bf16.msra.mxu0 0
        %788 = vmatprep.subr.bf16.mxu0 0
        %789 = vmatpush2.bf16.msra.mxu0 0
        %790 = vmatprep.subr.bf16.mxu0 0
        %791 = vmatpush2.bf16.msra.mxu0 0
        %792 = vmatprep.subr.bf16.mxu0 0
        %793 = vmatpush2.bf16.msra.mxu0 0
        %794 = vmatprep.mubr.bf16.mxu0 0
        %795 = vmatmul.mubr.bf16.gmra.mxu0 %v679
        %v796 = vpop.f32.mrf.mxu0
        %v797 = vadd.f32 0.0, %v796
        %v798 = vpop.f32.mrf.mxu0
        %v799 = vpop.f32.mrf.mxu0
        %v800 = vpop.f32.mrf.mxu0
        %801 = vdwg.mxu0
        %s802 = sld [smem:[#allocation2 + $0x2]]
        %v803 = vstv %s802
        %v804 = vmul.f32 %v803, %v606
        %v805 = vmul.f32 %v803, %v635
        %v806 = vmax.f32 %v804, %v805
        %v807 = vmul.f32 %v803, %v570
        %v808 = vmul.f32 %v803, %v571
        %v809 = vmul.f32 %v803, %v572
        %v810 = vmul.f32 %v803, %v573
        %v811 = vmul.f32 %v803, %v574
        %v812 = vmul.f32 %v803, %v575
        %v813 = vmul.f32 %v803, %v576
        %v814 = vmul.f32 %v803, %v577
        %v815 = vsub.f32 %v807, %v806
        %v816 = vsub.f32 %v808, %v806
        %v817 = vsub.f32 %v809, %v806
        %v818 = vsub.f32 %v810, %v806
        %v819 = vsub.f32 %v811, %v806
        %v820 = vsub.f32 %v812, %v806
        %v821 = vsub.f32 %v813, %v806
        %v822 = vsub.f32 %v814, %v806
        %v823 = vmul.f32 %v815, 1.442695
        %v824 = vpow.pop %v823
        %v825 = vmul.f32 %v816, 1.442695
        %v826 = vpow.pop %v825
        %v827 = vmul.f32 %v817, 1.442695
        %v828 = vpow.pop %v827
        %v829 = vmul.f32 %v818, 1.442695
        %v830 = vpow.pop %v829
        %v831 = vmul.f32 %v819, 1.442695
        %v832 = vpow.pop %v831
        %v833 = vmul.f32 %v820, 1.442695
        %v834 = vpow.pop %v833
        %v835 = vmul.f32 %v821, 1.442695
        %v836 = vpow.pop %v835
        %v837 = vmul.f32 %v822, 1.442695
        %v838 = vpow.pop %v837
        %v839 = vpack.c.bf16 %v826, %v824
        %v840 = vpack.c.bf16 %v830, %v828
        %v841 = vpack.c.bf16 %v834, %v832
        %v842 = vpack.c.bf16 %v838, %v836
        %843 = vmatprep.subr.bf16.mxu0 0
        %844 = vmatpush1.bf16.msra.mxu0 0
        %845 = vmatprep.subr.bf16.mxu0 0
        %846 = vmatpush1.bf16.msra.mxu0 0
        %847 = vmatprep.subr.bf16.mxu0 0
        %848 = vmatpush1.bf16.msra.mxu0 0
        %849 = vmatprep.subr.bf16.mxu0 0
        %850 = vmatpush1.bf16.msra.mxu0 0
        %851 = vmatprep.subr.bf16.mxu0 0
        %852 = vmatpush1.bf16.msra.mxu0 %v842
        %853 = vmatprep.subr.bf16.mxu0 0
        %854 = vmatpush1.bf16.msra.mxu0 %v841
        %855 = vmatprep.subr.bf16.mxu0 0
        %856 = vmatpush1.bf16.msra.mxu0 %v840
        %857 = vmatprep.subr.bf16.mxu0 0
        %858 = vmatpush1.bf16.msra.mxu0 %v839
        %859 = vmatprep.subr.bf16.mxu0 0
        %860 = vmatpush2.bf16.msra.mxu0 0
        %861 = vmatprep.subr.bf16.mxu0 0
        %862 = vmatpush2.bf16.msra.mxu0 0
        %863 = vmatprep.subr.bf16.mxu0 0
        %864 = vmatpush2.bf16.msra.mxu0 0
        %865 = vmatprep.subr.bf16.mxu0 0
        %866 = vmatpush2.bf16.msra.mxu0 0
        %867 = vmatprep.subr.bf16.mxu0 0
        %868 = vmatpush2.bf16.msra.mxu0 0
        %869 = vmatprep.subr.bf16.mxu0 0
        %870 = vmatpush2.bf16.msra.mxu0 0
        %871 = vmatprep.subr.bf16.mxu0 0
        %872 = vmatpush2.bf16.msra.mxu0 0
        %873 = vmatprep.subr.bf16.mxu0 0
        %874 = vmatpush2.bf16.msra.mxu0 0
        %875 = vmatprep.mubr.bf16.mxu0 0
        %876 = vmatmul.mubr.bf16.gmra.mxu0 %v679
        %v877 = vpop.f32.mrf.mxu0
        %v878 = vadd.f32 0.0, %v877
        %v879 = vpop.f32.mrf.mxu0
        %v880 = vpop.f32.mrf.mxu0
        %v881 = vpop.f32.mrf.mxu0
        %882 = vdwg.mxu0
        %s883 = sld [smem:[#allocation2 + $0x3]]
        %v884 = vstv %s883
        %v885 = vmul.f32 %v884, %v606
        %v886 = vmul.f32 %v884, %v635
        %v887 = vmax.f32 %v885, %v886
        %v888 = vmul.f32 %v884, %v570
        %v889 = vmul.f32 %v884, %v571
        %v890 = vmul.f32 %v884, %v572
        %v891 = vmul.f32 %v884, %v573
        %v892 = vmul.f32 %v884, %v574
        %v893 = vmul.f32 %v884, %v575
        %v894 = vmul.f32 %v884, %v576
        %v895 = vmul.f32 %v884, %v577
        %v896 = vsub.f32 %v888, %v887
        %v897 = vsub.f32 %v889, %v887
        %v898 = vsub.f32 %v890, %v887
        %v899 = vsub.f32 %v891, %v887
        %v900 = vsub.f32 %v892, %v887
        %v901 = vsub.f32 %v893, %v887
        %v902 = vsub.f32 %v894, %v887
        %v903 = vsub.f32 %v895, %v887
        %v904 = vmul.f32 %v896, 1.442695
        %v905 = vpow.pop %v904
        %v906 = vmul.f32 %v897, 1.442695
        %v907 = vpow.pop %v906
        %v908 = vmul.f32 %v898, 1.442695
        %v909 = vpow.pop %v908
        %v910 = vmul.f32 %v899, 1.442695
        %v911 = vpow.pop %v910
        %v912 = vmul.f32 %v900, 1.442695
        %v913 = vpow.pop %v912
        %v914 = vmul.f32 %v901, 1.442695
        %v915 = vpow.pop %v914
        %v916 = vmul.f32 %v902, 1.442695
        %v917 = vpow.pop %v916
        %v918 = vmul.f32 %v903, 1.442695
        %v919 = vpow.pop %v918
        %v920 = vpack.c.bf16 %v907, %v905
        %v921 = vpack.c.bf16 %v911, %v909
        %v922 = vpack.c.bf16 %v915, %v913
        %v923 = vpack.c.bf16 %v919, %v917
        %924 = vmatprep.subr.bf16.mxu0 0
        %925 = vmatpush1.bf16.msra.mxu0 0
        %926 = vmatprep.subr.bf16.mxu0 0
        %927 = vmatpush1.bf16.msra.mxu0 0
        %928 = vmatprep.subr.bf16.mxu0 0
        %929 = vmatpush1.bf16.msra.mxu0 0
        %930 = vmatprep.subr.bf16.mxu0 0
        %931 = vmatpush1.bf16.msra.mxu0 0
        %932 = vmatprep.subr.bf16.mxu0 0
        %933 = vmatpush1.bf16.msra.mxu0 %v923
        %934 = vmatprep.subr.bf16.mxu0 0
        %935 = vmatpush1.bf16.msra.mxu0 %v922
        %936 = vmatprep.subr.bf16.mxu0 0
        %937 = vmatpush1.bf16.msra.mxu0 %v921
        %938 = vmatprep.subr.bf16.mxu0 0
        %939 = vmatpush1.bf16.msra.mxu0 %v920
        %940 = vmatprep.subr.bf16.mxu0 0
        %941 = vmatpush2.bf16.msra.mxu0 0
        %942 = vmatprep.subr.bf16.mxu0 0
        %943 = vmatpush2.bf16.msra.mxu0 0
        %944 = vmatprep.subr.bf16.mxu0 0
        %945 = vmatpush2.bf16.msra.mxu0 0
        %946 = vmatprep.subr.bf16.mxu0 0
        %947 = vmatpush2.bf16.msra.mxu0 0
        %948 = vmatprep.subr.bf16.mxu0 0
        %949 = vmatpush2.bf16.msra.mxu0 0
        %950 = vmatprep.subr.bf16.mxu0 0
        %951 = vmatpush2.bf16.msra.mxu0 0
        %952 = vmatprep.subr.bf16.mxu0 0
        %953 = vmatpush2.bf16.msra.mxu0 0
        %954 = vmatprep.subr.bf16.mxu0 0
        %955 = vmatpush2.bf16.msra.mxu0 0
        %956 = vmatprep.mubr.bf16.mxu0 0
        %957 = vmatmul.mubr.bf16.gmra.mxu0 %v679
        %v958 = vpop.f32.mrf.mxu0
        %v959 = vadd.f32 0.0, %v958
        %v960 = vpop.f32.mrf.mxu0
        %v961 = vpop.f32.mrf.mxu0
        %v962 = vpop.f32.mrf.mxu0
        %963 = vdwg.mxu0
        %s964 = sld [smem:[#allocation2 + $0x4]]
        %v965 = vstv %s964
        %v966 = vmul.f32 %v965, %v606
        %v967 = vmul.f32 %v965, %v635
        %v968 = vmax.f32 %v966, %v967
        %v969 = vmul.f32 %v965, %v570
        %v970 = vmul.f32 %v965, %v571
        %v971 = vmul.f32 %v965, %v572
        %v972 = vmul.f32 %v965, %v573
        %v973 = vmul.f32 %v965, %v574
        %v974 = vmul.f32 %v965, %v575
        %v975 = vmul.f32 %v965, %v576
        %v976 = vmul.f32 %v965, %v577
        %v977 = vsub.f32 %v969, %v968
        %v978 = vsub.f32 %v970, %v968
        %v979 = vsub.f32 %v971, %v968
        %v980 = vsub.f32 %v972, %v968
        %v981 = vsub.f32 %v973, %v968
        %v982 = vsub.f32 %v974, %v968
        %v983 = vsub.f32 %v975, %v968
        %v984 = vsub.f32 %v976, %v968
        %v985 = vmul.f32 %v977, 1.442695
        %v986 = vpow.pop %v985
        %v987 = vmul.f32 %v978, 1.442695
        %v988 = vpow.pop %v987
        %v989 = vmul.f32 %v979, 1.442695
        %v990 = vpow.pop %v989
        %v991 = vmul.f32 %v980, 1.442695
        %v992 = vpow.pop %v991
        %v993 = vmul.f32 %v981, 1.442695
        %v994 = vpow.pop %v993
        %v995 = vmul.f32 %v982, 1.442695
        %v996 = vpow.pop %v995
        %v997 = vmul.f32 %v983, 1.442695
        %v998 = vpow.pop %v997
        %v999 = vmul.f32 %v984, 1.442695
        %v1000 = vpow.pop %v999
        %v1001 = vpack.c.bf16 %v988, %v986
        %v1002 = vpack.c.bf16 %v992, %v990
        %v1003 = vpack.c.bf16 %v996, %v994
        %v1004 = vpack.c.bf16 %v1000, %v998
        %1005 = vmatprep.subr.bf16.mxu0 0
        %1006 = vmatpush1.bf16.msra.mxu0 0
        %1007 = vmatprep.subr.bf16.mxu0 0
        %1008 = vmatpush1.bf16.msra.mxu0 0
        %1009 = vmatprep.subr.bf16.mxu0 0
        %1010 = vmatpush1.bf16.msra.mxu0 0
        %1011 = vmatprep.subr.bf16.mxu0 0
        %1012 = vmatpush1.bf16.msra.mxu0 0
        %1013 = vmatprep.subr.bf16.mxu0 0
        %1014 = vmatpush1.bf16.msra.mxu0 %v1004
        %1015 = vmatprep.subr.bf16.mxu0 0
        %1016 = vmatpush1.bf16.msra.mxu0 %v1003
        %1017 = vmatprep.subr.bf16.mxu0 0
        %1018 = vmatpush1.bf16.msra.mxu0 %v1002
        %1019 = vmatprep.subr.bf16.mxu0 0
        %1020 = vmatpush1.bf16.msra.mxu0 %v1001
        %1021 = vmatprep.subr.bf16.mxu0 0
        %1022 = vmatpush2.bf16.msra.mxu0 0
        %1023 = vmatprep.subr.bf16.mxu0 0
        %1024 = vmatpush2.bf16.msra.mxu0 0
        %1025 = vmatprep.subr.bf16.mxu0 0
        %1026 = vmatpush2.bf16.msra.mxu0 0
        %1027 = vmatprep.subr.bf16.mxu0 0
        %1028 = vmatpush2.bf16.msra.mxu0 0
        %1029 = vmatprep.subr.bf16.mxu0 0
        %1030 = vmatpush2.bf16.msra.mxu0 0
        %1031 = vmatprep.subr.bf16.mxu0 0
        %1032 = vmatpush2.bf16.msra.mxu0 0
        %1033 = vmatprep.subr.bf16.mxu0 0
        %1034 = vmatpush2.bf16.msra.mxu0 0
        %1035 = vmatprep.subr.bf16.mxu0 0
        %1036 = vmatpush2.bf16.msra.mxu0 0
        %1037 = vmatprep.mubr.bf16.mxu0 0
        %1038 = vmatmul.mubr.bf16.gmra.mxu0 %v679
        %v1039 = vpop.f32.mrf.mxu0
        %v1040 = vadd.f32 0.0, %v1039
        %v1041 = vpop.f32.mrf.mxu0
        %v1042 = vpop.f32.mrf.mxu0
        %v1043 = vpop.f32.mrf.mxu0
        %1044 = vdwg.mxu0
        %s1045 = sld [smem:[#allocation2 + $0x5]]
        %v1046 = vstv %s1045
        %v1047 = vmul.f32 %v1046, %v606
        %v1048 = vmul.f32 %v1046, %v635
        %v1049 = vmax.f32 %v1047, %v1048
        %v1050 = vmul.f32 %v1046, %v570
        %v1051 = vmul.f32 %v1046, %v571
        %v1052 = vmul.f32 %v1046, %v572
        %v1053 = vmul.f32 %v1046, %v573
        %v1054 = vmul.f32 %v1046, %v574
        %v1055 = vmul.f32 %v1046, %v575
        %v1056 = vmul.f32 %v1046, %v576
        %v1057 = vmul.f32 %v1046, %v577
        %v1058 = vsub.f32 %v1050, %v1049
        %v1059 = vsub.f32 %v1051, %v1049
        %v1060 = vsub.f32 %v1052, %v1049
        %v1061 = vsub.f32 %v1053, %v1049
        %v1062 = vsub.f32 %v1054, %v1049
        %v1063 = vsub.f32 %v1055, %v1049
        %v1064 = vsub.f32 %v1056, %v1049
        %v1065 = vsub.f32 %v1057, %v1049
        %v1066 = vmul.f32 %v1058, 1.442695
        %v1067 = vpow.pop %v1066
        %v1068 = vmul.f32 %v1059, 1.442695
        %v1069 = vpow.pop %v1068
        %v1070 = vmul.f32 %v1060, 1.442695
        %v1071 = vpow.pop %v1070
        %v1072 = vmul.f32 %v1061, 1.442695
        %v1073 = vpow.pop %v1072
        %v1074 = vmul.f32 %v1062, 1.442695
        %v1075 = vpow.pop %v1074
        %v1076 = vmul.f32 %v1063, 1.442695
        %v1077 = vpow.pop %v1076
        %v1078 = vmul.f32 %v1064, 1.442695
        %v1079 = vpow.pop %v1078
        %v1080 = vmul.f32 %v1065, 1.442695
        %v1081 = vpow.pop %v1080
        %v1082 = vpack.c.bf16 %v1069, %v1067
        %v1083 = vpack.c.bf16 %v1073, %v1071
        %v1084 = vpack.c.bf16 %v1077, %v1075
        %v1085 = vpack.c.bf16 %v1081, %v1079
        %1086 = vmatprep.subr.bf16.mxu0 0
        %1087 = vmatpush1.bf16.msra.mxu0 0
        %1088 = vmatprep.subr.bf16.mxu0 0
        %1089 = vmatpush1.bf16.msra.mxu0 0
        %1090 = vmatprep.subr.bf16.mxu0 0
        %1091 = vmatpush1.bf16.msra.mxu0 0
        %1092 = vmatprep.subr.bf16.mxu0 0
        %1093 = vmatpush1.bf16.msra.mxu0 0
        %1094 = vmatprep.subr.bf16.mxu0 0
        %1095 = vmatpush1.bf16.msra.mxu0 %v1085
        %1096 = vmatprep.subr.bf16.mxu0 0
        %1097 = vmatpush1.bf16.msra.mxu0 %v1084
        %1098 = vmatprep.subr.bf16.mxu0 0
        %1099 = vmatpush1.bf16.msra.mxu0 %v1083
        %1100 = vmatprep.subr.bf16.mxu0 0
        %1101 = vmatpush1.bf16.msra.mxu0 %v1082
        %1102 = vmatprep.subr.bf16.mxu0 0
        %1103 = vmatpush2.bf16.msra.mxu0 0
        %1104 = vmatprep.subr.bf16.mxu0 0
        %1105 = vmatpush2.bf16.msra.mxu0 0
        %1106 = vmatprep.subr.bf16.mxu0 0
        %1107 = vmatpush2.bf16.msra.mxu0 0
        %1108 = vmatprep.subr.bf16.mxu0 0
        %1109 = vmatpush2.bf16.msra.mxu0 0
        %1110 = vmatprep.subr.bf16.mxu0 0
        %1111 = vmatpush2.bf16.msra.mxu0 0
        %1112 = vmatprep.subr.bf16.mxu0 0
        %1113 = vmatpush2.bf16.msra.mxu0 0
        %1114 = vmatprep.subr.bf16.mxu0 0
        %1115 = vmatpush2.bf16.msra.mxu0 0
        %1116 = vmatprep.subr.bf16.mxu0 0
        %1117 = vmatpush2.bf16.msra.mxu0 0
        %1118 = vmatprep.mubr.bf16.mxu0 0
        %1119 = vmatmul.mubr.bf16.gmra.mxu0 %v679
        %v1120 = vpop.f32.mrf.mxu0
        %v1121 = vadd.f32 0.0, %v1120
        %v1122 = vpop.f32.mrf.mxu0
        %v1123 = vpop.f32.mrf.mxu0
        %v1124 = vpop.f32.mrf.mxu0
        %1125 = vdwg.mxu0
        %s1126 = sld [smem:[#allocation2 + $0x6]]
        %v1127 = vstv %s1126
        %v1128 = vmul.f32 %v1127, %v606
        %v1129 = vmul.f32 %v1127, %v635
        %v1130 = vmax.f32 %v1128, %v1129
        %v1131 = vmul.f32 %v1127, %v570
        %v1132 = vmul.f32 %v1127, %v571
        %v1133 = vmul.f32 %v1127, %v572
        %v1134 = vmul.f32 %v1127, %v573
        %v1135 = vmul.f32 %v1127, %v574
        %v1136 = vmul.f32 %v1127, %v575
        %v1137 = vmul.f32 %v1127, %v576
        %v1138 = vmul.f32 %v1127, %v577
        %v1139 = vsub.f32 %v1131, %v1130
        %v1140 = vsub.f32 %v1132, %v1130
        %v1141 = vsub.f32 %v1133, %v1130
        %v1142 = vsub.f32 %v1134, %v1130
        %v1143 = vsub.f32 %v1135, %v1130
        %v1144 = vsub.f32 %v1136, %v1130
        %v1145 = vsub.f32 %v1137, %v1130
        %v1146 = vsub.f32 %v1138, %v1130
        %v1147 = vmul.f32 %v1139, 1.442695
        %v1148 = vpow.pop %v1147
        %v1149 = vmul.f32 %v1140, 1.442695
        %v1150 = vpow.pop %v1149
        %v1151 = vmul.f32 %v1141, 1.442695
        %v1152 = vpow.pop %v1151
        %v1153 = vmul.f32 %v1142, 1.442695
        %v1154 = vpow.pop %v1153
        %v1155 = vmul.f32 %v1143, 1.442695
        %v1156 = vpow.pop %v1155
        %v1157 = vmul.f32 %v1144, 1.442695
        %v1158 = vpow.pop %v1157
        %v1159 = vmul.f32 %v1145, 1.442695
        %v1160 = vpow.pop %v1159
        %v1161 = vmul.f32 %v1146, 1.442695
        %v1162 = vpow.pop %v1161
        %v1163 = vpack.c.bf16 %v1150, %v1148
        %v1164 = vpack.c.bf16 %v1154, %v1152
        %v1165 = vpack.c.bf16 %v1158, %v1156
        %v1166 = vpack.c.bf16 %v1162, %v1160
        %1167 = vmatprep.subr.bf16.mxu0 0
        %1168 = vmatpush1.bf16.msra.mxu0 0
        %1169 = vmatprep.subr.bf16.mxu0 0
        %1170 = vmatpush1.bf16.msra.mxu0 0
        %1171 = vmatprep.subr.bf16.mxu0 0
        %1172 = vmatpush1.bf16.msra.mxu0 0
        %1173 = vmatprep.subr.bf16.mxu0 0
        %1174 = vmatpush1.bf16.msra.mxu0 0
        %1175 = vmatprep.subr.bf16.mxu0 0
        %1176 = vmatpush1.bf16.msra.mxu0 %v1166
        %1177 = vmatprep.subr.bf16.mxu0 0
        %1178 = vmatpush1.bf16.msra.mxu0 %v1165
        %1179 = vmatprep.subr.bf16.mxu0 0
        %1180 = vmatpush1.bf16.msra.mxu0 %v1164
        %1181 = vmatprep.subr.bf16.mxu0 0
        %1182 = vmatpush1.bf16.msra.mxu0 %v1163
        %1183 = vmatprep.subr.bf16.mxu0 0
        %1184 = vmatpush2.bf16.msra.mxu0 0
        %1185 = vmatprep.subr.bf16.mxu0 0
        %1186 = vmatpush2.bf16.msra.mxu0 0
        %1187 = vmatprep.subr.bf16.mxu0 0
        %1188 = vmatpush2.bf16.msra.mxu0 0
        %1189 = vmatprep.subr.bf16.mxu0 0
        %1190 = vmatpush2.bf16.msra.mxu0 0
        %1191 = vmatprep.subr.bf16.mxu0 0
        %1192 = vmatpush2.bf16.msra.mxu0 0
        %1193 = vmatprep.subr.bf16.mxu0 0
        %1194 = vmatpush2.bf16.msra.mxu0 0
        %1195 = vmatprep.subr.bf16.mxu0 0
        %1196 = vmatpush2.bf16.msra.mxu0 0
        %1197 = vmatprep.subr.bf16.mxu0 0
        %1198 = vmatpush2.bf16.msra.mxu0 0
        %1199 = vmatprep.mubr.bf16.mxu0 0
        %1200 = vmatmul.mubr.bf16.gmra.mxu0 %v679
        %v1201 = vpop.f32.mrf.mxu0
        %v1202 = vadd.f32 0.0, %v1201
        %v1203 = vpop.f32.mrf.mxu0
        %v1204 = vpop.f32.mrf.mxu0
        %v1205 = vpop.f32.mrf.mxu0
        %1206 = vdwg.mxu0
        %s1207 = sld [smem:[#allocation2 + $0x7]]
        %v1208 = vstv %s1207
        %v1209 = vmul.f32 %v1208, %v606
        %v1210 = vmul.f32 %v1208, %v635
        %v1211 = vmax.f32 %v1209, %v1210
        %v1212 = vmul.f32 %v1208, %v570
        %v1213 = vmul.f32 %v1208, %v571
        %v1214 = vmul.f32 %v1208, %v572
        %v1215 = vmul.f32 %v1208, %v573
        %v1216 = vmul.f32 %v1208, %v574
        %v1217 = vmul.f32 %v1208, %v575
        %v1218 = vmul.f32 %v1208, %v576
        %v1219 = vmul.f32 %v1208, %v577
        %v1220 = vsub.f32 %v1212, %v1211
        %v1221 = vsub.f32 %v1213, %v1211
        %v1222 = vsub.f32 %v1214, %v1211
        %v1223 = vsub.f32 %v1215, %v1211
        %v1224 = vsub.f32 %v1216, %v1211
        %v1225 = vsub.f32 %v1217, %v1211
        %v1226 = vsub.f32 %v1218, %v1211
        %v1227 = vsub.f32 %v1219, %v1211
        %v1228 = vmul.f32 %v1220, 1.442695
        %v1229 = vpow.pop %v1228
        %v1230 = vmul.f32 %v1221, 1.442695
        %v1231 = vpow.pop %v1230
        %v1232 = vmul.f32 %v1222, 1.442695
        %v1233 = vpow.pop %v1232
        %v1234 = vmul.f32 %v1223, 1.442695
        %v1235 = vpow.pop %v1234
        %v1236 = vmul.f32 %v1224, 1.442695
        %v1237 = vpow.pop %v1236
        %v1238 = vmul.f32 %v1225, 1.442695
        %v1239 = vpow.pop %v1238
        %v1240 = vmul.f32 %v1226, 1.442695
        %v1241 = vpow.pop %v1240
        %v1242 = vmul.f32 %v1227, 1.442695
        %v1243 = vpow.pop %v1242
        %v1244 = vpack.c.bf16 %v1231, %v1229
        %v1245 = vpack.c.bf16 %v1235, %v1233
        %v1246 = vpack.c.bf16 %v1239, %v1237
        %v1247 = vpack.c.bf16 %v1243, %v1241
        %1248 = vmatprep.subr.bf16.mxu0 0
        %1249 = vmatpush1.bf16.msra.mxu0 0
        %1250 = vmatprep.subr.bf16.mxu0 0
        %1251 = vmatpush1.bf16.msra.mxu0 0
        %1252 = vmatprep.subr.bf16.mxu0 0
        %1253 = vmatpush1.bf16.msra.mxu0 0
        %1254 = vmatprep.subr.bf16.mxu0 0
        %1255 = vmatpush1.bf16.msra.mxu0 0
        %1256 = vmatprep.subr.bf16.mxu0 0
        %1257 = vmatpush1.bf16.msra.mxu0 %v1247
        %1258 = vmatprep.subr.bf16.mxu0 0
        %1259 = vmatpush1.bf16.msra.mxu0 %v1246
        %1260 = vmatprep.subr.bf16.mxu0 0
        %1261 = vmatpush1.bf16.msra.mxu0 %v1245
        %1262 = vmatprep.subr.bf16.mxu0 0
        %1263 = vmatpush1.bf16.msra.mxu0 %v1244
        %1264 = vmatprep.subr.bf16.mxu0 0
        %1265 = vmatpush2.bf16.msra.mxu0 0
        %1266 = vmatprep.subr.bf16.mxu0 0
        %1267 = vmatpush2.bf16.msra.mxu0 0
        %1268 = vmatprep.subr.bf16.mxu0 0
        %1269 = vmatpush2.bf16.msra.mxu0 0
        %1270 = vmatprep.subr.bf16.mxu0 0
        %1271 = vmatpush2.bf16.msra.mxu0 0
        %1272 = vmatprep.subr.bf16.mxu0 0
        %1273 = vmatpush2.bf16.msra.mxu0 0
        %1274 = vmatprep.subr.bf16.mxu0 0
        %1275 = vmatpush2.bf16.msra.mxu0 0
        %1276 = vmatprep.subr.bf16.mxu0 0
        %1277 = vmatpush2.bf16.msra.mxu0 0
        %1278 = vmatprep.subr.bf16.mxu0 0
        %1279 = vmatpush2.bf16.msra.mxu0 0
        %1280 = vmatprep.mubr.bf16.mxu0 0
        %1281 = vmatmul.mubr.bf16.gmra.mxu0 %v679
        %v1282 = vpop.f32.mrf.mxu0
        %v1283 = vadd.f32 0.0, %v1282
        %v1284 = vpop.f32.mrf.mxu0
        %v1285 = vpop.f32.mrf.mxu0
        %v1286 = vpop.f32.mrf.mxu0
        %1287 = vdwg.mxu0
        %v1288 = vpack.c.bf16 %v716, %v716
        %v1289 = vpack.c.bf16 %v797, %v797
        %v1290 = vpack.c.bf16 %v878, %v878
        %v1291 = vpack.c.bf16 %v959, %v959
        %v1292 = vpack.c.bf16 %v1040, %v1040
        %v1293 = vpack.c.bf16 %v1121, %v1121
        %v1294 = vpack.c.bf16 %v1202, %v1202
        %v1295 = vpack.c.bf16 %v1283, %v1283
        %v1296 = vld [vmem:[%s4] sm:$0xf]
        %v1297 = vld [vmem:[%s4 + $0x4] sm:$0xf]
        %v1298 = vld [vmem:[%s4 + $0x8] sm:$0xf]
        %v1299 = vld [vmem:[%s4 + $0xc] sm:$0xf]
        %v1300 = vld [vmem:[%s4 + $0x10] sm:$0xf]
        %v1301 = vld [vmem:[%s4 + $0x14] sm:$0xf]
        %v1302 = vld [vmem:[%s4 + $0x18] sm:$0xf]
        %v1303 = vld [vmem:[%s4 + $0x1c] sm:$0xf]
        %v1304 = vld [vmem:[%s4 + $0x20] sm:$0xf]
        %v1305 = vld [vmem:[%s4 + $0x24] sm:$0xf]
        %v1306 = vld [vmem:[%s4 + $0x28] sm:$0xf]
        %v1307 = vld [vmem:[%s4 + $0x2c] sm:$0xf]
        %v1308 = vld [vmem:[%s4 + $0x30] sm:$0xf]
        %v1309 = vld [vmem:[%s4 + $0x34] sm:$0xf]
        %v1310 = vld [vmem:[%s4 + $0x38] sm:$0xf]
        %v1311 = vld [vmem:[%s4 + $0x3c] sm:$0xf]
        %v1312 = vld [vmem:[%s4 + $0x40] sm:$0xf]
        %v1313 = vld [vmem:[%s4 + $0x44] sm:$0xf]
        %v1314 = vld [vmem:[%s4 + $0x48] sm:$0xf]
        %v1315 = vld [vmem:[%s4 + $0x4c] sm:$0xf]
        %v1316 = vld [vmem:[%s4 + $0x50] sm:$0xf]
        %v1317 = vld [vmem:[%s4 + $0x54] sm:$0xf]
        %v1318 = vld [vmem:[%s4 + $0x58] sm:$0xf]
        %v1319 = vld [vmem:[%s4 + $0x5c] sm:$0xf]
        %v1320 = vld [vmem:[%s4 + $0x60] sm:$0xf]
        %v1321 = vld [vmem:[%s4 + $0x64] sm:$0xf]
        %v1322 = vld [vmem:[%s4 + $0x68] sm:$0xf]
        %v1323 = vld [vmem:[%s4 + $0x6c] sm:$0xf]
        %v1324 = vld [vmem:[%s4 + $0x70] sm:$0xf]
        %v1325 = vld [vmem:[%s4 + $0x74] sm:$0xf]
        %v1326 = vld [vmem:[%s4 + $0x78] sm:$0xf]
        %v1327 = vld [vmem:[%s4 + $0x7c] sm:$0xf]
        %v1328 = vld [vmem:[%s4 + $0x80] sm:$0xf]
        %v1329 = vld [vmem:[%s4 + $0x84] sm:$0xf]
        %v1330 = vld [vmem:[%s4 + $0x88] sm:$0xf]
        %v1331 = vld [vmem:[%s4 + $0x8c] sm:$0xf]
        %v1332 = vld [vmem:[%s4 + $0x90] sm:$0xf]
        %v1333 = vld [vmem:[%s4 + $0x94] sm:$0xf]
        %v1334 = vld [vmem:[%s4 + $0x98] sm:$0xf]
        %v1335 = vld [vmem:[%s4 + $0x9c] sm:$0xf]
        %v1336 = vld [vmem:[%s4 + $0xa0] sm:$0xf]
        %v1337 = vld [vmem:[%s4 + $0xa4] sm:$0xf]
        %v1338 = vld [vmem:[%s4 + $0xa8] sm:$0xf]
        %v1339 = vld [vmem:[%s4 + $0xac] sm:$0xf]
        %v1340 = vld [vmem:[%s4 + $0xb0] sm:$0xf]
        %v1341 = vld [vmem:[%s4 + $0xb4] sm:$0xf]
        %v1342 = vld [vmem:[%s4 + $0xb8] sm:$0xf]
        %v1343 = vld [vmem:[%s4 + $0xbc] sm:$0xf]
        %v1344 = vld [vmem:[%s4 + $0xc0] sm:$0xf]
        %v1345 = vld [vmem:[%s4 + $0xc4] sm:$0xf]
        %v1346 = vld [vmem:[%s4 + $0xc8] sm:$0xf]
        %v1347 = vld [vmem:[%s4 + $0xcc] sm:$0xf]
        %v1348 = vld [vmem:[%s4 + $0xd0] sm:$0xf]
        %v1349 = vld [vmem:[%s4 + $0xd4] sm:$0xf]
        %v1350 = vld [vmem:[%s4 + $0xd8] sm:$0xf]
        %v1351 = vld [vmem:[%s4 + $0xdc] sm:$0xf]
        %v1352 = vld [vmem:[%s4 + $0xe0] sm:$0xf]
        %v1353 = vld [vmem:[%s4 + $0xe4] sm:$0xf]
        %v1354 = vld [vmem:[%s4 + $0xe8] sm:$0xf]
        %v1355 = vld [vmem:[%s4 + $0xec] sm:$0xf]
        %v1356 = vld [vmem:[%s4 + $0xf0] sm:$0xf]
        %v1357 = vld [vmem:[%s4 + $0xf4] sm:$0xf]
        %v1358 = vld [vmem:[%s4 + $0xf8] sm:$0xf]
        %v1359 = vld [vmem:[%s4 + $0xfc] sm:$0xf]
        %v1360 = vld [vmem:[%s4 + $0x100] sm:$0xf]
        %v1361 = vld [vmem:[%s4 + $0x104] sm:$0xf]
        %v1362 = vld [vmem:[%s4 + $0x108] sm:$0xf]
        %v1363 = vld [vmem:[%s4 + $0x10c] sm:$0xf]
        %v1364 = vld [vmem:[%s4 + $0x110] sm:$0xf]
        %v1365 = vld [vmem:[%s4 + $0x114] sm:$0xf]
        %v1366 = vld [vmem:[%s4 + $0x118] sm:$0xf]
        %v1367 = vld [vmem:[%s4 + $0x11c] sm:$0xf]
        %v1368 = vld [vmem:[%s4 + $0x120] sm:$0xf]
        %v1369 = vld [vmem:[%s4 + $0x124] sm:$0xf]
        %v1370 = vld [vmem:[%s4 + $0x128] sm:$0xf]
        %v1371 = vld [vmem:[%s4 + $0x12c] sm:$0xf]
        %v1372 = vld [vmem:[%s4 + $0x130] sm:$0xf]
        %v1373 = vld [vmem:[%s4 + $0x134] sm:$0xf]
        %v1374 = vld [vmem:[%s4 + $0x138] sm:$0xf]
        %v1375 = vld [vmem:[%s4 + $0x13c] sm:$0xf]
        %v1376 = vld [vmem:[%s4 + $0x140] sm:$0xf]
        %v1377 = vld [vmem:[%s4 + $0x144] sm:$0xf]
        %v1378 = vld [vmem:[%s4 + $0x148] sm:$0xf]
        %v1379 = vld [vmem:[%s4 + $0x14c] sm:$0xf]
        %v1380 = vld [vmem:[%s4 + $0x150] sm:$0xf]
        %v1381 = vld [vmem:[%s4 + $0x154] sm:$0xf]
        %v1382 = vld [vmem:[%s4 + $0x158] sm:$0xf]
        %v1383 = vld [vmem:[%s4 + $0x15c] sm:$0xf]
        %v1384 = vld [vmem:[%s4 + $0x160] sm:$0xf]
        %v1385 = vld [vmem:[%s4 + $0x164] sm:$0xf]
        %v1386 = vld [vmem:[%s4 + $0x168] sm:$0xf]
        %v1387 = vld [vmem:[%s4 + $0x16c] sm:$0xf]
        %v1388 = vld [vmem:[%s4 + $0x170] sm:$0xf]
        %v1389 = vld [vmem:[%s4 + $0x174] sm:$0xf]
        %v1390 = vld [vmem:[%s4 + $0x178] sm:$0xf]
        %v1391 = vld [vmem:[%s4 + $0x17c] sm:$0xf]
        %v1392 = vld [vmem:[%s4 + $0x180] sm:$0xf]
        %v1393 = vld [vmem:[%s4 + $0x184] sm:$0xf]
        %v1394 = vld [vmem:[%s4 + $0x188] sm:$0xf]
        %v1395 = vld [vmem:[%s4 + $0x18c] sm:$0xf]
        %v1396 = vld [vmem:[%s4 + $0x190] sm:$0xf]
        %v1397 = vld [vmem:[%s4 + $0x194] sm:$0xf]
        %v1398 = vld [vmem:[%s4 + $0x198] sm:$0xf]
        %v1399 = vld [vmem:[%s4 + $0x19c] sm:$0xf]
        %v1400 = vld [vmem:[%s4 + $0x1a0] sm:$0xf]
        %v1401 = vld [vmem:[%s4 + $0x1a4] sm:$0xf]
        %v1402 = vld [vmem:[%s4 + $0x1a8] sm:$0xf]
        %v1403 = vld [vmem:[%s4 + $0x1ac] sm:$0xf]
        %v1404 = vld [vmem:[%s4 + $0x1b0] sm:$0xf]
        %v1405 = vld [vmem:[%s4 + $0x1b4] sm:$0xf]
        %v1406 = vld [vmem:[%s4 + $0x1b8] sm:$0xf]
        %v1407 = vld [vmem:[%s4 + $0x1bc] sm:$0xf]
        %v1408 = vld [vmem:[%s4 + $0x1c0] sm:$0xf]
        %v1409 = vld [vmem:[%s4 + $0x1c4] sm:$0xf]
        %v1410 = vld [vmem:[%s4 + $0x1c8] sm:$0xf]
        %v1411 = vld [vmem:[%s4 + $0x1cc] sm:$0xf]
        %v1412 = vld [vmem:[%s4 + $0x1d0] sm:$0xf]
        %v1413 = vld [vmem:[%s4 + $0x1d4] sm:$0xf]
        %v1414 = vld [vmem:[%s4 + $0x1d8] sm:$0xf]
        %v1415 = vld [vmem:[%s4 + $0x1dc] sm:$0xf]
        %v1416 = vld [vmem:[%s4 + $0x1e0] sm:$0xf]
        %v1417 = vld [vmem:[%s4 + $0x1e4] sm:$0xf]
        %v1418 = vld [vmem:[%s4 + $0x1e8] sm:$0xf]
        %v1419 = vld [vmem:[%s4 + $0x1ec] sm:$0xf]
        %v1420 = vld [vmem:[%s4 + $0x1f0] sm:$0xf]
        %v1421 = vld [vmem:[%s4 + $0x1f4] sm:$0xf]
        %v1422 = vld [vmem:[%s4 + $0x1f8] sm:$0xf]
        %v1423 = vld [vmem:[%s4 + $0x1fc] sm:$0xf]
        %v1552 = vunpack.c.l.b16 %v1296
        %v1553 = vunpack.c.l.b16 %v1297
        %v1554 = vunpack.c.l.b16 %v1298
        %v1555 = vunpack.c.l.b16 %v1299
        %v1556 = vunpack.c.l.b16 %v1300
        %v1557 = vunpack.c.l.b16 %v1301
        %v1558 = vunpack.c.l.b16 %v1302
        %v1559 = vunpack.c.l.b16 %v1303
        %v1560 = vunpack.c.l.b16 %v1304
        %v1561 = vunpack.c.l.b16 %v1305
        %v1562 = vunpack.c.l.b16 %v1306
        %v1563 = vunpack.c.l.b16 %v1307
        %v1564 = vunpack.c.l.b16 %v1308
        %v1565 = vunpack.c.l.b16 %v1309
        %v1566 = vunpack.c.l.b16 %v1310
        %v1567 = vunpack.c.l.b16 %v1311
        %v1568 = vunpack.c.l.b16 %v1312
        %v1569 = vunpack.c.l.b16 %v1313
        %v1570 = vunpack.c.l.b16 %v1314
        %v1571 = vunpack.c.l.b16 %v1315
        %v1572 = vunpack.c.l.b16 %v1316
        %v1573 = vunpack.c.l.b16 %v1317
        %v1574 = vunpack.c.l.b16 %v1318
        %v1575 = vunpack.c.l.b16 %v1319
        %v1576 = vunpack.c.l.b16 %v1320
        %v1577 = vunpack.c.l.b16 %v1321
        %v1578 = vunpack.c.l.b16 %v1322
        %v1579 = vunpack.c.l.b16 %v1323
        %v1580 = vunpack.c.l.b16 %v1324
        %v1581 = vunpack.c.l.b16 %v1325
        %v1582 = vunpack.c.l.b16 %v1326
        %v1583 = vunpack.c.l.b16 %v1327
        %v1584 = vunpack.c.l.b16 %v1328
        %v1585 = vunpack.c.l.b16 %v1329
        %v1586 = vunpack.c.l.b16 %v1330
        %v1587 = vunpack.c.l.b16 %v1331
        %v1588 = vunpack.c.l.b16 %v1332
        %v1589 = vunpack.c.l.b16 %v1333
        %v1590 = vunpack.c.l.b16 %v1334
        %v1591 = vunpack.c.l.b16 %v1335
        %v1592 = vunpack.c.l.b16 %v1336
        %v1593 = vunpack.c.l.b16 %v1337
        %v1594 = vunpack.c.l.b16 %v1338
        %v1595 = vunpack.c.l.b16 %v1339
        %v1596 = vunpack.c.l.b16 %v1340
        %v1597 = vunpack.c.l.b16 %v1341
        %v1598 = vunpack.c.l.b16 %v1342
        %v1599 = vunpack.c.l.b16 %v1343
        %v1600 = vunpack.c.l.b16 %v1344
        %v1601 = vunpack.c.l.b16 %v1345
        %v1602 = vunpack.c.l.b16 %v1346
        %v1603 = vunpack.c.l.b16 %v1347
        %v1604 = vunpack.c.l.b16 %v1348
        %v1605 = vunpack.c.l.b16 %v1349
        %v1606 = vunpack.c.l.b16 %v1350
        %v1607 = vunpack.c.l.b16 %v1351
        %v1608 = vunpack.c.l.b16 %v1352
        %v1609 = vunpack.c.l.b16 %v1353
        %v1610 = vunpack.c.l.b16 %v1354
        %v1611 = vunpack.c.l.b16 %v1355
        %v1612 = vunpack.c.l.b16 %v1356
        %v1613 = vunpack.c.l.b16 %v1357
        %v1614 = vunpack.c.l.b16 %v1358
        %v1615 = vunpack.c.l.b16 %v1359
        %v1616 = vunpack.c.l.b16 %v1360
        %v1617 = vunpack.c.l.b16 %v1361
        %v1618 = vunpack.c.l.b16 %v1362
        %v1619 = vunpack.c.l.b16 %v1363
        %v1620 = vunpack.c.l.b16 %v1364
        %v1621 = vunpack.c.l.b16 %v1365
        %v1622 = vunpack.c.l.b16 %v1366
        %v1623 = vunpack.c.l.b16 %v1367
        %v1624 = vunpack.c.l.b16 %v1368
        %v1625 = vunpack.c.l.b16 %v1369
        %v1626 = vunpack.c.l.b16 %v1370
        %v1627 = vunpack.c.l.b16 %v1371
        %v1628 = vunpack.c.l.b16 %v1372
        %v1629 = vunpack.c.l.b16 %v1373
        %v1630 = vunpack.c.l.b16 %v1374
        %v1631 = vunpack.c.l.b16 %v1375
        %v1632 = vunpack.c.l.b16 %v1376
        %v1633 = vunpack.c.l.b16 %v1377
        %v1634 = vunpack.c.l.b16 %v1378
        %v1635 = vunpack.c.l.b16 %v1379
        %v1636 = vunpack.c.l.b16 %v1380
        %v1637 = vunpack.c.l.b16 %v1381
        %v1638 = vunpack.c.l.b16 %v1382
        %v1639 = vunpack.c.l.b16 %v1383
        %v1640 = vunpack.c.l.b16 %v1384
        %v1641 = vunpack.c.l.b16 %v1385
        %v1642 = vunpack.c.l.b16 %v1386
        %v1643 = vunpack.c.l.b16 %v1387
        %v1644 = vunpack.c.l.b16 %v1388
        %v1645 = vunpack.c.l.b16 %v1389
        %v1646 = vunpack.c.l.b16 %v1390
        %v1647 = vunpack.c.l.b16 %v1391
        %v1648 = vunpack.c.l.b16 %v1392
        %v1649 = vunpack.c.l.b16 %v1393
        %v1650 = vunpack.c.l.b16 %v1394
        %v1651 = vunpack.c.l.b16 %v1395
        %v1652 = vunpack.c.l.b16 %v1396
        %v1653 = vunpack.c.l.b16 %v1397
        %v1654 = vunpack.c.l.b16 %v1398
        %v1655 = vunpack.c.l.b16 %v1399
        %v1656 = vunpack.c.l.b16 %v1400
        %v1657 = vunpack.c.l.b16 %v1401
        %v1658 = vunpack.c.l.b16 %v1402
        %v1659 = vunpack.c.l.b16 %v1403
        %v1660 = vunpack.c.l.b16 %v1404
        %v1661 = vunpack.c.l.b16 %v1405
        %v1662 = vunpack.c.l.b16 %v1406
        %v1663 = vunpack.c.l.b16 %v1407
        %v1664 = vunpack.c.l.b16 %v1408
        %v1665 = vunpack.c.l.b16 %v1409
        %v1666 = vunpack.c.l.b16 %v1410
        %v1667 = vunpack.c.l.b16 %v1411
        %v1668 = vunpack.c.l.b16 %v1412
        %v1669 = vunpack.c.l.b16 %v1413
        %v1670 = vunpack.c.l.b16 %v1414
        %v1671 = vunpack.c.l.b16 %v1415
        %v1672 = vunpack.c.l.b16 %v1416
        %v1673 = vunpack.c.l.b16 %v1417
        %v1674 = vunpack.c.l.b16 %v1418
        %v1675 = vunpack.c.l.b16 %v1419
        %v1676 = vunpack.c.l.b16 %v1420
        %v1677 = vunpack.c.l.b16 %v1421
        %v1678 = vunpack.c.l.b16 %v1422
        %v1679 = vunpack.c.l.b16 %v1423
        %v1680 = vpack.c.b16 %v1553, %v1552
        %v1681 = vpack.c.b16 %v1555, %v1554
        %v1682 = vpack.c.b16 %v1557, %v1556
        %v1683 = vpack.c.b16 %v1559, %v1558
        %v1684 = vpack.c.b16 %v1561, %v1560
        %v1685 = vpack.c.b16 %v1563, %v1562
        %v1686 = vpack.c.b16 %v1565, %v1564
        %v1687 = vpack.c.b16 %v1567, %v1566
        %v1688 = vpack.c.b16 %v1569, %v1568
        %v1689 = vpack.c.b16 %v1571, %v1570
        %v1690 = vpack.c.b16 %v1573, %v1572
        %v1691 = vpack.c.b16 %v1575, %v1574
        %v1692 = vpack.c.b16 %v1577, %v1576
        %v1693 = vpack.c.b16 %v1579, %v1578
        %v1694 = vpack.c.b16 %v1581, %v1580
        %v1695 = vpack.c.b16 %v1583, %v1582
        %v1696 = vpack.c.b16 %v1585, %v1584
        %v1697 = vpack.c.b16 %v1587, %v1586
        %v1698 = vpack.c.b16 %v1589, %v1588
        %v1699 = vpack.c.b16 %v1591, %v1590
        %v1700 = vpack.c.b16 %v1593, %v1592
        %v1701 = vpack.c.b16 %v1595, %v1594
        %v1702 = vpack.c.b16 %v1597, %v1596
        %v1703 = vpack.c.b16 %v1599, %v1598
        %v1704 = vpack.c.b16 %v1601, %v1600
        %v1705 = vpack.c.b16 %v1603, %v1602
        %v1706 = vpack.c.b16 %v1605, %v1604
        %v1707 = vpack.c.b16 %v1607, %v1606
        %v1708 = vpack.c.b16 %v1609, %v1608
        %v1709 = vpack.c.b16 %v1611, %v1610
        %v1710 = vpack.c.b16 %v1613, %v1612
        %v1711 = vpack.c.b16 %v1615, %v1614
        %v1712 = vpack.c.b16 %v1617, %v1616
        %v1713 = vpack.c.b16 %v1619, %v1618
        %v1714 = vpack.c.b16 %v1621, %v1620
        %v1715 = vpack.c.b16 %v1623, %v1622
        %v1716 = vpack.c.b16 %v1625, %v1624
        %v1717 = vpack.c.b16 %v1627, %v1626
        %v1718 = vpack.c.b16 %v1629, %v1628
        %v1719 = vpack.c.b16 %v1631, %v1630
        %v1720 = vpack.c.b16 %v1633, %v1632
        %v1721 = vpack.c.b16 %v1635, %v1634
        %v1722 = vpack.c.b16 %v1637, %v1636
        %v1723 = vpack.c.b16 %v1639, %v1638
        %v1724 = vpack.c.b16 %v1641, %v1640
        %v1725 = vpack.c.b16 %v1643, %v1642
        %v1726 = vpack.c.b16 %v1645, %v1644
        %v1727 = vpack.c.b16 %v1647, %v1646
        %v1728 = vpack.c.b16 %v1649, %v1648
        %v1729 = vpack.c.b16 %v1651, %v1650
        %v1730 = vpack.c.b16 %v1653, %v1652
        %v1731 = vpack.c.b16 %v1655, %v1654
        %v1732 = vpack.c.b16 %v1657, %v1656
        %v1733 = vpack.c.b16 %v1659, %v1658
        %v1734 = vpack.c.b16 %v1661, %v1660
        %v1735 = vpack.c.b16 %v1663, %v1662
        %v1736 = vpack.c.b16 %v1665, %v1664
        %v1737 = vpack.c.b16 %v1667, %v1666
        %v1738 = vpack.c.b16 %v1669, %v1668
        %v1739 = vpack.c.b16 %v1671, %v1670
        %v1740 = vpack.c.b16 %v1673, %v1672
        %v1741 = vpack.c.b16 %v1675, %v1674
        %v1742 = vpack.c.b16 %v1677, %v1676
        %v1743 = vpack.c.b16 %v1679, %v1678
        %1808 = vmatprep.subr.bf16.mxu0 0
        %1809 = vmatpush1.bf16.msra.mxu0 %v1687
        %1810 = vmatprep.subr.bf16.mxu0 0
        %1811 = vmatpush1.bf16.msra.mxu0 %v1686
        %1812 = vmatprep.subr.bf16.mxu0 0
        %1813 = vmatpush1.bf16.msra.mxu0 %v1685
        %1814 = vmatprep.subr.bf16.mxu0 0
        %1815 = vmatpush1.bf16.msra.mxu0 %v1684
        %1816 = vmatprep.subr.bf16.mxu0 0
        %1817 = vmatpush1.bf16.msra.mxu0 %v1683
        %1818 = vmatprep.subr.bf16.mxu0 0
        %1819 = vmatpush1.bf16.msra.mxu0 %v1682
        %1820 = vmatprep.subr.bf16.mxu0 0
        %1821 = vmatpush1.bf16.msra.mxu0 %v1681
        %1822 = vmatprep.subr.bf16.mxu0 0
        %1823 = vmatpush1.bf16.msra.mxu0 %v1680
        %1824 = vmatprep.subr.bf16.mxu0 0
        %1825 = vmatpush2.bf16.msra.mxu0 %v1695
        %1826 = vmatprep.subr.bf16.mxu0 0
        %1827 = vmatpush2.bf16.msra.mxu0 %v1694
        %1828 = vmatprep.subr.bf16.mxu0 0
        %1829 = vmatpush2.bf16.msra.mxu0 %v1693
        %1830 = vmatprep.subr.bf16.mxu0 0
        %1831 = vmatpush2.bf16.msra.mxu0 %v1692
        %1832 = vmatprep.subr.bf16.mxu0 0
        %1833 = vmatpush2.bf16.msra.mxu0 %v1691
        %1834 = vmatprep.subr.bf16.mxu0 0
        %1835 = vmatpush2.bf16.msra.mxu0 %v1690
        %1836 = vmatprep.subr.bf16.mxu0 0
        %1837 = vmatpush2.bf16.msra.mxu0 %v1689
        %1838 = vmatprep.subr.bf16.mxu0 0
        %1839 = vmatpush2.bf16.msra.mxu0 %v1688
        %1840 = vmatprep.mubr.bf16.mxu0 %v1289
        %1841 = vmatmul.mubr.bf16.gmra.mxu0 %v1288
        %v1842 = vpop.f32.mrf.mxu0
        %v1843 = vadd.f32 0.0, %v1842
        %v1844 = vpop.f32.mrf.mxu0
        %v1845 = vpop.f32.mrf.mxu0
        %v1846 = vpop.f32.mrf.mxu0
        %1847 = vdwg.mxu0
        %1848 = vmatprep.subr.bf16.mxu0 0
        %1849 = vmatpush1.bf16.msra.mxu0 %v1703
        %1850 = vmatprep.subr.bf16.mxu0 0
        %1851 = vmatpush1.bf16.msra.mxu0 %v1702
        %1852 = vmatprep.subr.bf16.mxu0 0
        %1853 = vmatpush1.bf16.msra.mxu0 %v1701
        %1854 = vmatprep.subr.bf16.mxu0 0
        %1855 = vmatpush1.bf16.msra.mxu0 %v1700
        %1856 = vmatprep.subr.bf16.mxu0 0
        %1857 = vmatpush1.bf16.msra.mxu0 %v1699
        %1858 = vmatprep.subr.bf16.mxu0 0
        %1859 = vmatpush1.bf16.msra.mxu0 %v1698
        %1860 = vmatprep.subr.bf16.mxu0 0
        %1861 = vmatpush1.bf16.msra.mxu0 %v1697
        %1862 = vmatprep.subr.bf16.mxu0 0
        %1863 = vmatpush1.bf16.msra.mxu0 %v1696
        %1864 = vmatprep.subr.bf16.mxu0 0
        %1865 = vmatpush2.bf16.msra.mxu0 %v1711
        %1866 = vmatprep.subr.bf16.mxu0 0
        %1867 = vmatpush2.bf16.msra.mxu0 %v1710
        %1868 = vmatprep.subr.bf16.mxu0 0
        %1869 = vmatpush2.bf16.msra.mxu0 %v1709
        %1870 = vmatprep.subr.bf16.mxu0 0
        %1871 = vmatpush2.bf16.msra.mxu0 %v1708
        %1872 = vmatprep.subr.bf16.mxu0 0
        %1873 = vmatpush2.bf16.msra.mxu0 %v1707
        %1874 = vmatprep.subr.bf16.mxu0 0
        %1875 = vmatpush2.bf16.msra.mxu0 %v1706
        %1876 = vmatprep.subr.bf16.mxu0 0
        %1877 = vmatpush2.bf16.msra.mxu0 %v1705
        %1878 = vmatprep.subr.bf16.mxu0 0
        %1879 = vmatpush2.bf16.msra.mxu0 %v1704
        %1880 = vmatprep.mubr.bf16.mxu0 %v1291
        %1881 = vmatmul.mubr.bf16.gmra.mxu0 %v1290
        %v1882 = vpop.f32.mrf.mxu0
        %v1883 = vadd.f32 %v1843, %v1882
        %v1884 = vpop.f32.mrf.mxu0
        %v1885 = vpop.f32.mrf.mxu0
        %v1886 = vpop.f32.mrf.mxu0
        %1887 = vdwg.mxu0
        %1888 = vmatprep.subr.bf16.mxu0 0
        %1889 = vmatpush1.bf16.msra.mxu0 %v1719
        %1890 = vmatprep.subr.bf16.mxu0 0
        %1891 = vmatpush1.bf16.msra.mxu0 %v1718
        %1892 = vmatprep.subr.bf16.mxu0 0
        %1893 = vmatpush1.bf16.msra.mxu0 %v1717
        %1894 = vmatprep.subr.bf16.mxu0 0
        %1895 = vmatpush1.bf16.msra.mxu0 %v1716
        %1896 = vmatprep.subr.bf16.mxu0 0
        %1897 = vmatpush1.bf16.msra.mxu0 %v1715
        %1898 = vmatprep.subr.bf16.mxu0 0
        %1899 = vmatpush1.bf16.msra.mxu0 %v1714
        %1900 = vmatprep.subr.bf16.mxu0 0
        %1901 = vmatpush1.bf16.msra.mxu0 %v1713
        %1902 = vmatprep.subr.bf16.mxu0 0
        %1903 = vmatpush1.bf16.msra.mxu0 %v1712
        %1904 = vmatprep.subr.bf16.mxu0 0
        %1905 = vmatpush2.bf16.msra.mxu0 %v1727
        %1906 = vmatprep.subr.bf16.mxu0 0
        %1907 = vmatpush2.bf16.msra.mxu0 %v1726
        %1908 = vmatprep.subr.bf16.mxu0 0
        %1909 = vmatpush2.bf16.msra.mxu0 %v1725
        %1910 = vmatprep.subr.bf16.mxu0 0
        %1911 = vmatpush2.bf16.msra.mxu0 %v1724
        %1912 = vmatprep.subr.bf16.mxu0 0
        %1913 = vmatpush2.bf16.msra.mxu0 %v1723
        %1914 = vmatprep.subr.bf16.mxu0 0
        %1915 = vmatpush2.bf16.msra.mxu0 %v1722
        %1916 = vmatprep.subr.bf16.mxu0 0
        %1917 = vmatpush2.bf16.msra.mxu0 %v1721
        %1918 = vmatprep.subr.bf16.mxu0 0
        %1919 = vmatpush2.bf16.msra.mxu0 %v1720
        %1920 = vmatprep.mubr.bf16.mxu0 %v1293
        %1921 = vmatmul.mubr.bf16.gmra.mxu0 %v1292
        %v1922 = vpop.f32.mrf.mxu0
        %v1923 = vadd.f32 %v1883, %v1922
        %v1924 = vpop.f32.mrf.mxu0
        %v1925 = vpop.f32.mrf.mxu0
        %v1926 = vpop.f32.mrf.mxu0
        %1927 = vdwg.mxu0
        %1928 = vmatprep.subr.bf16.mxu0 0
        %1929 = vmatpush1.bf16.msra.mxu0 %v1735
        %1930 = vmatprep.subr.bf16.mxu0 0
        %1931 = vmatpush1.bf16.msra.mxu0 %v1734
        %1932 = vmatprep.subr.bf16.mxu0 0
        %1933 = vmatpush1.bf16.msra.mxu0 %v1733
        %1934 = vmatprep.subr.bf16.mxu0 0
        %1935 = vmatpush1.bf16.msra.mxu0 %v1732
        %1936 = vmatprep.subr.bf16.mxu0 0
        %1937 = vmatpush1.bf16.msra.mxu0 %v1731
        %1938 = vmatprep.subr.bf16.mxu0 0
        %1939 = vmatpush1.bf16.msra.mxu0 %v1730
        %1940 = vmatprep.subr.bf16.mxu0 0
        %1941 = vmatpush1.bf16.msra.mxu0 %v1729
        %1942 = vmatprep.subr.bf16.mxu0 0
        %1943 = vmatpush1.bf16.msra.mxu0 %v1728
        %1944 = vmatprep.subr.bf16.mxu0 0
        %1945 = vmatpush2.bf16.msra.mxu0 %v1743
        %1946 = vmatprep.subr.bf16.mxu0 0
        %1947 = vmatpush2.bf16.msra.mxu0 %v1742
        %1948 = vmatprep.subr.bf16.mxu0 0
        %1949 = vmatpush2.bf16.msra.mxu0 %v1741
        %1950 = vmatprep.subr.bf16.mxu0 0
        %1951 = vmatpush2.bf16.msra.mxu0 %v1740
        %1952 = vmatprep.subr.bf16.mxu0 0
        %1953 = vmatpush2.bf16.msra.mxu0 %v1739
        %1954 = vmatprep.subr.bf16.mxu0 0
        %1955 = vmatpush2.bf16.msra.mxu0 %v1738
        %1956 = vmatprep.subr.bf16.mxu0 0
        %1957 = vmatpush2.bf16.msra.mxu0 %v1737
        %1958 = vmatprep.subr.bf16.mxu0 0
        %1959 = vmatpush2.bf16.msra.mxu0 %v1736
        %1960 = vmatprep.mubr.bf16.mxu0 %v1295
        %1961 = vmatmul.mubr.bf16.gmra.mxu0 %v1294
        %v1962 = vpop.f32.mrf.mxu0
        %v1963 = vadd.f32 %v1923, %v1962
        %v1964 = vpop.f32.mrf.mxu0
        %v1965 = vpop.f32.mrf.mxu0
        %v1966 = vpop.f32.mrf.mxu0
        %1967 = vdwg.mxu0
        %v1968 = vrcp.pop %v1963
        %v1969 = vmul.f32 1.0, %v1968
        %1971 = vrot.lane.b32.xlu0 %v1969, 120
        %v1972 = vpop.permute.xlu0 %1971
        %v1974 = vmul.f32 %v1963, %v1972
        %v1975 = vrot.slane %v1969, 7
        %v1977 = vmul.f32 %v1963, %v1975
        %v1979 = vrot.slane %v1977, 1
        %vm1981 = vcmask 64512
        %v1982 = vsel %vm1981, %v1974, %v1979
        %vm1983 = vcmask 122880
        %1984 = vst.msk [vmem:[%s297] sm:$0x1] %vm1983, %v1982
        %p1985 = scmp.lt.s32.totalorder %s22, 1
        %s1986 = scalar_select %p1985, %s22, 1
        %p1987 = scmp.lt.s32.totalorder %s23, 1
        %s1988 = scalar_select %p1987, %s23, 1
        %s1989 = smul.addr %s1986, 2
        %s1990 = sadd.s32 %s1988, %s1989
        %s1991 = scalar_lea.vmem %s6, %s1990
        // Predicated region
        $region49: #{alg_resnet_forward.1} parent=43 // pred_check
          %p1992 = pneg %p183
        $region50: #{alg_resnet_forward.1} parent=43 // pred_check_branch
          %1994 = sbr.rel (%p1992) target = $region52
        $region51: #{alg_resnet_forward.1} parent=43 // pred_region
          _
        $region52: #{alg_resnet_forward.1} parent=43 // pred_fallthru
          _
      $region44: #{alg_resnet_forward.1} parent=5 // pred_fallthru
        _
      %p1995 = scmp.le.s32.totalorder 2, %s13
      // Predicated region
      $region53: #{alg_resnet_forward.1} parent=5 // pred_check
        %p1996 = pneg %p1995
      $region54: #{alg_resnet_forward.1} parent=5 // pred_check_branch
        %1998 = sbr.rel (%p1996) target = $region56
      $region55: #{alg_resnet_forward.1} parent=5 // pred_region
        %s1999 = ssub.s32 %s13, 2
        // Predicated region
        $region57: #{alg_resnet_forward.1} parent=55 // pred_check
          %p2000 = pneg %p189
        $region58: #{alg_resnet_forward.1} parent=55 // pred_check_branch
          %2002 = sbr.rel (%p2000) target = $region60
        $region59: #{alg_resnet_forward.1} parent=55 // pred_region
          %p2003 = scmp.lt.s32.totalorder %s24, 1
          %s2004 = scalar_select %p2003, %s24, 1
          %p2005 = scmp.lt.s32.totalorder %s25, 1
          %s2006 = scalar_select %p2005, %s25, 1
          %s2007 = smul.addr %s2004, 2
          %s2008 = sadd.s32 %s2006, %s2007
          %s2009 = scalar_lea.vmem %s6, %s2008
        $region60: #{alg_resnet_forward.1} parent=55 // pred_fallthru
          _
      $region56: #{alg_resnet_forward.1} parent=5 // pred_fallthru
        _
    $region6: #{alg_resnet_forward.1} parent=1 // loop_footer
      %s17 = sadd.s32 1, %s13
    $region7: #{alg_resnet_forward.1} parent=1 // loop_footer_branch
      %12 = sbr.rel target = $region3
    $region8: #{alg_resnet_forward.1} parent=1 // loop_exit
      _
    %2010 = vsyncpa [#allocation3], 1
    %s2011 = scalar_lea.sflag [#allocation3], 1
    %2012 = vsyncpa %s2011, 1

// kernel: custom-call.51
$region0: #{custom-call.51}
  %s0 = inlined_call_operand.vmem [shape: f32[2,8,4,4], index: 0, kind: input, shape index: {}]
  %s1 = inlined_call_operand.vmem [shape: f32[2,8,4,4], index: 1, kind: output, shape index: {}]
  $region1: #{custom-call.51} parent=0
    #allocation0 [shape = 'u8[4096]{0}', space=vmem, size = 0x1000, scoped, tag = 'operand span for operand 0']
    #allocation1 [shape = 'u8[4096]{0}', space=vmem, size = 0x1000, scoped, tag = 'packed  for operand 0']
    #allocation2 [shape = 'u8[4096]{0}', space=vmem, size = 0x1000, scoped, tag = 'operand span for operand 1']
    #allocation3 [shape = 'u8[4096]{0}', space=vmem, size = 0x1000, scoped, tag = 'packed  for operand 1']
    loop: start=0, step=1, limit=18
    $region2: #{custom-call.51} parent=1 // loop_pre_header
      _
    $region3: #{custom-call.51} parent=1 // loop_header
      %s3 = sphi 0, %s7
      %p4 = scmp.ge.s32.totalorder %s3, 18
      %s10 = sphi 0, %s36
      %s11 = sphi 0, %s32
      %s12 = sphi 0, %s28
      %s13 = sphi 0, %s24
      %s14 = sphi 0, %s10
      %s15 = sphi 0, %s11
      %s16 = sphi 0, %s12
      %s17 = sphi 0, %s13
      %s18 = sphi 0, %s14
      %s19 = sphi 0, %s15
      %s20 = sphi 0, %s16
      %s21 = sphi 0, %s17
    $region4: #{custom-call.51} parent=1 // loop_header_branch
      %6 = sbr.rel (%p4) target = $region8
    $region5: #{custom-call.51} parent=1 // loop_body
      %s8 = ssub.s32 %s3, 1
      %s9 = ssub.s32 %s3, 2
      %s22 = sadd.s32 1, %s13
      %p23 = scmp.ge.s32.totalorder %s22, 1
      %s24 = scalar_select %p23, 0, %s22
      %s25 = sadd.s32 1, %s12
      %s26 = scalar_select %p23, %s25, %s12
      %p27 = scmp.ge.s32.totalorder %s26, 1
      %s28 = scalar_select %p27, 0, %s26
      %s29 = sadd.s32 1, %s11
      %s30 = scalar_select %p27, %s29, %s11
      %p31 = scmp.ge.s32.totalorder %s30, 8
      %s32 = scalar_select %p31, 0, %s30
      %s33 = sadd.s32 1, %s10
      %s34 = scalar_select %p31, %s33, %s10
      %p35 = scmp.ge.s32.totalorder %s34, 2
      %s36 = scalar_select %p35, 0, %s34
      %p37 = scmp.le.s32.totalorder 1, %s3
      %p38 = scmp.lt.s32.totalorder %s3, 17
      %p39 = pnand %p37, %p38
      %p40 = pneg %p39
      // Predicated region
      $region9: #{custom-call.51} parent=5 // pred_check
        _
      $region10: #{custom-call.51} parent=5 // pred_check_branch
        %42 = sbr.rel (%p39) target = $region12
      $region11: #{custom-call.51} parent=5 // pred_region
        %s43 = ssub.s32 %s3, 1
      $region12: #{custom-call.51} parent=5 // pred_fallthru
        _
      %p44 = scmp.lt.s32.totalorder %s3, 16
      // Predicated region
      $region13: #{custom-call.51} parent=5 // pred_check
        %p45 = pneg %p44
      $region14: #{custom-call.51} parent=5 // pred_check_branch
        %47 = sbr.rel (%p45) target = $region16
      $region15: #{custom-call.51} parent=5 // pred_region
        %s48 = sand.u32 %s3, 1
        %s49 = sand.u32 %s3, 1
        %s50 = smul.addr %s49, 4
        %s51 = scalar_lea.vmem [#allocation1], %s50
        %s52 = sadd.s32 %s13, %s12
        %s53 = sadd.s32 %s52, %s11
        %s54 = smul.addr %s10, 8
        %s55 = sadd.s32 %s53, %s54
        %s56 = smul.addr %s55, 4
        %s57 = scalar_lea.vmem %s0, %s56
        // Predicated region
        $region17: #{custom-call.51} parent=15 // pred_check
          _
        $region18: #{custom-call.51} parent=15 // pred_check_branch
          %59 = sbr.rel (0) target = $region20
        $region19: #{custom-call.51} parent=15 // pred_region
          // Predicated region
          $region21: #{custom-call.51} parent=19 // pred_check
            _
          $region22: #{custom-call.51} parent=19 // pred_check_branch
            %61 = sbr.rel target = $region24
          $region23: #{custom-call.51} parent=19 // pred_region
            // Predicated region
            $region36: #{custom-call.51} parent=23 // pred_check
              _
            $region37: #{custom-call.51} parent=23 // pred_check_branch
              %77 = sbr.rel (0) target = $region39
            $region38: #{custom-call.51} parent=23 // pred_region
              %s79 = ssub.s32 16, 1
              loop: start=0, step=1, limit=1
              $region40: #{custom-call.51} parent=38 // loop_pre_header
                _
              $region41: #{custom-call.51} parent=38 // loop_header
                %s81 = sphi 0, %s85
                %p82 = scmp.ge.s32.totalorder %s81, 1
                %s86 = sphi %s57, %s57
                %s87 = sphi %s51, %s51
              $region42: #{custom-call.51} parent=38 // loop_header_branch
                %84 = sbr.rel (%p82) target = $region46
              $region43: #{custom-call.51} parent=38 // loop_body
                %v88 = vld [vmem:[%s86] sm:%s79]
                %89 = vst [vmem:[%s87] sm:%s79] %v88
              $region44: #{custom-call.51} parent=38 // loop_footer
                %s85 = sadd.s32 1, %s81
              $region45: #{custom-call.51} parent=38 // loop_footer_branch
                %80 = sbr.rel target = $region41
              $region46: #{custom-call.51} parent=38 // loop_exit
                _
            $region39: #{custom-call.51} parent=23 // pred_fallthru
              _
          $region24: #{custom-call.51} parent=19 // pred_fallthru
            _
          // Predicated region
          $region25: #{custom-call.51} parent=19 // pred_check
            _
          $region26: #{custom-call.51} parent=19 // pred_check_branch
            %63 = sbr.rel (0) target = $region28
          $region27: #{custom-call.51} parent=19 // pred_region
            %s65 = ssub.s32 16, 1
            loop: start=0, step=1, limit=1
            $region29: #{custom-call.51} parent=27 // loop_pre_header
              _
            $region30: #{custom-call.51} parent=27 // loop_header
              %s67 = sphi 0, %s71
              %p68 = scmp.ge.s32.totalorder %s67, 1
              %s72 = sphi %s57, %s57
              %s73 = sphi %s51, %s51
            $region31: #{custom-call.51} parent=27 // loop_header_branch
              %70 = sbr.rel (%p68) target = $region35
            $region32: #{custom-call.51} parent=27 // loop_body
              %v74 = vld [vmem:[%s72] sm:%s65]
              %75 = vst [vmem:[%s73] sm:%s65] %v74
            $region33: #{custom-call.51} parent=27 // loop_footer
              %s71 = sadd.s32 1, %s67
            $region34: #{custom-call.51} parent=27 // loop_footer_branch
              %66 = sbr.rel target = $region30
            $region35: #{custom-call.51} parent=27 // loop_exit
              _
          $region28: #{custom-call.51} parent=19 // pred_fallthru
            _
        $region20: #{custom-call.51} parent=15 // pred_fallthru
          _
        %90 = vnop
      $region16: #{custom-call.51} parent=5 // pred_fallthru
        _
      %p91 = scmp.le.s32.totalorder 1, %s3
      %p92 = scmp.lt.s32.totalorder %s3, 17
      %p93 = pnand %p91, %p92
      %p94 = pneg %p93
      // Predicated region
      $region47: #{custom-call.51} parent=5 // pred_check
        _
      $region48: #{custom-call.51} parent=5 // pred_check_branch
        %96 = sbr.rel (%p93) target = $region50
      $region49: #{custom-call.51} parent=5 // pred_region
        %s97 = ssub.s32 %s3, 1
        %s98 = sand.u32 %s8, 1
        %s99 = sand.u32 %s8, 1
        %s100 = smul.addr %s99, 4
        %s101 = scalar_lea.vmem [#allocation1], %s100
        %s102 = sand.u32 %s8, 1
        %s103 = sand.u32 %s8, 1
        %s104 = smul.addr %s103, 4
        %s105 = scalar_lea.vmem [#allocation1], %s104
        %s106 = sand.u32 %s8, 1
        %s107 = sand.u32 %s8, 1
        %s108 = smul.addr %s107, 4
        %s109 = scalar_lea.vmem [#allocation3], %s108
        %s111 = sshll.u32 1, 4
        %s112 = ssub.s32 %s111, 1
        %v113 = vld [vmem:[%s105] sm:%s112]
        %114 = vst [vmem:[#allocation0] sm:%s112] %v113
        %115 = vst [vmem:[#allocation2] sm:$0xff] 0.0
        %vm116 = vcmask 7168
        %v117 = vld [vmem:[#allocation2] ss:$0 sm:$0xff]
        %v118 = vld [vmem:[#allocation0] ss:$0 sm:$0xff]
        %v119 = vmul.f32 %v117, %v117
        %120 = vadd.xlane.f32.xlu0 %v119
        %v121 = vpop.xlane.xlu0 %120
        %v122 = vsub.f32 %v118, %v121
        %v123 = vrsqrt.pop %v122
        %v124 = vld [vmem:[#allocation0] sm:$0xff]
        %v125 = vld [vmem:[#allocation2] sm:$0xff]
        %v126 = vmul.f32 %v125, %v117
        %127 = vadd.xlane.f32.xlu0 %v126
        %v128 = vpop.xlane.xlu0 %127
        %v129 = vsub.f32 %v124, %v128
        %v130 = vmul.f32 %v129, %v123
        %v131 = vsel %vm116, %v130, 0.0
        %v132 = vadd.f32 %v125, %v131
        %133 = vst [vmem:[#allocation2] sm:$0xff] %v132
        %vm134 = vcmask 15368
        %s135 = scalar_lea.vmem [#allocation2], 1
        %v136 = vld [vmem:[%s135] ss:$0 sm:$0xff]
        %s137 = scalar_lea.vmem [#allocation0], 1
        %v138 = vld [vmem:[%s137] ss:$0 sm:$0xff]
        %v139 = vmul.f32 %v136, %v136
        %140 = vadd.xlane.f32.xlu0 %v139
        %v141 = vpop.xlane.xlu0 %140
        %v142 = vsub.f32 %v138, %v141
        %v143 = vrsqrt.pop %v142
        %v144 = vld [vmem:[#allocation0] sm:$0xff]
        %v145 = vld [vmem:[#allocation2] sm:$0xff]
        %v146 = vmul.f32 %v145, %v136
        %147 = vadd.xlane.f32.xlu0 %v146
        %v148 = vpop.xlane.xlu0 %147
        %v149 = vsub.f32 %v144, %v148
        %v150 = vmul.f32 %v149, %v143
        %vm151 = vcmask 1047553
        %vm152 = vmand %vm134, %vm151
        %v153 = vsel %vm152, %v150, 0.0
        %v154 = vadd.f32 %v145, %v153
        %155 = vst [vmem:[#allocation2] sm:$0xff] %v154
        %vm156 = vcmask 23568
        %s157 = scalar_lea.vmem [#allocation2], 2
        %v158 = vld [vmem:[%s157] ss:$0 sm:$0xff]
        %s159 = scalar_lea.vmem [#allocation0], 2
        %v160 = vld [vmem:[%s159] ss:$0 sm:$0xff]
        %v161 = vmul.f32 %v158, %v158
        %162 = vadd.xlane.f32.xlu0 %v161
        %v163 = vpop.xlane.xlu0 %162
        %v164 = vsub.f32 %v160, %v163
        %v165 = vrsqrt.pop %v164
        %v166 = vld [vmem:[#allocation0] sm:$0xff]
        %v167 = vld [vmem:[#allocation2] sm:$0xff]
        %v168 = vmul.f32 %v167, %v158
        %169 = vadd.xlane.f32.xlu0 %v168
        %v170 = vpop.xlane.xlu0 %169
        %v171 = vsub.f32 %v166, %v170
        %v172 = vmul.f32 %v171, %v165
        %vm173 = vcmask 1047554
        %vm174 = vmand %vm156, %vm173
        %v175 = vsel %vm174, %v172, 0.0
        %v176 = vadd.f32 %v167, %v175
        %177 = vst [vmem:[#allocation2] sm:$0xff] %v176
        %vm178 = vcmask 31768
        %s179 = scalar_lea.vmem [#allocation2], 3
        %v180 = vld [vmem:[%s179] ss:$0 sm:$0xff]
        %s181 = scalar_lea.vmem [#allocation0], 3
        %v182 = vld [vmem:[%s181] ss:$0 sm:$0xff]
        %v183 = vmul.f32 %v180, %v180
        %184 = vadd.xlane.f32.xlu0 %v183
        %v185 = vpop.xlane.xlu0 %184
        %v186 = vsub.f32 %v182, %v185
        %v187 = vrsqrt.pop %v186
        %v188 = vld [vmem:[#allocation0] sm:$0xff]
        %v189 = vld [vmem:[#allocation2] sm:$0xff]
        %v190 = vmul.f32 %v189, %v180
        %191 = vadd.xlane.f32.xlu0 %v190
        %v192 = vpop.xlane.xlu0 %191
        %v193 = vsub.f32 %v188, %v192
        %v194 = vmul.f32 %v193, %v187
        %vm195 = vcmask 1047555
        %vm196 = vmand %vm178, %vm195
        %v197 = vsel %vm196, %v194, 0.0
        %v198 = vadd.f32 %v189, %v197
        %199 = vst [vmem:[#allocation2] sm:$0xff] %v198
        %s201 = sshll.u32 1, 4
        %s202 = ssub.s32 %s201, 1
        %v204 = vld [vmem:[#allocation2] sm:%s202]
        %s205 = sshll.u32 1, 4
        %s206 = ssub.s32 %s205, 1
        %207 = vst [vmem:[%s109] sm:%s206] %v204
        %s208 = sand.u32 %s8, 1
        %s209 = sand.u32 %s8, 1
        %s210 = smul.addr %s209, 4
        %s211 = scalar_lea.vmem [#allocation3], %s210
        %s212 = sadd.s32 %s17, %s16
        %s213 = sadd.s32 %s212, %s15
        %s214 = smul.addr %s14, 8
        %s215 = sadd.s32 %s213, %s214
        %s216 = smul.addr %s215, 4
        %s217 = scalar_lea.vmem %s1, %s216
        // Predicated region
        $region51: #{custom-call.51} parent=49 // pred_check
          _
        $region52: #{custom-call.51} parent=49 // pred_check_branch
          %219 = sbr.rel (0) target = $region54
        $region53: #{custom-call.51} parent=49 // pred_region
          // Predicated region
          $region55: #{custom-call.51} parent=53 // pred_check
            _
          $region56: #{custom-call.51} parent=53 // pred_check_branch
            %221 = sbr.rel target = $region58
          $region57: #{custom-call.51} parent=53 // pred_region
            // Predicated region
            $region70: #{custom-call.51} parent=57 // pred_check
              _
            $region71: #{custom-call.51} parent=57 // pred_check_branch
              %237 = sbr.rel (0) target = $region73
            $region72: #{custom-call.51} parent=57 // pred_region
              %s239 = ssub.s32 16, 1
              loop: start=0, step=1, limit=1
              $region74: #{custom-call.51} parent=72 // loop_pre_header
                _
              $region75: #{custom-call.51} parent=72 // loop_header
                %s241 = sphi 0, %s245
                %p242 = scmp.ge.s32.totalorder %s241, 1
                %s246 = sphi %s211, %s211
                %s247 = sphi %s217, %s217
              $region76: #{custom-call.51} parent=72 // loop_header_branch
                %244 = sbr.rel (%p242) target = $region80
              $region77: #{custom-call.51} parent=72 // loop_body
                %v248 = vld [vmem:[%s246] sm:%s239]
                %249 = vst [vmem:[%s247] sm:%s239] %v248
              $region78: #{custom-call.51} parent=72 // loop_footer
                %s245 = sadd.s32 1, %s241
              $region79: #{custom-call.51} parent=72 // loop_footer_branch
                %240 = sbr.rel target = $region75
              $region80: #{custom-call.51} parent=72 // loop_exit
                _
            $region73: #{custom-call.51} parent=57 // pred_fallthru
              _
          $region58: #{custom-call.51} parent=53 // pred_fallthru
            _
          // Predicated region
          $region59: #{custom-call.51} parent=53 // pred_check
            _
          $region60: #{custom-call.51} parent=53 // pred_check_branch
            %223 = sbr.rel (0) target = $region62
          $region61: #{custom-call.51} parent=53 // pred_region
            %s225 = ssub.s32 16, 1
            loop: start=0, step=1, limit=1
            $region63: #{custom-call.51} parent=61 // loop_pre_header
              _
            $region64: #{custom-call.51} parent=61 // loop_header
              %s227 = sphi 0, %s231
              %p228 = scmp.ge.s32.totalorder %s227, 1
              %s232 = sphi %s211, %s211
              %s233 = sphi %s217, %s217
            $region65: #{custom-call.51} parent=61 // loop_header_branch
              %230 = sbr.rel (%p228) target = $region69
            $region66: #{custom-call.51} parent=61 // loop_body
              %v234 = vld [vmem:[%s232] sm:%s225]
              %235 = vst [vmem:[%s233] sm:%s225] %v234
            $region67: #{custom-call.51} parent=61 // loop_footer
              %s231 = sadd.s32 1, %s227
            $region68: #{custom-call.51} parent=61 // loop_footer_branch
              %226 = sbr.rel target = $region64
            $region69: #{custom-call.51} parent=61 // loop_exit
              _
          $region62: #{custom-call.51} parent=53 // pred_fallthru
            _
        $region54: #{custom-call.51} parent=49 // pred_fallthru
          _
        %250 = vnop
      $region50: #{custom-call.51} parent=5 // pred_fallthru
        _
      %p251 = scmp.le.s32.totalorder 2, %s3
      // Predicated region
      $region81: #{custom-call.51} parent=5 // pred_check
        %p252 = pneg %p251
      $region82: #{custom-call.51} parent=5 // pred_check_branch
        %254 = sbr.rel (%p252) target = $region84
      $region83: #{custom-call.51} parent=5 // pred_region
        %s255 = ssub.s32 %s3, 2
        %s256 = sand.u32 %s9, 1
        %s257 = sand.u32 %s9, 1
        %s258 = smul.addr %s257, 4
        %s259 = scalar_lea.vmem [#allocation3], %s258
      $region84: #{custom-call.51} parent=5 // pred_fallthru
        _
    $region6: #{custom-call.51} parent=1 // loop_footer
      %s7 = sadd.s32 1, %s3
    $region7: #{custom-call.51} parent=1 // loop_footer_branch
      %2 = sbr.rel target = $region3
    $region8: #{custom-call.51} parent=1 // loop_exit
      _

// kernel: custom-call.52
$region0: #{custom-call.52}
  %s0 = inlined_call_operand.vmem [shape: f32[2,8,1,4,4], index: 0, kind: input, shape index: {}]
  %s1 = inlined_call_operand.vmem [shape: f32[2,8,1,4,4], index: 1, kind: output, shape index: {}]
  $region1: #{custom-call.52} parent=0
    #allocation0 [shape = 'u8[4096]{0}', space=vmem, size = 0x1000, scoped, tag = 'operand span for operand 0']
    #allocation1 [shape = 'u8[4096]{0}', space=vmem, size = 0x1000, scoped, tag = 'packed  for operand 0']
    #allocation2 [shape = 'u8[4096]{0}', space=vmem, size = 0x1000, scoped, tag = 'operand span for operand 1']
    #allocation3 [shape = 'u8[4096]{0}', space=vmem, size = 0x1000, scoped, tag = 'packed  for operand 1']
    loop: start=0, step=1, limit=18
    $region2: #{custom-call.52} parent=1 // loop_pre_header
      _
    $region3: #{custom-call.52} parent=1 // loop_header
      %s3 = sphi 0, %s7
      %p4 = scmp.ge.s32.totalorder %s3, 18
      %s10 = sphi 0, %s43
      %s11 = sphi 0, %s39
      %s12 = sphi 0, %s35
      %s13 = sphi 0, %s31
      %s14 = sphi 0, %s27
      %s15 = sphi 0, %s10
      %s16 = sphi 0, %s11
      %s17 = sphi 0, %s12
      %s18 = sphi 0, %s13
      %s19 = sphi 0, %s14
      %s20 = sphi 0, %s15
      %s21 = sphi 0, %s16
      %s22 = sphi 0, %s17
      %s23 = sphi 0, %s18
      %s24 = sphi 0, %s19
    $region4: #{custom-call.52} parent=1 // loop_header_branch
      %6 = sbr.rel (%p4) target = $region8
    $region5: #{custom-call.52} parent=1 // loop_body
      %s8 = ssub.s32 %s3, 1
      %s9 = ssub.s32 %s3, 2
      %s25 = sadd.s32 1, %s14
      %p26 = scmp.ge.s32.totalorder %s25, 1
      %s27 = scalar_select %p26, 0, %s25
      %s28 = sadd.s32 1, %s13
      %s29 = scalar_select %p26, %s28, %s13
      %p30 = scmp.ge.s32.totalorder %s29, 1
      %s31 = scalar_select %p30, 0, %s29
      %s32 = sadd.s32 1, %s12
      %s33 = scalar_select %p30, %s32, %s12
      %p34 = scmp.ge.s32.totalorder %s33, 1
      %s35 = scalar_select %p34, 0, %s33
      %s36 = sadd.s32 1, %s11
      %s37 = scalar_select %p34, %s36, %s11
      %p38 = scmp.ge.s32.totalorder %s37, 8
      %s39 = scalar_select %p38, 0, %s37
      %s40 = sadd.s32 1, %s10
      %s41 = scalar_select %p38, %s40, %s10
      %p42 = scmp.ge.s32.totalorder %s41, 2
      %s43 = scalar_select %p42, 0, %s41
      %p44 = scmp.le.s32.totalorder 1, %s3
      %p45 = scmp.lt.s32.totalorder %s3, 17
      %p46 = pnand %p44, %p45
      %p47 = pneg %p46
      // Predicated region
      $region9: #{custom-call.52} parent=5 // pred_check
        _
      $region10: #{custom-call.52} parent=5 // pred_check_branch
        %49 = sbr.rel (%p46) target = $region12
      $region11: #{custom-call.52} parent=5 // pred_region
        %s50 = ssub.s32 %s3, 1
      $region12: #{custom-call.52} parent=5 // pred_fallthru
        _
      %p51 = scmp.lt.s32.totalorder %s3, 16
      // Predicated region
      $region13: #{custom-call.52} parent=5 // pred_check
        %p52 = pneg %p51
      $region14: #{custom-call.52} parent=5 // pred_check_branch
        %54 = sbr.rel (%p52) target = $region16
      $region15: #{custom-call.52} parent=5 // pred_region
        %s55 = sand.u32 %s3, 1
        %s56 = sand.u32 %s3, 1
        %s57 = smul.addr %s56, 4
        %s58 = scalar_lea.vmem [#allocation1], %s57
        %s59 = sadd.s32 %s14, %s13
        %s60 = sadd.s32 %s59, %s12
        %s61 = sadd.s32 %s60, %s11
        %s62 = smul.addr %s10, 8
        %s63 = sadd.s32 %s61, %s62
        %s64 = smul.addr %s63, 4
        %s65 = scalar_lea.vmem %s0, %s64
        // Predicated region
        $region17: #{custom-call.52} parent=15 // pred_check
          _
        $region18: #{custom-call.52} parent=15 // pred_check_branch
          %67 = sbr.rel (0) target = $region20
        $region19: #{custom-call.52} parent=15 // pred_region
          // Predicated region
          $region21: #{custom-call.52} parent=19 // pred_check
            _
          $region22: #{custom-call.52} parent=19 // pred_check_branch
            %69 = sbr.rel target = $region24
          $region23: #{custom-call.52} parent=19 // pred_region
            // Predicated region
            $region36: #{custom-call.52} parent=23 // pred_check
              _
            $region37: #{custom-call.52} parent=23 // pred_check_branch
              %85 = sbr.rel (0) target = $region39
            $region38: #{custom-call.52} parent=23 // pred_region
              %s87 = ssub.s32 16, 1
              loop: start=0, step=1, limit=1
              $region40: #{custom-call.52} parent=38 // loop_pre_header
                _
              $region41: #{custom-call.52} parent=38 // loop_header
                %s89 = sphi 0, %s93
                %p90 = scmp.ge.s32.totalorder %s89, 1
                %s94 = sphi %s65, %s65
                %s95 = sphi %s58, %s58
              $region42: #{custom-call.52} parent=38 // loop_header_branch
                %92 = sbr.rel (%p90) target = $region46
              $region43: #{custom-call.52} parent=38 // loop_body
                %v96 = vld [vmem:[%s94] sm:%s87]
                %97 = vst [vmem:[%s95] sm:%s87] %v96
              $region44: #{custom-call.52} parent=38 // loop_footer
                %s93 = sadd.s32 1, %s89
              $region45: #{custom-call.52} parent=38 // loop_footer_branch
                %88 = sbr.rel target = $region41
              $region46: #{custom-call.52} parent=38 // loop_exit
                _
            $region39: #{custom-call.52} parent=23 // pred_fallthru
              _
          $region24: #{custom-call.52} parent=19 // pred_fallthru
            _
          // Predicated region
          $region25: #{custom-call.52} parent=19 // pred_check
            _
          $region26: #{custom-call.52} parent=19 // pred_check_branch
            %71 = sbr.rel (0) target = $region28
          $region27: #{custom-call.52} parent=19 // pred_region
            %s73 = ssub.s32 16, 1
            loop: start=0, step=1, limit=1
            $region29: #{custom-call.52} parent=27 // loop_pre_header
              _
            $region30: #{custom-call.52} parent=27 // loop_header
              %s75 = sphi 0, %s79
              %p76 = scmp.ge.s32.totalorder %s75, 1
              %s80 = sphi %s65, %s65
              %s81 = sphi %s58, %s58
            $region31: #{custom-call.52} parent=27 // loop_header_branch
              %78 = sbr.rel (%p76) target = $region35
            $region32: #{custom-call.52} parent=27 // loop_body
              %v82 = vld [vmem:[%s80] sm:%s73]
              %83 = vst [vmem:[%s81] sm:%s73] %v82
            $region33: #{custom-call.52} parent=27 // loop_footer
              %s79 = sadd.s32 1, %s75
            $region34: #{custom-call.52} parent=27 // loop_footer_branch
              %74 = sbr.rel target = $region30
            $region35: #{custom-call.52} parent=27 // loop_exit
              _
          $region28: #{custom-call.52} parent=19 // pred_fallthru
            _
        $region20: #{custom-call.52} parent=15 // pred_fallthru
          _
        %98 = vnop
      $region16: #{custom-call.52} parent=5 // pred_fallthru
        _
      %p99 = scmp.le.s32.totalorder 1, %s3
      %p100 = scmp.lt.s32.totalorder %s3, 17
      %p101 = pnand %p99, %p100
      %p102 = pneg %p101
      // Predicated region
      $region47: #{custom-call.52} parent=5 // pred_check
        _
      $region48: #{custom-call.52} parent=5 // pred_check_branch
        %104 = sbr.rel (%p101) target = $region50
      $region49: #{custom-call.52} parent=5 // pred_region
        #allocation4 [shape = 'f32[4,4]{1,0}', space=vmem, size = 0x1000, scoped, tag = 'rescaled input a']
        %s105 = ssub.s32 %s3, 1
        %s106 = sand.u32 %s8, 1
        %s107 = sand.u32 %s8, 1
        %s108 = smul.addr %s107, 4
        %s109 = scalar_lea.vmem [#allocation1], %s108
        %s110 = sand.u32 %s8, 1
        %s111 = sand.u32 %s8, 1
        %s112 = smul.addr %s111, 4
        %s113 = scalar_lea.vmem [#allocation1], %s112
        %s114 = sand.u32 %s8, 1
        %s115 = sand.u32 %s8, 1
        %s116 = smul.addr %s115, 4
        %s117 = scalar_lea.vmem [#allocation3], %s116
        %s119 = sshll.u32 1, 4
        %s120 = ssub.s32 %s119, 1
        %v121 = vld [vmem:[%s113] sm:%s120]
        %122 = vst [vmem:[#allocation0] sm:%s120] %v121
        %v123 = vlaneseq
        %v124 = vand.u32 %v123, 127
        %vm125 = vcmp.lt.s32.totalorder %v124, 4
        %v126 = vlaneseq
        %v127 = vshrl.u32 %v126, 7
        %vm129 = vcmp.eq.s32.totalorder %v127, %v124
        %v130 = vld [vmem:[#allocation0] sm:$0xff]
        %v131 = vsel %vm129, %v130, 0.0
        %132 = vadd.xlane.f32.xlu0 %v131
        %v133 = vpop.xlane.xlu0 %132
        %vm134 = vcmp.ge.s32.totalorder %v127, %v124
        %vm135 = vmand %vm134, %vm125
        %v136 = vsel %vm135, %v130, 0.0
        %v137 = vrcp.pop %v133
        %v138 = vmul.f32 %v136, %v137
        %139 = vst [vmem:[#allocation4] sm:$0xff] %v138
        %v140 = vlaneseq
        %v141 = vand.u32 %v140, 127
        %v142 = vlaneseq
        %v143 = vshrl.u32 %v142, 7
        %vm145 = vcmp.eq.s32.totalorder %v141, %v143
        %v146 = vlaneseq
        %v147 = vand.u32 %v146, 127
        %vm148 = vcmp.eq.s32.totalorder %v147, 0
        %v149 = vsel %vm148, 1.0, -1.0
        %v150 = vsel %vm145, %v149, 0.0
        %s151 = scalar_lea.vmem [#allocation4], 1
        %v152 = vld [vmem:[%s151] ss:$0 sm:$0xff]
        %v153 = vxor.u32 %v152, 2147483648
        %v154 = vlaneseq
        %v155 = vand.u32 %v154, 127
        %vm156 = vcmp.eq.s32.totalorder %v155, 1
        %v157 = vmul.f32 %v153, %v150
        %158 = vadd.xlane.f32.xlu0 %v157
        %v159 = vpop.xlane.xlu0 %158
        %v160 = vsel %vm156, %v159, %v150
        %s161 = scalar_lea.vmem [#allocation4], 2
        %v162 = vld [vmem:[%s161] ss:$0 sm:$0xff]
        %v163 = vxor.u32 %v162, 2147483648
        %v164 = vlaneseq
        %v165 = vand.u32 %v164, 127
        %vm166 = vcmp.eq.s32.totalorder %v165, 2
        %v167 = vmul.f32 %v163, %v160
        %168 = vadd.xlane.f32.xlu0 %v167
        %v169 = vpop.xlane.xlu0 %168
        %v170 = vsel %vm166, %v169, %v160
        %s171 = scalar_lea.vmem [#allocation4], 3
        %v172 = vld [vmem:[%s171] ss:$0 sm:$0xff]
        %v173 = vxor.u32 %v172, 2147483648
        %v174 = vlaneseq
        %v175 = vand.u32 %v174, 127
        %vm176 = vcmp.eq.s32.totalorder %v175, 3
        %v177 = vmul.f32 %v173, %v170
        %178 = vadd.xlane.f32.xlu0 %v177
        %v179 = vpop.xlane.xlu0 %178
        %v180 = vsel %vm176, %v179, %v170
        %v181 = vrcp.pop %v133
        %v182 = vmul.f32 %v180, %v181
        %vm183 = vweird.f32 %v133
        %v184 = vsel %vm183, %v180, %v182
        %185 = vst [vmem:[#allocation2] sm:$0xff] %v184
        %s187 = sshll.u32 1, 4
        %s188 = ssub.s32 %s187, 1
        %v190 = vld [vmem:[#allocation2] sm:%s188]
        %s191 = sshll.u32 1, 4
        %s192 = ssub.s32 %s191, 1
        %193 = vst [vmem:[%s117] sm:%s192] %v190
        %s194 = sand.u32 %s8, 1
        %s195 = sand.u32 %s8, 1
        %s196 = smul.addr %s195, 4
        %s197 = scalar_lea.vmem [#allocation3], %s196
        %s198 = sadd.s32 %s19, %s18
        %s199 = sadd.s32 %s198, %s17
        %s200 = sadd.s32 %s199, %s16
        %s201 = smul.addr %s15, 8
        %s202 = sadd.s32 %s200, %s201
        %s203 = smul.addr %s202, 4
        %s204 = scalar_lea.vmem %s1, %s203
        // Predicated region
        $region51: #{custom-call.52} parent=49 // pred_check
          _
        $region52: #{custom-call.52} parent=49 // pred_check_branch
          %206 = sbr.rel (0) target = $region54
        $region53: #{custom-call.52} parent=49 // pred_region
          // Predicated region
          $region55: #{custom-call.52} parent=53 // pred_check
            _
          $region56: #{custom-call.52} parent=53 // pred_check_branch
            %208 = sbr.rel target = $region58
          $region57: #{custom-call.52} parent=53 // pred_region
            // Predicated region
            $region70: #{custom-call.52} parent=57 // pred_check
              _
            $region71: #{custom-call.52} parent=57 // pred_check_branch
              %224 = sbr.rel (0) target = $region73
            $region72: #{custom-call.52} parent=57 // pred_region
              %s226 = ssub.s32 16, 1
              loop: start=0, step=1, limit=1
              $region74: #{custom-call.52} parent=72 // loop_pre_header
                _
              $region75: #{custom-call.52} parent=72 // loop_header
                %s228 = sphi 0, %s232
                %p229 = scmp.ge.s32.totalorder %s228, 1
                %s233 = sphi %s197, %s197
                %s234 = sphi %s204, %s204
              $region76: #{custom-call.52} parent=72 // loop_header_branch
                %231 = sbr.rel (%p229) target = $region80
              $region77: #{custom-call.52} parent=72 // loop_body
                %v235 = vld [vmem:[%s233] sm:%s226]
                %236 = vst [vmem:[%s234] sm:%s226] %v235
              $region78: #{custom-call.52} parent=72 // loop_footer
                %s232 = sadd.s32 1, %s228
              $region79: #{custom-call.52} parent=72 // loop_footer_branch
                %227 = sbr.rel target = $region75
              $region80: #{custom-call.52} parent=72 // loop_exit
                _
            $region73: #{custom-call.52} parent=57 // pred_fallthru
              _
          $region58: #{custom-call.52} parent=53 // pred_fallthru
            _
          // Predicated region
          $region59: #{custom-call.52} parent=53 // pred_check
            _
          $region60: #{custom-call.52} parent=53 // pred_check_branch
            %210 = sbr.rel (0) target = $region62
          $region61: #{custom-call.52} parent=53 // pred_region
            %s212 = ssub.s32 16, 1
            loop: start=0, step=1, limit=1
            $region63: #{custom-call.52} parent=61 // loop_pre_header
              _
            $region64: #{custom-call.52} parent=61 // loop_header
              %s214 = sphi 0, %s218
              %p215 = scmp.ge.s32.totalorder %s214, 1
              %s219 = sphi %s197, %s197
              %s220 = sphi %s204, %s204
            $region65: #{custom-call.52} parent=61 // loop_header_branch
              %217 = sbr.rel (%p215) target = $region69
            $region66: #{custom-call.52} parent=61 // loop_body
              %v221 = vld [vmem:[%s219] sm:%s212]
              %222 = vst [vmem:[%s220] sm:%s212] %v221
            $region67: #{custom-call.52} parent=61 // loop_footer
              %s218 = sadd.s32 1, %s214
            $region68: #{custom-call.52} parent=61 // loop_footer_branch
              %213 = sbr.rel target = $region64
            $region69: #{custom-call.52} parent=61 // loop_exit
              _
          $region62: #{custom-call.52} parent=53 // pred_fallthru
            _
        $region54: #{custom-call.52} parent=49 // pred_fallthru
          _
        %237 = vnop
      $region50: #{custom-call.52} parent=5 // pred_fallthru
        _
      %p238 = scmp.le.s32.totalorder 2, %s3
      // Predicated region
      $region81: #{custom-call.52} parent=5 // pred_check
        %p239 = pneg %p238
      $region82: #{custom-call.52} parent=5 // pred_check_branch
        %241 = sbr.rel (%p239) target = $region84
      $region83: #{custom-call.52} parent=5 // pred_region
        %s242 = ssub.s32 %s3, 2
        %s243 = sand.u32 %s9, 1
        %s244 = sand.u32 %s9, 1
        %s245 = smul.addr %s244, 4
        %s246 = scalar_lea.vmem [#allocation3], %s245
      $region84: #{custom-call.52} parent=5 // pred_fallthru
        _
    $region6: #{custom-call.52} parent=1 // loop_footer
      %s7 = sadd.s32 1, %s3
    $region7: #{custom-call.52} parent=1 // loop_footer_branch
      %2 = sbr.rel target = $region3
    $region8: #{custom-call.52} parent=1 // loop_exit
      _

// kernel: custom-call.22
$region0: #{custom-call.22}
  %s0 = inlined_call_operand.vmem [shape: f32[2,8,2,2], index: 0, kind: input, shape index: {}]
  %s1 = inlined_call_operand.vmem [shape: f32[2,8,2,2], index: 1, kind: input, shape index: {}]
  %s2 = inlined_call_operand.vmem [shape: f32[2,8,2,2], index: 2, kind: input, shape index: {}]
  %s3 = inlined_call_operand.vmem [shape: f32[2,8,2,2], index: 3, kind: input, shape index: {}]
  %s4 = inlined_call_operand.vmem [shape: f32[2,8,2], index: 4, kind: output, shape index: {0}]
  %s5 = inlined_call_operand.vmem [shape: f32[2,8,2], index: 5, kind: output, shape index: {1}]
  %s6 = inlined_call_operand.vmem [shape: f32[2,8,2,2], index: 6, kind: output, shape index: {2}]
  %s7 = inlined_call_operand.vmem [shape: f32[2,8,2,2], index: 7, kind: output, shape index: {3}]
  %s8 = inlined_call_operand.vmem [shape: f32[2,8,2,2], index: 8, kind: output, shape index: {4}]
  %s9 = inlined_call_operand.vmem [shape: f32[2,8,2,2], index: 9, kind: output, shape index: {5}]
  %10 = xla_tuple %s4, %s5, %s6, %s7, %s8, %s9
  $region1: #{custom-call.22} parent=0
    #allocation0 [shape = 'u8[4096]{0}', space=vmem, size = 0x1000, scoped, tag = 'operand span for operand 0']
    #allocation1 [shape = 'u8[2048]{0}', space=vmem, size = 0x800, scoped, tag = 'packed  for operand 0']
    #allocation2 [shape = 'u8[4096]{0}', space=vmem, size = 0x1000, scoped, tag = 'operand span for operand 1']
    #allocation3 [shape = 'u8[2048]{0}', space=vmem, size = 0x800, scoped, tag = 'packed  for operand 1']
    #allocation4 [shape = 'u8[4096]{0}', space=vmem, size = 0x1000, scoped, tag = 'operand span for operand 2']
    #allocation5 [shape = 'u8[2048]{0}', space=vmem, size = 0x800, scoped, tag = 'packed  for operand 2']
    #allocation6 [shape = 'u8[4096]{0}', space=vmem, size = 0x1000, scoped, tag = 'operand span for operand 3']
    #allocation7 [shape = 'u8[2048]{0}', space=vmem, size = 0x800, scoped, tag = 'packed  for operand 3']
    #allocation8 [shape = 'u8[8192]{0}', space=vmem, size = 0x2000, scoped, tag = 'operand span for operand 4']
    #allocation9 [shape = 'u8[8192]{0}', space=vmem, size = 0x2000, scoped, tag = 'operand span for operand 5']
    #allocation10 [shape = 'u8[4096]{0}', space=vmem, size = 0x1000, scoped, tag = 'operand span for operand 6']
    #allocation11 [shape = 'u8[2048]{0}', space=vmem, size = 0x800, scoped, tag = 'packed  for operand 6']
    #allocation12 [shape = 'u8[4096]{0}', space=vmem, size = 0x1000, scoped, tag = 'operand span for operand 7']
    #allocation13 [shape = 'u8[2048]{0}', space=vmem, size = 0x800, scoped, tag = 'packed  for operand 7']
    #allocation14 [shape = 'u8[4096]{0}', space=vmem, size = 0x1000, scoped, tag = 'operand span for operand 8']
    #allocation15 [shape = 'u8[2048]{0}', space=vmem, size = 0x800, scoped, tag = 'packed  for operand 8']
    #allocation16 [shape = 'u8[4096]{0}', space=vmem, size = 0x1000, scoped, tag = 'operand span for operand 9']
    #allocation17 [shape = 'u8[2048]{0}', space=vmem, size = 0x800, scoped, tag = 'packed  for operand 9']
    loop: start=0, step=1, limit=18
    $region2: #{custom-call.22} parent=1 // loop_pre_header
      _
    $region3: #{custom-call.22} parent=1 // loop_header
      %s12 = sphi 0, %s16
      %p13 = scmp.ge.s32.totalorder %s12, 18
      %s19 = sphi 0, %s31
      %s20 = sphi 0, %s27
      %s21 = sphi 0, %s19
      %s22 = sphi 0, %s20
      %s23 = sphi 0, %s21
      %s24 = sphi 0, %s22
      %s38 = sphi 0, %s40
      %s41 = sphi 0, %s38
      %s42 = sphi 0, %s41
      %s58 = sphi 0, %s42
      %s68 = sphi 0, %s70
      %s71 = sphi 0, %s68
      %s72 = sphi 0, %s71
      %s88 = sphi 0, %s72
    $region4: #{custom-call.22} parent=1 // loop_header_branch
      %15 = sbr.rel (%p13) target = $region8
    $region5: #{custom-call.22} parent=1 // loop_body
      %s17 = ssub.s32 %s12, 1
      %s18 = ssub.s32 %s12, 2
      %s25 = sadd.s32 1, %s20
      %p26 = scmp.ge.s32.totalorder %s25, 8
      %s27 = scalar_select %p26, 0, %s25
      %s28 = sadd.s32 1, %s19
      %s29 = scalar_select %p26, %s28, %s19
      %p30 = scmp.ge.s32.totalorder %s29, 2
      %s31 = scalar_select %p30, 0, %s29
      %s32 = sshrl.u32 %s20, 3
      %s33 = sshrl.u32 %s27, 3
      %s34 = ssub.s32 %s19, %s31
      %s35 = ssub.s32 %s32, %s33
      %s36 = sor.u32 %s34, %s35
      %p37 = scmp.eq.s32.totalorder %s36, 0
      %s39 = sadd.s32 %s38, 1
      %s40 = scalar_select %p37, %s38, %s39
      %p43 = pneg %p37
      %p44 = scmp.eq.s32.totalorder %s12, 15
      %p45 = por %p43, %p44
      %p46 = scmp.ne.s32.totalorder %s38, %s41
      %p47 = scmp.eq.s32.totalorder %s12, 0
      %p48 = por %p46, %p47
      %p49 = scmp.ne.s32.totalorder %s38, %s41
      %p50 = scmp.eq.s32.totalorder %s17, 15
      %p51 = por %p49, %p50
      %p52 = scmp.ne.s32.totalorder %s41, %s42
      %p53 = scmp.eq.s32.totalorder %s17, 0
      %p54 = por %p52, %p53
      %p55 = scmp.ne.s32.totalorder %s41, %s42
      %p56 = scmp.eq.s32.totalorder %s18, 15
      %p57 = por %p55, %p56
      %p59 = scmp.ne.s32.totalorder %s42, %s58
      %p60 = scmp.eq.s32.totalorder %s18, 0
      %p61 = por %p59, %p60
      %s62 = sshrl.u32 %s20, 3
      %s63 = sshrl.u32 %s27, 3
      %s64 = ssub.s32 %s19, %s31
      %s65 = ssub.s32 %s62, %s63
      %s66 = sor.u32 %s64, %s65
      %p67 = scmp.eq.s32.totalorder %s66, 0
      %s69 = sadd.s32 %s68, 1
      %s70 = scalar_select %p67, %s68, %s69
      %p73 = pneg %p67
      %p74 = scmp.eq.s32.totalorder %s12, 15
      %p75 = por %p73, %p74
      %p76 = scmp.ne.s32.totalorder %s68, %s71
      %p77 = scmp.eq.s32.totalorder %s12, 0
      %p78 = por %p76, %p77
      %p79 = scmp.ne.s32.totalorder %s68, %s71
      %p80 = scmp.eq.s32.totalorder %s17, 15
      %p81 = por %p79, %p80
      %p82 = scmp.ne.s32.totalorder %s71, %s72
      %p83 = scmp.eq.s32.totalorder %s17, 0
      %p84 = por %p82, %p83
      %p85 = scmp.ne.s32.totalorder %s71, %s72
      %p86 = scmp.eq.s32.totalorder %s18, 15
      %p87 = por %p85, %p86
      %p89 = scmp.ne.s32.totalorder %s72, %s88
      %p90 = scmp.eq.s32.totalorder %s18, 0
      %p91 = por %p89, %p90
      %p92 = scmp.le.s32.totalorder 1, %s12
      %p93 = scmp.lt.s32.totalorder %s12, 17
      %p94 = pnand %p92, %p93
      %p95 = pneg %p94
      // Predicated region
      $region9: #{custom-call.22} parent=5 // pred_check
        _
      $region10: #{custom-call.22} parent=5 // pred_check_branch
        %97 = sbr.rel (%p94) target = $region12
      $region11: #{custom-call.22} parent=5 // pred_region
        %s98 = ssub.s32 %s12, 1
      $region12: #{custom-call.22} parent=5 // pred_fallthru
        _
      %p99 = scmp.lt.s32.totalorder %s12, 16
      // Predicated region
      $region13: #{custom-call.22} parent=5 // pred_check
        %p100 = pneg %p99
      $region14: #{custom-call.22} parent=5 // pred_check_branch
        %102 = sbr.rel (%p100) target = $region16
      $region15: #{custom-call.22} parent=5 // pred_region
        %s103 = sand.u32 %s12, 1
        %s104 = sand.u32 %s12, 1
        %s105 = smul.addr %s104, 2
        %s106 = scalar_lea.vmem [#allocation1], %s105
        %s107 = smul.addr %s19, 8
        %s108 = sadd.s32 %s20, %s107
        %s109 = smul.addr %s108, 2
        %s110 = scalar_lea.vmem %s0, %s109
        // Predicated region
        $region17: #{custom-call.22} parent=15 // pred_check
          _
        $region18: #{custom-call.22} parent=15 // pred_check_branch
          %112 = sbr.rel (0) target = $region20
        $region19: #{custom-call.22} parent=15 // pred_region
          // Predicated region
          $region21: #{custom-call.22} parent=19 // pred_check
            _
          $region22: #{custom-call.22} parent=19 // pred_check_branch
            %114 = sbr.rel target = $region24
          $region23: #{custom-call.22} parent=19 // pred_region
            // Predicated region
            $region36: #{custom-call.22} parent=23 // pred_check
              _
            $region37: #{custom-call.22} parent=23 // pred_check_branch
              %130 = sbr.rel (0) target = $region39
            $region38: #{custom-call.22} parent=23 // pred_region
              %s132 = ssub.s32 4, 1
              loop: start=0, step=1, limit=1
              $region40: #{custom-call.22} parent=38 // loop_pre_header
                _
              $region41: #{custom-call.22} parent=38 // loop_header
                %s134 = sphi 0, %s138
                %p135 = scmp.ge.s32.totalorder %s134, 1
                %s139 = sphi %s110, %s110
                %s140 = sphi %s106, %s106
              $region42: #{custom-call.22} parent=38 // loop_header_branch
                %137 = sbr.rel (%p135) target = $region46
              $region43: #{custom-call.22} parent=38 // loop_body
                %v141 = vld [vmem:[%s139] sm:%s132]
                %142 = vst [vmem:[%s140] sm:%s132] %v141
              $region44: #{custom-call.22} parent=38 // loop_footer
                %s138 = sadd.s32 1, %s134
              $region45: #{custom-call.22} parent=38 // loop_footer_branch
                %133 = sbr.rel target = $region41
              $region46: #{custom-call.22} parent=38 // loop_exit
                _
            $region39: #{custom-call.22} parent=23 // pred_fallthru
              _
          $region24: #{custom-call.22} parent=19 // pred_fallthru
            _
          // Predicated region
          $region25: #{custom-call.22} parent=19 // pred_check
            _
          $region26: #{custom-call.22} parent=19 // pred_check_branch
            %116 = sbr.rel (0) target = $region28
          $region27: #{custom-call.22} parent=19 // pred_region
            %s118 = ssub.s32 4, 1
            loop: start=0, step=1, limit=1
            $region29: #{custom-call.22} parent=27 // loop_pre_header
              _
            $region30: #{custom-call.22} parent=27 // loop_header
              %s120 = sphi 0, %s124
              %p121 = scmp.ge.s32.totalorder %s120, 1
              %s125 = sphi %s110, %s110
              %s126 = sphi %s106, %s106
            $region31: #{custom-call.22} parent=27 // loop_header_branch
              %123 = sbr.rel (%p121) target = $region35
            $region32: #{custom-call.22} parent=27 // loop_body
              %v127 = vld [vmem:[%s125] sm:%s118]
              %128 = vst [vmem:[%s126] sm:%s118] %v127
            $region33: #{custom-call.22} parent=27 // loop_footer
              %s124 = sadd.s32 1, %s120
            $region34: #{custom-call.22} parent=27 // loop_footer_branch
              %119 = sbr.rel target = $region30
            $region35: #{custom-call.22} parent=27 // loop_exit
              _
          $region28: #{custom-call.22} parent=19 // pred_fallthru
            _
        $region20: #{custom-call.22} parent=15 // pred_fallthru
          _
        %143 = vnop
        %s144 = sand.u32 %s12, 1
        %s145 = sand.u32 %s12, 1
        %s146 = smul.addr %s145, 2
        %s147 = scalar_lea.vmem [#allocation3], %s146
        %s148 = smul.addr %s19, 8
        %s149 = sadd.s32 %s20, %s148
        %s150 = smul.addr %s149, 2
        %s151 = scalar_lea.vmem %s1, %s150
        // Predicated region
        $region47: #{custom-call.22} parent=15 // pred_check
          _
        $region48: #{custom-call.22} parent=15 // pred_check_branch
          %153 = sbr.rel (0) target = $region50
        $region49: #{custom-call.22} parent=15 // pred_region
          // Predicated region
          $region51: #{custom-call.22} parent=49 // pred_check
            _
          $region52: #{custom-call.22} parent=49 // pred_check_branch
            %155 = sbr.rel target = $region54
          $region53: #{custom-call.22} parent=49 // pred_region
            // Predicated region
            $region66: #{custom-call.22} parent=53 // pred_check
              _
            $region67: #{custom-call.22} parent=53 // pred_check_branch
              %171 = sbr.rel (0) target = $region69
            $region68: #{custom-call.22} parent=53 // pred_region
              %s173 = ssub.s32 4, 1
              loop: start=0, step=1, limit=1
              $region70: #{custom-call.22} parent=68 // loop_pre_header
                _
              $region71: #{custom-call.22} parent=68 // loop_header
                %s175 = sphi 0, %s179
                %p176 = scmp.ge.s32.totalorder %s175, 1
                %s180 = sphi %s151, %s151
                %s181 = sphi %s147, %s147
              $region72: #{custom-call.22} parent=68 // loop_header_branch
                %178 = sbr.rel (%p176) target = $region76
              $region73: #{custom-call.22} parent=68 // loop_body
                %v182 = vld [vmem:[%s180] sm:%s173]
                %183 = vst [vmem:[%s181] sm:%s173] %v182
              $region74: #{custom-call.22} parent=68 // loop_footer
                %s179 = sadd.s32 1, %s175
              $region75: #{custom-call.22} parent=68 // loop_footer_branch
                %174 = sbr.rel target = $region71
              $region76: #{custom-call.22} parent=68 // loop_exit
                _
            $region69: #{custom-call.22} parent=53 // pred_fallthru
              _
          $region54: #{custom-call.22} parent=49 // pred_fallthru
            _
          // Predicated region
          $region55: #{custom-call.22} parent=49 // pred_check
            _
          $region56: #{custom-call.22} parent=49 // pred_check_branch
            %157 = sbr.rel (0) target = $region58
          $region57: #{custom-call.22} parent=49 // pred_region
            %s159 = ssub.s32 4, 1
            loop: start=0, step=1, limit=1
            $region59: #{custom-call.22} parent=57 // loop_pre_header
              _
            $region60: #{custom-call.22} parent=57 // loop_header
              %s161 = sphi 0, %s165
              %p162 = scmp.ge.s32.totalorder %s161, 1
              %s166 = sphi %s151, %s151
              %s167 = sphi %s147, %s147
            $region61: #{custom-call.22} parent=57 // loop_header_branch
              %164 = sbr.rel (%p162) target = $region65
            $region62: #{custom-call.22} parent=57 // loop_body
              %v168 = vld [vmem:[%s166] sm:%s159]
              %169 = vst [vmem:[%s167] sm:%s159] %v168
            $region63: #{custom-call.22} parent=57 // loop_footer
              %s165 = sadd.s32 1, %s161
            $region64: #{custom-call.22} parent=57 // loop_footer_branch
              %160 = sbr.rel target = $region60
            $region65: #{custom-call.22} parent=57 // loop_exit
              _
          $region58: #{custom-call.22} parent=49 // pred_fallthru
            _
        $region50: #{custom-call.22} parent=15 // pred_fallthru
          _
        %184 = vnop
        %s185 = sand.u32 %s12, 1
        %s186 = sand.u32 %s12, 1
        %s187 = smul.addr %s186, 2
        %s188 = scalar_lea.vmem [#allocation5], %s187
        %s189 = smul.addr %s19, 8
        %s190 = sadd.s32 %s20, %s189
        %s191 = smul.addr %s190, 2
        %s192 = scalar_lea.vmem %s2, %s191
        // Predicated region
        $region77: #{custom-call.22} parent=15 // pred_check
          _
        $region78: #{custom-call.22} parent=15 // pred_check_branch
          %194 = sbr.rel (0) target = $region80
        $region79: #{custom-call.22} parent=15 // pred_region
          // Predicated region
          $region81: #{custom-call.22} parent=79 // pred_check
            _
          $region82: #{custom-call.22} parent=79 // pred_check_branch
            %196 = sbr.rel target = $region84
          $region83: #{custom-call.22} parent=79 // pred_region
            // Predicated region
            $region96: #{custom-call.22} parent=83 // pred_check
              _
            $region97: #{custom-call.22} parent=83 // pred_check_branch
              %212 = sbr.rel (0) target = $region99
            $region98: #{custom-call.22} parent=83 // pred_region
              %s214 = ssub.s32 4, 1
              loop: start=0, step=1, limit=1
              $region100: #{custom-call.22} parent=98 // loop_pre_header
                _
              $region101: #{custom-call.22} parent=98 // loop_header
                %s216 = sphi 0, %s220
                %p217 = scmp.ge.s32.totalorder %s216, 1
                %s221 = sphi %s192, %s192
                %s222 = sphi %s188, %s188
              $region102: #{custom-call.22} parent=98 // loop_header_branch
                %219 = sbr.rel (%p217) target = $region106
              $region103: #{custom-call.22} parent=98 // loop_body
                %v223 = vld [vmem:[%s221] sm:%s214]
                %224 = vst [vmem:[%s222] sm:%s214] %v223
              $region104: #{custom-call.22} parent=98 // loop_footer
                %s220 = sadd.s32 1, %s216
              $region105: #{custom-call.22} parent=98 // loop_footer_branch
                %215 = sbr.rel target = $region101
              $region106: #{custom-call.22} parent=98 // loop_exit
                _
            $region99: #{custom-call.22} parent=83 // pred_fallthru
              _
          $region84: #{custom-call.22} parent=79 // pred_fallthru
            _
          // Predicated region
          $region85: #{custom-call.22} parent=79 // pred_check
            _
          $region86: #{custom-call.22} parent=79 // pred_check_branch
            %198 = sbr.rel (0) target = $region88
          $region87: #{custom-call.22} parent=79 // pred_region
            %s200 = ssub.s32 4, 1
            loop: start=0, step=1, limit=1
            $region89: #{custom-call.22} parent=87 // loop_pre_header
              _
            $region90: #{custom-call.22} parent=87 // loop_header
              %s202 = sphi 0, %s206
              %p203 = scmp.ge.s32.totalorder %s202, 1
              %s207 = sphi %s192, %s192
              %s208 = sphi %s188, %s188
            $region91: #{custom-call.22} parent=87 // loop_header_branch
              %205 = sbr.rel (%p203) target = $region95
            $region92: #{custom-call.22} parent=87 // loop_body
              %v209 = vld [vmem:[%s207] sm:%s200]
              %210 = vst [vmem:[%s208] sm:%s200] %v209
            $region93: #{custom-call.22} parent=87 // loop_footer
              %s206 = sadd.s32 1, %s202
            $region94: #{custom-call.22} parent=87 // loop_footer_branch
              %201 = sbr.rel target = $region90
            $region95: #{custom-call.22} parent=87 // loop_exit
              _
          $region88: #{custom-call.22} parent=79 // pred_fallthru
            _
        $region80: #{custom-call.22} parent=15 // pred_fallthru
          _
        %225 = vnop
        %s226 = sand.u32 %s12, 1
        %s227 = sand.u32 %s12, 1
        %s228 = smul.addr %s227, 2
        %s229 = scalar_lea.vmem [#allocation7], %s228
        %s230 = smul.addr %s19, 8
        %s231 = sadd.s32 %s20, %s230
        %s232 = smul.addr %s231, 2
        %s233 = scalar_lea.vmem %s3, %s232
        // Predicated region
        $region107: #{custom-call.22} parent=15 // pred_check
          _
        $region108: #{custom-call.22} parent=15 // pred_check_branch
          %235 = sbr.rel (0) target = $region110
        $region109: #{custom-call.22} parent=15 // pred_region
          // Predicated region
          $region111: #{custom-call.22} parent=109 // pred_check
            _
          $region112: #{custom-call.22} parent=109 // pred_check_branch
            %237 = sbr.rel target = $region114
          $region113: #{custom-call.22} parent=109 // pred_region
            // Predicated region
            $region126: #{custom-call.22} parent=113 // pred_check
              _
            $region127: #{custom-call.22} parent=113 // pred_check_branch
              %253 = sbr.rel (0) target = $region129
            $region128: #{custom-call.22} parent=113 // pred_region
              %s255 = ssub.s32 4, 1
              loop: start=0, step=1, limit=1
              $region130: #{custom-call.22} parent=128 // loop_pre_header
                _
              $region131: #{custom-call.22} parent=128 // loop_header
                %s257 = sphi 0, %s261
                %p258 = scmp.ge.s32.totalorder %s257, 1
                %s262 = sphi %s233, %s233
                %s263 = sphi %s229, %s229
              $region132: #{custom-call.22} parent=128 // loop_header_branch
                %260 = sbr.rel (%p258) target = $region136
              $region133: #{custom-call.22} parent=128 // loop_body
                %v264 = vld [vmem:[%s262] sm:%s255]
                %265 = vst [vmem:[%s263] sm:%s255] %v264
              $region134: #{custom-call.22} parent=128 // loop_footer
                %s261 = sadd.s32 1, %s257
              $region135: #{custom-call.22} parent=128 // loop_footer_branch
                %256 = sbr.rel target = $region131
              $region136: #{custom-call.22} parent=128 // loop_exit
                _
            $region129: #{custom-call.22} parent=113 // pred_fallthru
              _
          $region114: #{custom-call.22} parent=109 // pred_fallthru
            _
          // Predicated region
          $region115: #{custom-call.22} parent=109 // pred_check
            _
          $region116: #{custom-call.22} parent=109 // pred_check_branch
            %239 = sbr.rel (0) target = $region118
          $region117: #{custom-call.22} parent=109 // pred_region
            %s241 = ssub.s32 4, 1
            loop: start=0, step=1, limit=1
            $region119: #{custom-call.22} parent=117 // loop_pre_header
              _
            $region120: #{custom-call.22} parent=117 // loop_header
              %s243 = sphi 0, %s247
              %p244 = scmp.ge.s32.totalorder %s243, 1
              %s248 = sphi %s233, %s233
              %s249 = sphi %s229, %s229
            $region121: #{custom-call.22} parent=117 // loop_header_branch
              %246 = sbr.rel (%p244) target = $region125
            $region122: #{custom-call.22} parent=117 // loop_body
              %v250 = vld [vmem:[%s248] sm:%s241]
              %251 = vst [vmem:[%s249] sm:%s241] %v250
            $region123: #{custom-call.22} parent=117 // loop_footer
              %s247 = sadd.s32 1, %s243
            $region124: #{custom-call.22} parent=117 // loop_footer_branch
              %242 = sbr.rel target = $region120
            $region125: #{custom-call.22} parent=117 // loop_exit
              _
          $region118: #{custom-call.22} parent=109 // pred_fallthru
            _
        $region110: #{custom-call.22} parent=15 // pred_fallthru
          _
        %266 = vnop
      $region16: #{custom-call.22} parent=5 // pred_fallthru
        _
      %p267 = scmp.le.s32.totalorder 1, %s12
      %p268 = scmp.lt.s32.totalorder %s12, 17
      %p269 = pnand %p267, %p268
      %p270 = pneg %p269
      // Predicated region
      $region137: #{custom-call.22} parent=5 // pred_check
        _
      $region138: #{custom-call.22} parent=5 // pred_check_branch
        %272 = sbr.rel (%p269) target = $region140
      $region139: #{custom-call.22} parent=5 // pred_region
        #allocation18 [shape = 'f32[2,2]{1,0}', space=vmem, size = 0x1000, scoped, tag = 'a top-left matrix']
        #allocation19 [shape = 'f32[2,2]{1,0}', space=vmem, size = 0x1000, scoped, tag = 'a top-right matrix']
        #allocation20 [shape = 'f32[2,2]{1,0}', space=vmem, size = 0x1000, scoped, tag = 'a bottom-left matrix']
        #allocation21 [shape = 'f32[2,2]{1,0}', space=vmem, size = 0x1000, scoped, tag = 'a bottom-right matrix']
        %s273 = ssub.s32 %s12, 1
        %s274 = sand.u32 %s17, 1
        %s275 = sand.u32 %s17, 1
        %s276 = smul.addr %s275, 2
        %s277 = scalar_lea.vmem [#allocation1], %s276
        %s278 = sand.u32 %s17, 1
        %s279 = sand.u32 %s17, 1
        %s280 = smul.addr %s279, 2
        %s281 = scalar_lea.vmem [#allocation3], %s280
        %s282 = sand.u32 %s17, 1
        %s283 = sand.u32 %s17, 1
        %s284 = smul.addr %s283, 2
        %s285 = scalar_lea.vmem [#allocation5], %s284
        %s286 = sand.u32 %s17, 1
        %s287 = sand.u32 %s17, 1
        %s288 = smul.addr %s287, 2
        %s289 = scalar_lea.vmem [#allocation7], %s288
        %s290 = sand.u32 %s17, 1
        %s291 = sand.u32 %s17, 1
        %s292 = smul.addr %s291, 2
        %s293 = scalar_lea.vmem [#allocation1], %s292
        %s294 = sand.u32 %s17, 1
        %s295 = sand.u32 %s17, 1
        %s296 = smul.addr %s295, 2
        %s297 = scalar_lea.vmem [#allocation3], %s296
        %s298 = sand.u32 %s17, 1
        %s299 = sand.u32 %s17, 1
        %s300 = smul.addr %s299, 2
        %s301 = scalar_lea.vmem [#allocation5], %s300
        %s302 = sand.u32 %s17, 1
        %s303 = sand.u32 %s17, 1
        %s304 = smul.addr %s303, 2
        %s305 = scalar_lea.vmem [#allocation7], %s304
        %p306 = pneg %p54
        %p307 = pneg %p51
        %s308 = sand.u32 %s41, 1
        %s309 = sand.u32 %s41, 1
        %s310 = smul.addr %s309, 8
        %s311 = scalar_lea.vmem [#allocation8], %s310
        %p312 = pneg %p84
        %p313 = pneg %p81
        %s314 = sand.u32 %s71, 1
        %s315 = sand.u32 %s71, 1
        %s316 = smul.addr %s315, 8
        %s317 = scalar_lea.vmem [#allocation9], %s316
        %s318 = sand.u32 %s17, 1
        %s319 = sand.u32 %s17, 1
        %s320 = smul.addr %s319, 2
        %s321 = scalar_lea.vmem [#allocation11], %s320
        %s322 = sand.u32 %s17, 1
        %s323 = sand.u32 %s17, 1
        %s324 = smul.addr %s323, 2
        %s325 = scalar_lea.vmem [#allocation13], %s324
        %s326 = sand.u32 %s17, 1
        %s327 = sand.u32 %s17, 1
        %s328 = smul.addr %s327, 2
        %s329 = scalar_lea.vmem [#allocation15], %s328
        %s330 = sand.u32 %s17, 1
        %s331 = sand.u32 %s17, 1
        %s332 = smul.addr %s331, 2
        %s333 = scalar_lea.vmem [#allocation17], %s332
        %s335 = sshll.u32 1, 2
        %s336 = ssub.s32 %s335, 1
        %v337 = vld [vmem:[%s293] sm:%s336]
        %338 = vst [vmem:[#allocation0] sm:%s336] %v337
        %s340 = sshll.u32 1, 2
        %s341 = ssub.s32 %s340, 1
        %v342 = vld [vmem:[%s297] sm:%s341]
        %343 = vst [vmem:[#allocation2] sm:%s341] %v342
        %s345 = sshll.u32 1, 2
        %s346 = ssub.s32 %s345, 1
        %v347 = vld [vmem:[%s301] sm:%s346]
        %348 = vst [vmem:[#allocation4] sm:%s346] %v347
        %s350 = sshll.u32 1, 2
        %s351 = ssub.s32 %s350, 1
        %v352 = vld [vmem:[%s305] sm:%s351]
        %353 = vst [vmem:[#allocation6] sm:%s351] %v352
        %s354 = sshrl.u32 %s22, 3
        %s355 = sshrl.u32 %s22, 3
        %s356 = smov [#allocation18]
        %v357 = vld [vmem:[#allocation0] sm:$0xff]
        %358 = vst [vmem:[%s356] sm:$0xff] %v357
        %s359 = smov [#allocation19]
        %v360 = vld [vmem:[#allocation2] sm:$0xff]
        %361 = vst [vmem:[%s359] sm:$0xff] %v360
        %s362 = smov [#allocation20]
        %v363 = vld [vmem:[#allocation4] sm:$0xff]
        %364 = vst [vmem:[%s362] sm:$0xff] %v363
        %s365 = smov [#allocation21]
        %v366 = vld [vmem:[#allocation6] sm:$0xff]
        %367 = vst [vmem:[%s365] sm:$0xff] %v366
        %368 = vst [vmem:[#allocation10] sm:$0xff] 0.0
        %369 = vst [vmem:[#allocation12] sm:$0xff] 0.0
        %370 = vst [vmem:[#allocation14] sm:$0xff] 0.0
        %371 = vst [vmem:[#allocation16] sm:$0xff] 0.0
        %s372 = smov [#allocation10]
        %v373 = vlaneseq
        %v374 = vand.u32 %v373, 127
        %v375 = vmov %v374
        %v376 = vlaneseq
        %v377 = vshrl.u32 %v376, 7
        %v378 = vmov %v377
        %v379 = vld [vmem:[%s372] sm:$0x3]
        %vm382 = vcmp.eq.s32.totalorder %v378, %v375
        %v383 = vsel %vm382, 1.0, %v379
        %384 = vst [vmem:[%s372] sm:$0x3] %v383
        %s385 = smov [#allocation16]
        %v386 = vlaneseq
        %v387 = vand.u32 %v386, 127
        %v388 = vmov %v387
        %v389 = vlaneseq
        %v390 = vshrl.u32 %v389, 7
        %v391 = vmov %v390
        %v392 = vld [vmem:[%s385] sm:$0x3]
        %vm395 = vcmp.eq.s32.totalorder %v391, %v388
        %v396 = vsel %vm395, 1.0, %v392
        %397 = vst [vmem:[%s385] sm:$0x3] %v396
        // While loop
        $region141: #{custom-call.22} parent=139 // loop_pre_header
          _
        $region142: #{custom-call.22} parent=139 // loop_header
          %s399 = sphi 0, %s941
          %v400 = vlaneseq
          %v401 = vand.u32 %v400, 127
          %v402 = vmov %v401
          %v403 = vlaneseq
          %v404 = vshrl.u32 %v403, 7
          %v405 = vmov %v404
          %s406 = smov [#allocation18]
          %v407 = vlaneseq
          %v408 = vand.u32 %v407, 127
          %vm409 = vcmp.ge.s32.totalorder %v408, 0
          %vm410 = vcmp.lt.s32.totalorder %v408, 2
          %vm411 = vmand %vm409, %vm410
          %v412 = vld [vmem:[%s406] sm:$0x3]
          %v413 = vsel %vm411, %v412, 0.0
          %v414 = vmul.f32 %v413, %v413
          %vm417 = vcmp.eq.s32.totalorder %v405, %v402
          %v418 = vsel %vm417, 0.0, %v414
          %v419 = vlaneseq
          %v420 = vand.u32 %v419, 127
          %v421 = vmov %v420
          %v422 = vlaneseq
          %v423 = vshrl.u32 %v422, 7
          %v424 = vmov %v423
          %s425 = smov [#allocation19]
          %v426 = vlaneseq
          %v427 = vand.u32 %v426, 127
          %vm428 = vcmp.ge.s32.totalorder %v427, 0
          %vm429 = vcmp.lt.s32.totalorder %v427, 2
          %vm430 = vmand %vm428, %vm429
          %v431 = vld [vmem:[%s425] sm:$0x3]
          %v432 = vsel %vm430, %v431, 0.0
          %v433 = vmul.f32 %v432, %v432
          %v434 = vadd.f32 %v418, %v433
          %v435 = vadd.f32 %v414, %v433
          %v436 = vlaneseq
          %v437 = vand.u32 %v436, 127
          %v438 = vmov %v437
          %v439 = vlaneseq
          %v440 = vshrl.u32 %v439, 7
          %v441 = vmov %v440
          %s442 = smov [#allocation20]
          %v443 = vlaneseq
          %v444 = vand.u32 %v443, 127
          %vm445 = vcmp.ge.s32.totalorder %v444, 0
          %vm446 = vcmp.lt.s32.totalorder %v444, 2
          %vm447 = vmand %vm445, %vm446
          %v448 = vld [vmem:[%s442] sm:$0x3]
          %v449 = vsel %vm447, %v448, 0.0
          %v450 = vmul.f32 %v449, %v449
          %v451 = vadd.f32 %v434, %v450
          %v452 = vadd.f32 %v435, %v450
          %v453 = vlaneseq
          %v454 = vand.u32 %v453, 127
          %v455 = vmov %v454
          %v456 = vlaneseq
          %v457 = vshrl.u32 %v456, 7
          %v458 = vmov %v457
          %s459 = smov [#allocation21]
          %v460 = vlaneseq
          %v461 = vand.u32 %v460, 127
          %vm462 = vcmp.ge.s32.totalorder %v461, 0
          %vm463 = vcmp.lt.s32.totalorder %v461, 2
          %vm464 = vmand %vm462, %vm463
          %v465 = vld [vmem:[%s459] sm:$0x3]
          %v466 = vsel %vm464, %v465, 0.0
          %v467 = vmul.f32 %v466, %v466
          %vm470 = vcmp.eq.s32.totalorder %v458, %v455
          %v471 = vsel %vm470, 0.0, %v467
          %v472 = vadd.f32 %v451, %v471
          %v473 = vadd.f32 %v452, %v467
          %474 = vadd.xlane.f32.xlu0 %v473
          %v475 = vpop.xlane.xlu0 %474
          %v476 = vrot.slane %v475, 4
          %v477 = vadd.f32 %v475, %v476
          %v478 = vrot.slane %v477, 2
          %v479 = vadd.f32 %v477, %v478
          %v480 = vrot.slane %v479, 1
          %v481 = vadd.f32 %v479, %v480
          %482 = vadd.xlane.f32.xlu0 %v472
          %v483 = vpop.xlane.xlu0 %482
          %v484 = vrot.slane %v483, 4
          %v485 = vadd.f32 %v483, %v484
          %v486 = vrot.slane %v485, 2
          %v487 = vadd.f32 %v485, %v486
          %v488 = vrot.slane %v487, 1
          %v489 = vadd.f32 %v487, %v488
          %s490 = vtos %v489
          %s491 = vtos %v481
          %s492 = smul.f32 1e-10, %s491
          %p493 = scmp.le.f32.partialorder %s490, %s492
          %p494 = scmp.ge.s32.totalorder %s399, 15
          %p495 = por %p493, %p494
        $region143: #{custom-call.22} parent=139 // loop_header_branch
          %943 = sbr.rel (%p495) target = $region147
        $region144: #{custom-call.22} parent=139 // loop_body
          loop: start=0, step=1, limit=3
          $region148: #{custom-call.22} parent=144 // loop_pre_header
            _
          $region149: #{custom-call.22} parent=144 // loop_header
            %s497 = sphi 0, %s501
            %p498 = scmp.ge.s32.totalorder %s497, 3
          $region150: #{custom-call.22} parent=144 // loop_header_branch
            %500 = sbr.rel (%p498) target = $region154
          $region151: #{custom-call.22} parent=144 // loop_body
            #allocation22 [shape = 'f32[1024]{0}', space=vmem, size = 0x1000, scoped, tag = 'a_tl_diag vmem']
            #allocation23 [shape = 'f32[1024]{0}', space=vmem, size = 0x1000, scoped, tag = 'a_tr_diag vmem']
            #allocation24 [shape = 'f32[1024]{0}', space=vmem, size = 0x1000, scoped, tag = 'a_br_diag vmem']
            #allocation25 [shape = 'f32[1024]{0}', space=vmem, size = 0x1000, scoped, tag = 'rt1 vmem']
            #allocation26 [shape = 'f32[1024]{0}', space=vmem, size = 0x1000, scoped, tag = 'rt2 vmem']
            #allocation27 [shape = 'f32[1024]{0}', space=vmem, size = 0x1000, scoped, tag = 'c vmem']
            #allocation28 [shape = 'f32[1024]{0}', space=vmem, size = 0x1000, scoped, tag = 's vmem']
            #allocation29 [shape = 'f32[4096]{0}', space=vmem, size = 0x4000, scoped, tag = 'c broadcast']
            #allocation30 [shape = 'f32[4096]{0}', space=vmem, size = 0x4000, scoped, tag = 's broadcast']
            %s502 = smov [#allocation18]
            %s503 = smov [#allocation22]
            %v504 = vlaneseq
            %v505 = vand.u32 %v504, 127
            %v506 = vmov %v505
            %v507 = vlaneseq
            %v508 = vshrl.u32 %v507, 7
            %v509 = vmov %v508
            %v510 = vld [vmem:[%s502] sm:$0x3]
            %vm513 = vcmp.eq.s32.totalorder %v509, %v506
            %v514 = vsel %vm513, %v510, 0.0
            %v515 = vrot.slane %v514, 4
            %v516 = vadd.f32 %v514, %v515
            %v517 = vrot.slane %v516, 2
            %v518 = vadd.f32 %v516, %v517
            %v519 = vrot.slane %v518, 1
            %v520 = vadd.f32 %v518, %v519
            %521 = vst [vmem:[%s503] sm:$0x1] %v520
            %s522 = smov [#allocation19]
            %s523 = smov [#allocation23]
            %v524 = vlaneseq
            %v525 = vand.u32 %v524, 127
            %v526 = vmov %v525
            %v527 = vlaneseq
            %v528 = vshrl.u32 %v527, 7
            %v529 = vmov %v528
            %v530 = vld [vmem:[%s522] sm:$0x3]
            %vm533 = vcmp.eq.s32.totalorder %v529, %v526
            %v534 = vsel %vm533, %v530, 0.0
            %v535 = vrot.slane %v534, 4
            %v536 = vadd.f32 %v534, %v535
            %v537 = vrot.slane %v536, 2
            %v538 = vadd.f32 %v536, %v537
            %v539 = vrot.slane %v538, 1
            %v540 = vadd.f32 %v538, %v539
            %541 = vst [vmem:[%s523] sm:$0x1] %v540
            %s542 = smov [#allocation21]
            %s543 = smov [#allocation24]
            %v544 = vlaneseq
            %v545 = vand.u32 %v544, 127
            %v546 = vmov %v545
            %v547 = vlaneseq
            %v548 = vshrl.u32 %v547, 7
            %v549 = vmov %v548
            %v550 = vld [vmem:[%s542] sm:$0x3]
            %vm553 = vcmp.eq.s32.totalorder %v549, %v546
            %v554 = vsel %vm553, %v550, 0.0
            %v555 = vrot.slane %v554, 4
            %v556 = vadd.f32 %v554, %v555
            %v557 = vrot.slane %v556, 2
            %v558 = vadd.f32 %v556, %v557
            %v559 = vrot.slane %v558, 1
            %v560 = vadd.f32 %v558, %v559
            %561 = vst [vmem:[%s543] sm:$0x1] %v560
            %s562 = smov [#allocation27]
            %s563 = smov [#allocation28]
            %s564 = smov [#allocation22]
            %v565 = vld [vmem:[%s564] sm:$0xff]
            %s566 = smov [#allocation23]
            %v567 = vld [vmem:[%s566] sm:$0xff]
            %s568 = smov [#allocation24]
            %v569 = vld [vmem:[%s568] sm:$0xff]
            %v570 = vsub.f32 %v569, %v565
            %v571 = vmul.f32 2.0, %v567
            %v572 = vrcp.pop %v571
            %v573 = vmul.f32 %v570, %v572
            %vm574 = vcmp.ge.f32.partialorder %v573, 0.0
            %v575 = vmul.f32 %v573, %v573
            %v576 = vadd.f32 1.0, %v575
            %v577 = vrsqrt.pop %v576
            %v578 = vmul.f32 %v576, %v577
            %vm579 = vcmp.eq.f32.partialorder %v576, inf
            %v580 = vsel %vm579, %v576, %v578
            %vm581 = vcmp.eq.f32.partialorder %v576, 0.0
            %v582 = vand.u32 %v576, 2147483648
            %v583 = vsel %vm581, %v582, %v580
            %v584 = vxor.u32 %v583, 2147483648
            %v585 = vsel %vm574, %v583, %v584
            %v586 = vadd.f32 %v573, %v585
            %v587 = vrcp.pop %v586
            %v588 = vand.u32 2147483647, %v565
            %v589 = vand.u32 2147483647, %v567
            %v590 = vand.u32 2147483647, %v569
            %v591 = vmin.f32 %v588, %v590
            %v592 = vmul.f32 1.1920929e-08, %v591
            %vm593 = vcmp.le.f32.partialorder %v589, %v592
            %v594 = vsel %vm593, 0.0, %v587
            %v595 = vmul.f32 %v594, %v594
            %v596 = vadd.f32 1.0, %v595
            %v597 = vrsqrt.pop %v596
            %v598 = vmul.f32 %v594, %v597
            %v599 = vmul.f32 %v594, %v567
            %v600 = vsub.f32 %v565, %v599
            %v601 = vmul.f32 %v594, %v567
            %v602 = vadd.f32 %v569, %v601
            %s603 = smov [#allocation25]
            %604 = vst [vmem:[%s603] sm:$0xff] %v600
            %s605 = smov [#allocation26]
            %606 = vst [vmem:[%s605] sm:$0xff] %v602
            %s607 = smov %s562
            %608 = vst [vmem:[%s607] sm:$0xff] %v597
            %s609 = smov %s563
            %610 = vst [vmem:[%s609] sm:$0xff] %v598
            %s611 = smov [#allocation27]
            %v612 = vld [vmem:[%s611] ss:$0 sm:$0xff]
            %v613 = vlaneseq
            %v614 = vand.u32 %v613, 127
            %v615 = vmov %v614
            %v616 = vlaneseq
            %v617 = vshrl.u32 %v616, 7
            %v618 = vmov %v617
            %vm620 = vcmp.eq.s32.totalorder %v618, %v615
            %v621 = vsel %vm620, %v612, 0.0
            %622 = vadd.xlane.f32.xlu0 %v621
            %v623 = vpop.xlane.xlu0 %622
            %s624 = smov [#allocation29]
            %625 = vst [vmem:[%s624] sm:$0xff] %v623
            %s626 = smov [#allocation28]
            %v627 = vld [vmem:[%s626] ss:$0 sm:$0xff]
            %v628 = vlaneseq
            %v629 = vand.u32 %v628, 127
            %v630 = vmov %v629
            %v631 = vlaneseq
            %v632 = vshrl.u32 %v631, 7
            %v633 = vmov %v632
            %vm635 = vcmp.eq.s32.totalorder %v633, %v630
            %v636 = vsel %vm635, %v627, 0.0
            %637 = vadd.xlane.f32.xlu0 %v636
            %v638 = vpop.xlane.xlu0 %637
            %s639 = smov [#allocation30]
            %640 = vst [vmem:[%s639] sm:$0xff] %v638
            %s641 = smov [#allocation29]
            %v642 = vld [vmem:[%s641] sm:$0xff]
            %s643 = smov [#allocation30]
            %v644 = vld [vmem:[%s643] sm:$0xff]
            %s645 = smov [#allocation18]
            %s646 = smov [#allocation19]
            %s647 = smov [#allocation20]
            %s648 = smov [#allocation21]
            %v649 = vld [vmem:[%s645] sm:$0x3]
            %v650 = vld [vmem:[%s646] sm:$0x3]
            %v651 = vld [vmem:[%s647] sm:$0x3]
            %v652 = vld [vmem:[%s648] sm:$0x3]
            %v653 = vmul.f32 %v642, %v649
            %v654 = vmul.f32 %v644, %v651
            %v655 = vsub.f32 %v653, %v654
            %v656 = vmul.f32 %v642, %v650
            %v657 = vmul.f32 %v644, %v652
            %v658 = vsub.f32 %v656, %v657
            %v659 = vmul.f32 %v644, %v649
            %v660 = vmul.f32 %v642, %v651
            %v661 = vadd.f32 %v659, %v660
            %v662 = vmul.f32 %v644, %v650
            %v663 = vmul.f32 %v642, %v652
            %v664 = vadd.f32 %v662, %v663
            %665 = vst [vmem:[%s645] sm:$0x3] %v655
            %666 = vst [vmem:[%s646] sm:$0x3] %v658
            %667 = vst [vmem:[%s647] sm:$0x3] %v661
            %668 = vst [vmem:[%s648] sm:$0x3] %v664
            %s669 = smov [#allocation27]
            %v670 = vld [vmem:[%s669] ss:$0 sm:$0xff]
            %s671 = smov [#allocation28]
            %v672 = vld [vmem:[%s671] ss:$0 sm:$0xff]
            %s673 = smov [#allocation18]
            %s674 = smov [#allocation19]
            %s675 = smov [#allocation20]
            %s676 = smov [#allocation21]
            %v677 = vld [vmem:[%s673] sm:$0x3]
            %v678 = vld [vmem:[%s674] sm:$0x3]
            %v679 = vld [vmem:[%s675] sm:$0x3]
            %v680 = vld [vmem:[%s676] sm:$0x3]
            %v681 = vmul.f32 %v670, %v677
            %v682 = vmul.f32 %v672, %v678
            %v683 = vsub.f32 %v681, %v682
            %v684 = vmul.f32 %v672, %v677
            %v685 = vmul.f32 %v670, %v678
            %v686 = vadd.f32 %v684, %v685
            %v687 = vmul.f32 %v670, %v679
            %v688 = vmul.f32 %v672, %v680
            %v689 = vsub.f32 %v687, %v688
            %v690 = vmul.f32 %v672, %v679
            %v691 = vmul.f32 %v670, %v680
            %v692 = vadd.f32 %v690, %v691
            %693 = vst [vmem:[%s673] sm:$0x3] %v683
            %694 = vst [vmem:[%s674] sm:$0x3] %v686
            %695 = vst [vmem:[%s675] sm:$0x3] %v689
            %696 = vst [vmem:[%s676] sm:$0x3] %v692
            %s697 = smov [#allocation18]
            %s698 = smov [#allocation25]
            %v699 = vlaneseq
            %v700 = vand.u32 %v699, 127
            %v701 = vmov %v700
            %v702 = vlaneseq
            %v703 = vshrl.u32 %v702, 7
            %v704 = vmov %v703
            %v705 = vld [vmem:[%s698] ss:$0 sm:$0xff]
            %v706 = vld [vmem:[%s697] sm:$0x3]
            %vm709 = vcmp.eq.s32.totalorder %v704, %v701
            %v710 = vsel %vm709, %v705, %v706
            %711 = vst [vmem:[%s697] sm:$0x3] %v710
            %s712 = smov [#allocation19]
            %v713 = vlaneseq
            %v714 = vand.u32 %v713, 127
            %v715 = vmov %v714
            %v716 = vlaneseq
            %v717 = vshrl.u32 %v716, 7
            %v718 = vmov %v717
            %v719 = vld [vmem:[%s712] sm:$0x3]
            %vm722 = vcmp.eq.s32.totalorder %v718, %v715
            %v723 = vsel %vm722, 0.0, %v719
            %724 = vst [vmem:[%s712] sm:$0x3] %v723
            %s725 = smov [#allocation20]
            %v726 = vlaneseq
            %v727 = vand.u32 %v726, 127
            %v728 = vmov %v727
            %v729 = vlaneseq
            %v730 = vshrl.u32 %v729, 7
            %v731 = vmov %v730
            %v732 = vld [vmem:[%s725] sm:$0x3]
            %vm735 = vcmp.eq.s32.totalorder %v731, %v728
            %v736 = vsel %vm735, 0.0, %v732
            %737 = vst [vmem:[%s725] sm:$0x3] %v736
            %s738 = smov [#allocation21]
            %s739 = smov [#allocation26]
            %v740 = vlaneseq
            %v741 = vand.u32 %v740, 127
            %v742 = vmov %v741
            %v743 = vlaneseq
            %v744 = vshrl.u32 %v743, 7
            %v745 = vmov %v744
            %v746 = vld [vmem:[%s739] ss:$0 sm:$0xff]
            %v747 = vld [vmem:[%s738] sm:$0x3]
            %vm750 = vcmp.eq.s32.totalorder %v745, %v742
            %v751 = vsel %vm750, %v746, %v747
            %752 = vst [vmem:[%s738] sm:$0x3] %v751
            %s753 = smov [#allocation18]
            %s754 = smov [#allocation19]
            %v755 = vld [vmem:[%s754] sm:$0x3]
            %756 = vrot.lane.b32.xlu0 %v755, 1
            %v757 = vpop.permute.xlu0 %756
            %v758 = vld [vmem:[%s753] sm:$0x3]
            %v759 = vld [vmem:[%s753] sm:$0x3]
            %760 = vrot.lane.b32.xlu0 %v759, 1
            %v761 = vpop.permute.xlu0 %760
            %v762 = vlaneseq
            %v763 = vand.u32 %v762, 127
            %vm764 = vcmp.eq.s32.totalorder %v763, 0
            %v765 = vsel %vm764, %v759, %v761
            %v766 = vlaneseq
            %v767 = vand.u32 %v766, 127
            %vm768 = vcmp.eq.s32.totalorder %v767, 1
            %v769 = vsel %vm768, %v757, %v765
            %v770 = vlaneseq
            %v771 = vand.u32 %v770, 127
            %vm772 = vcmp.ge.s32.totalorder %v771, 0
            %vm773 = vcmp.lt.s32.totalorder %v771, 2
            %vm774 = vmand %vm772, %vm773
            %v775 = vsel %vm774, %v769, 0.0
            %v776 = vld [vmem:[%s754] sm:$0x3]
            %777 = vrot.lane.b32.xlu0 %v776, 127
            %v778 = vpop.permute.xlu0 %777
            %v779 = vlaneseq
            %v780 = vand.u32 %v779, 127
            %vm781 = vcmp.eq.s32.totalorder %v780, 1
            %v782 = vsel %vm781, %v758, %v778
            %783 = vst [vmem:[%s753] sm:$0x3] %v775
            %784 = vst [vmem:[%s754] sm:$0x3] %v782
            %s785 = smov [#allocation20]
            %s786 = smov [#allocation21]
            %v787 = vld [vmem:[%s786] sm:$0x3]
            %788 = vrot.lane.b32.xlu0 %v787, 1
            %v789 = vpop.permute.xlu0 %788
            %v790 = vld [vmem:[%s785] sm:$0x3]
            %v791 = vld [vmem:[%s785] sm:$0x3]
            %792 = vrot.lane.b32.xlu0 %v791, 1
            %v793 = vpop.permute.xlu0 %792
            %v794 = vlaneseq
            %v795 = vand.u32 %v794, 127
            %vm796 = vcmp.eq.s32.totalorder %v795, 0
            %v797 = vsel %vm796, %v791, %v793
            %v798 = vlaneseq
            %v799 = vand.u32 %v798, 127
            %vm800 = vcmp.eq.s32.totalorder %v799, 1
            %v801 = vsel %vm800, %v789, %v797
            %v802 = vlaneseq
            %v803 = vand.u32 %v802, 127
            %vm804 = vcmp.ge.s32.totalorder %v803, 0
            %vm805 = vcmp.lt.s32.totalorder %v803, 2
            %vm806 = vmand %vm804, %vm805
            %v807 = vsel %vm806, %v801, 0.0
            %v808 = vld [vmem:[%s786] sm:$0x3]
            %809 = vrot.lane.b32.xlu0 %v808, 127
            %v810 = vpop.permute.xlu0 %809
            %v811 = vlaneseq
            %v812 = vand.u32 %v811, 127
            %vm813 = vcmp.eq.s32.totalorder %v812, 1
            %v814 = vsel %vm813, %v790, %v810
            %815 = vst [vmem:[%s785] sm:$0x3] %v807
            %816 = vst [vmem:[%s786] sm:$0x3] %v814
            %s817 = smov [#allocation18]
            %s818 = smov [#allocation20]
            %v819 = vld [vmem:[%s817] ss:$0 sm:$0xff]
            %s821 = scalar_lea.vmem %s817, 4294967295
            %v822 = vld [vmem:[%s821] sm:$0x2]
            %v823 = vlaneseq
            %v824 = vshrl.u32 %v823, 7
            %vm825 = vcmp.eq.s32.totalorder %v824, 0
            %v826 = vsel %vm825, %v819, %v822
            %s827 = scalar_lea.vmem %s817, 1
            %v828 = vld [vmem:[%s827] ss:$0 sm:$0xff]
            %829 = vst [vmem:[%s817] sm:$0x3] %v826
            %v830 = vld [vmem:[%s818] ss:$0 sm:$0xff]
            %s831 = scalar_lea.vmem %s817, 1
            %832 = vst [vmem:[%s831] sm:$0x1] %v830
            %s833 = scalar_lea.vmem %s818, 1
            %v834 = vld [vmem:[%s833] sm:$0x1]
            %v835 = vlaneseq
            %v836 = vshrl.u32 %v835, 7
            %vm837 = vcmp.eq.s32.totalorder %v836, 1
            %v838 = vsel %vm837, %v828, %v834
            %v839 = vld [vmem:[%s818] ss:$0 sm:$0xff]
            %840 = vst [vmem:[%s818] sm:$0x3] %v838
            %s841 = smov [#allocation19]
            %s842 = smov [#allocation21]
            %v843 = vld [vmem:[%s841] ss:$0 sm:$0xff]
            %s845 = scalar_lea.vmem %s841, 4294967295
            %v846 = vld [vmem:[%s845] sm:$0x2]
            %v847 = vlaneseq
            %v848 = vshrl.u32 %v847, 7
            %vm849 = vcmp.eq.s32.totalorder %v848, 0
            %v850 = vsel %vm849, %v843, %v846
            %s851 = scalar_lea.vmem %s841, 1
            %v852 = vld [vmem:[%s851] ss:$0 sm:$0xff]
            %853 = vst [vmem:[%s841] sm:$0x3] %v850
            %v854 = vld [vmem:[%s842] ss:$0 sm:$0xff]
            %s855 = scalar_lea.vmem %s841, 1
            %856 = vst [vmem:[%s855] sm:$0x1] %v854
            %s857 = scalar_lea.vmem %s842, 1
            %v858 = vld [vmem:[%s857] sm:$0x1]
            %v859 = vlaneseq
            %v860 = vshrl.u32 %v859, 7
            %vm861 = vcmp.eq.s32.totalorder %v860, 1
            %v862 = vsel %vm861, %v852, %v858
            %v863 = vld [vmem:[%s842] ss:$0 sm:$0xff]
            %864 = vst [vmem:[%s842] sm:$0x3] %v862
            %s865 = smov [#allocation29]
            %v866 = vld [vmem:[%s865] sm:$0xff]
            %s867 = smov [#allocation30]
            %v868 = vld [vmem:[%s867] sm:$0xff]
            %s869 = smov [#allocation10]
            %s870 = smov [#allocation12]
            %s871 = smov [#allocation14]
            %s872 = smov [#allocation16]
            %v873 = vld [vmem:[%s869] sm:$0x3]
            %v874 = vld [vmem:[%s870] sm:$0x3]
            %v875 = vld [vmem:[%s871] sm:$0x3]
            %v876 = vld [vmem:[%s872] sm:$0x3]
            %v877 = vmul.f32 %v866, %v873
            %v878 = vmul.f32 %v868, %v875
            %v879 = vsub.f32 %v877, %v878
            %v880 = vmul.f32 %v866, %v874
            %v881 = vmul.f32 %v868, %v876
            %v882 = vsub.f32 %v880, %v881
            %v883 = vmul.f32 %v868, %v873
            %v884 = vmul.f32 %v866, %v875
            %v885 = vadd.f32 %v883, %v884
            %v886 = vmul.f32 %v868, %v874
            %v887 = vmul.f32 %v866, %v876
            %v888 = vadd.f32 %v886, %v887
            %889 = vst [vmem:[%s869] sm:$0x3] %v879
            %890 = vst [vmem:[%s870] sm:$0x3] %v882
            %891 = vst [vmem:[%s871] sm:$0x3] %v885
            %892 = vst [vmem:[%s872] sm:$0x3] %v888
            %s893 = smov [#allocation10]
            %s894 = smov [#allocation14]
            %v895 = vld [vmem:[%s893] ss:$0 sm:$0xff]
            %s897 = scalar_lea.vmem %s893, 4294967295
            %v898 = vld [vmem:[%s897] sm:$0x2]
            %v899 = vlaneseq
            %v900 = vshrl.u32 %v899, 7
            %vm901 = vcmp.eq.s32.totalorder %v900, 0
            %v902 = vsel %vm901, %v895, %v898
            %s903 = scalar_lea.vmem %s893, 1
            %v904 = vld [vmem:[%s903] ss:$0 sm:$0xff]
            %905 = vst [vmem:[%s893] sm:$0x3] %v902
            %v906 = vld [vmem:[%s894] ss:$0 sm:$0xff]
            %s907 = scalar_lea.vmem %s893, 1
            %908 = vst [vmem:[%s907] sm:$0x1] %v906
            %s909 = scalar_lea.vmem %s894, 1
            %v910 = vld [vmem:[%s909] sm:$0x1]
            %v911 = vlaneseq
            %v912 = vshrl.u32 %v911, 7
            %vm913 = vcmp.eq.s32.totalorder %v912, 1
            %v914 = vsel %vm913, %v904, %v910
            %v915 = vld [vmem:[%s894] ss:$0 sm:$0xff]
            %916 = vst [vmem:[%s894] sm:$0x3] %v914
            %s917 = smov [#allocation12]
            %s918 = smov [#allocation16]
            %v919 = vld [vmem:[%s917] ss:$0 sm:$0xff]
            %s921 = scalar_lea.vmem %s917, 4294967295
            %v922 = vld [vmem:[%s921] sm:$0x2]
            %v923 = vlaneseq
            %v924 = vshrl.u32 %v923, 7
            %vm925 = vcmp.eq.s32.totalorder %v924, 0
            %v926 = vsel %vm925, %v919, %v922
            %s927 = scalar_lea.vmem %s917, 1
            %v928 = vld [vmem:[%s927] ss:$0 sm:$0xff]
            %929 = vst [vmem:[%s917] sm:$0x3] %v926
            %v930 = vld [vmem:[%s918] ss:$0 sm:$0xff]
            %s931 = scalar_lea.vmem %s917, 1
            %932 = vst [vmem:[%s931] sm:$0x1] %v930
            %s933 = scalar_lea.vmem %s918, 1
            %v934 = vld [vmem:[%s933] sm:$0x1]
            %v935 = vlaneseq
            %v936 = vshrl.u32 %v935, 7
            %vm937 = vcmp.eq.s32.totalorder %v936, 1
            %v938 = vsel %vm937, %v928, %v934
            %v939 = vld [vmem:[%s918] ss:$0 sm:$0xff]
            %940 = vst [vmem:[%s918] sm:$0x3] %v938
          $region152: #{custom-call.22} parent=144 // loop_footer
            %s501 = sadd.s32 1, %s497
          $region153: #{custom-call.22} parent=144 // loop_footer_branch
            %496 = sbr.rel target = $region149
          $region154: #{custom-call.22} parent=144 // loop_exit
            _
          %s941 = sadd.s32 %s399, 1
        $region145: #{custom-call.22} parent=139 // loop_footer
          _
        $region146: #{custom-call.22} parent=139 // loop_footer_branch
          %398 = sbr.rel target = $region142
        $region147: #{custom-call.22} parent=139 // loop_exit
          _
        %s944 = sand.u32 %s22, 7
        %s945 = scalar_lea.vmem %s311, %s944 [#allocation8]
        %s946 = sand.u32 %s22, 7
        %s947 = scalar_lea.vmem %s317, %s946 [#allocation9]
        %s948 = smov [#allocation18]
        %s949 = smov %s945
        %v950 = vlaneseq
        %v951 = vand.u32 %v950, 127
        %v952 = vmov %v951
        %v953 = vlaneseq
        %v954 = vshrl.u32 %v953, 7
        %v955 = vmov %v954
        %v956 = vld [vmem:[%s948] sm:$0x3]
        %vm959 = vcmp.eq.s32.totalorder %v955, %v952
        %v960 = vsel %vm959, %v956, 0.0
        %v961 = vrot.slane %v960, 4
        %v962 = vadd.f32 %v960, %v961
        %v963 = vrot.slane %v962, 2
        %v964 = vadd.f32 %v962, %v963
        %v965 = vrot.slane %v964, 1
        %v966 = vadd.f32 %v964, %v965
        %967 = vst [vmem:[%s949] sm:$0x1] %v966
        %s968 = smov [#allocation21]
        %s969 = smov %s947
        %v970 = vlaneseq
        %v971 = vand.u32 %v970, 127
        %v972 = vmov %v971
        %v973 = vlaneseq
        %v974 = vshrl.u32 %v973, 7
        %v975 = vmov %v974
        %v976 = vld [vmem:[%s968] sm:$0x3]
        %vm979 = vcmp.eq.s32.totalorder %v975, %v972
        %v980 = vsel %vm979, %v976, 0.0
        %v981 = vrot.slane %v980, 4
        %v982 = vadd.f32 %v980, %v981
        %v983 = vrot.slane %v982, 2
        %v984 = vadd.f32 %v982, %v983
        %v985 = vrot.slane %v984, 1
        %v986 = vadd.f32 %v984, %v985
        %987 = vst [vmem:[%s969] sm:$0x1] %v986
        %s989 = sshll.u32 1, 2
        %s990 = ssub.s32 %s989, 1
        %v992 = vld [vmem:[#allocation10] sm:%s990]
        %s993 = sshll.u32 1, 2
        %s994 = ssub.s32 %s993, 1
        %995 = vst [vmem:[%s321] sm:%s994] %v992
        %s997 = sshll.u32 1, 2
        %s998 = ssub.s32 %s997, 1
        %v1000 = vld [vmem:[#allocation12] sm:%s998]
        %s1001 = sshll.u32 1, 2
        %s1002 = ssub.s32 %s1001, 1
        %1003 = vst [vmem:[%s325] sm:%s1002] %v1000
        %s1005 = sshll.u32 1, 2
        %s1006 = ssub.s32 %s1005, 1
        %v1008 = vld [vmem:[#allocation14] sm:%s1006]
        %s1009 = sshll.u32 1, 2
        %s1010 = ssub.s32 %s1009, 1
        %1011 = vst [vmem:[%s329] sm:%s1010] %v1008
        %s1013 = sshll.u32 1, 2
        %s1014 = ssub.s32 %s1013, 1
        %v1016 = vld [vmem:[#allocation16] sm:%s1014]
        %s1017 = sshll.u32 1, 2
        %s1018 = ssub.s32 %s1017, 1
        %1019 = vst [vmem:[%s333] sm:%s1018] %v1016
        %s1020 = sand.u32 %s41, 1
        %s1021 = sand.u32 %s41, 1
        %s1022 = smul.addr %s1021, 8
        %s1023 = scalar_lea.vmem [#allocation8], %s1022
        %s1024 = sand.u32 %s71, 1
        %s1025 = sand.u32 %s71, 1
        %s1026 = smul.addr %s1025, 8
        %s1027 = scalar_lea.vmem [#allocation9], %s1026
        %s1028 = sand.u32 %s17, 1
        %s1029 = sand.u32 %s17, 1
        %s1030 = smul.addr %s1029, 2
        %s1031 = scalar_lea.vmem [#allocation11], %s1030
        %s1032 = sand.u32 %s17, 1
        %s1033 = sand.u32 %s17, 1
        %s1034 = smul.addr %s1033, 2
        %s1035 = scalar_lea.vmem [#allocation13], %s1034
        %s1036 = sand.u32 %s17, 1
        %s1037 = sand.u32 %s17, 1
        %s1038 = smul.addr %s1037, 2
        %s1039 = scalar_lea.vmem [#allocation15], %s1038
        %s1040 = sand.u32 %s17, 1
        %s1041 = sand.u32 %s17, 1
        %s1042 = smul.addr %s1041, 2
        %s1043 = scalar_lea.vmem [#allocation17], %s1042
        // Predicated region
        $region155: #{custom-call.22} parent=139 // pred_check
          %p1044 = pneg %p51
        $region156: #{custom-call.22} parent=139 // pred_check_branch
          %1046 = sbr.rel (%p1044) target = $region158
        $region157: #{custom-call.22} parent=139 // pred_region
          %s1047 = sshrl.u32 %s22, 3
          %s1048 = sadd.s32 %s1047, %s21
          %s1049 = smul.addr %s1048, 8
          %s1050 = scalar_lea.vmem %s4, %s1049
          // Predicated region
          $region159: #{custom-call.22} parent=157 // pred_check
            _
          $region160: #{custom-call.22} parent=157 // pred_check_branch
            %1052 = sbr.rel (0) target = $region162
          $region161: #{custom-call.22} parent=157 // pred_region
            // Predicated region
            $region163: #{custom-call.22} parent=161 // pred_check
              _
            $region164: #{custom-call.22} parent=161 // pred_check_branch
              %1054 = sbr.rel (0) target = $region166
            $region165: #{custom-call.22} parent=161 // pred_region
              // Predicated region
              $region178: #{custom-call.22} parent=165 // pred_check
                _
              $region179: #{custom-call.22} parent=165 // pred_check_branch
                %1070 = sbr.rel (0) target = $region181
              $region180: #{custom-call.22} parent=165 // pred_region
                loop: start=0, step=1, limit=1
                $region182: #{custom-call.22} parent=180 // loop_pre_header
                  _
                $region183: #{custom-call.22} parent=180 // loop_header
                  %s1072 = sphi 0, %s1076
                  %p1073 = scmp.ge.s32.totalorder %s1072, 1
                  %s1077 = sphi %s1023, %s1023
                  %s1078 = sphi %s1050, %s1050
                $region184: #{custom-call.22} parent=180 // loop_header_branch
                  %1075 = sbr.rel (%p1073) target = $region188
                $region185: #{custom-call.22} parent=180 // loop_body
                  %v1079 = vld [vmem:[%s1077] sm:$0xff]
                  %1080 = vst [vmem:[%s1078] sm:$0xff] %v1079
                $region186: #{custom-call.22} parent=180 // loop_footer
                  %s1076 = sadd.s32 1, %s1072
                $region187: #{custom-call.22} parent=180 // loop_footer_branch
                  %1071 = sbr.rel target = $region183
                $region188: #{custom-call.22} parent=180 // loop_exit
                  _
              $region181: #{custom-call.22} parent=165 // pred_fallthru
                _
              // Predicated region
              $region189: #{custom-call.22} parent=165 // pred_check
                _
              $region190: #{custom-call.22} parent=165 // pred_check_branch
                %1082 = sbr.rel target = $region192
              $region191: #{custom-call.22} parent=165 // pred_region
                _
              $region192: #{custom-call.22} parent=165 // pred_fallthru
                _
            $region166: #{custom-call.22} parent=161 // pred_fallthru
              _
            // Predicated region
            $region167: #{custom-call.22} parent=161 // pred_check
              _
            $region168: #{custom-call.22} parent=161 // pred_check_branch
              %1056 = sbr.rel target = $region170
            $region169: #{custom-call.22} parent=161 // pred_region
              %s1058 = ssub.s32 256, 1
              loop: start=0, step=1, limit=1
              $region171: #{custom-call.22} parent=169 // loop_pre_header
                _
              $region172: #{custom-call.22} parent=169 // loop_header
                %s1060 = sphi 0, %s1064
                %p1061 = scmp.ge.s32.totalorder %s1060, 1
                %s1065 = sphi %s1023, %s1023
                %s1066 = sphi %s1050, %s1050
              $region173: #{custom-call.22} parent=169 // loop_header_branch
                %1063 = sbr.rel (%p1061) target = $region177
              $region174: #{custom-call.22} parent=169 // loop_body
                %v1067 = vld [vmem:[%s1065] sm:%s1058]
                %1068 = vst [vmem:[%s1066] sm:%s1058] %v1067
              $region175: #{custom-call.22} parent=169 // loop_footer
                %s1064 = sadd.s32 1, %s1060
              $region176: #{custom-call.22} parent=169 // loop_footer_branch
                %1059 = sbr.rel target = $region172
              $region177: #{custom-call.22} parent=169 // loop_exit
                _
            $region170: #{custom-call.22} parent=161 // pred_fallthru
              _
          $region162: #{custom-call.22} parent=157 // pred_fallthru
            _
          %1083 = vnop
        $region158: #{custom-call.22} parent=139 // pred_fallthru
          _
        // Predicated region
        $region193: #{custom-call.22} parent=139 // pred_check
          %p1084 = pneg %p81
        $region194: #{custom-call.22} parent=139 // pred_check_branch
          %1086 = sbr.rel (%p1084) target = $region196
        $region195: #{custom-call.22} parent=139 // pred_region
          %s1087 = sshrl.u32 %s22, 3
          %s1088 = sadd.s32 %s1087, %s21
          %s1089 = smul.addr %s1088, 8
          %s1090 = scalar_lea.vmem %s5, %s1089
          // Predicated region
          $region197: #{custom-call.22} parent=195 // pred_check
            _
          $region198: #{custom-call.22} parent=195 // pred_check_branch
            %1092 = sbr.rel (0) target = $region200
          $region199: #{custom-call.22} parent=195 // pred_region
            // Predicated region
            $region201: #{custom-call.22} parent=199 // pred_check
              _
            $region202: #{custom-call.22} parent=199 // pred_check_branch
              %1094 = sbr.rel (0) target = $region204
            $region203: #{custom-call.22} parent=199 // pred_region
              // Predicated region
              $region216: #{custom-call.22} parent=203 // pred_check
                _
              $region217: #{custom-call.22} parent=203 // pred_check_branch
                %1110 = sbr.rel (0) target = $region219
              $region218: #{custom-call.22} parent=203 // pred_region
                loop: start=0, step=1, limit=1
                $region220: #{custom-call.22} parent=218 // loop_pre_header
                  _
                $region221: #{custom-call.22} parent=218 // loop_header
                  %s1112 = sphi 0, %s1116
                  %p1113 = scmp.ge.s32.totalorder %s1112, 1
                  %s1117 = sphi %s1027, %s1027
                  %s1118 = sphi %s1090, %s1090
                $region222: #{custom-call.22} parent=218 // loop_header_branch
                  %1115 = sbr.rel (%p1113) target = $region226
                $region223: #{custom-call.22} parent=218 // loop_body
                  %v1119 = vld [vmem:[%s1117] sm:$0xff]
                  %1120 = vst [vmem:[%s1118] sm:$0xff] %v1119
                $region224: #{custom-call.22} parent=218 // loop_footer
                  %s1116 = sadd.s32 1, %s1112
                $region225: #{custom-call.22} parent=218 // loop_footer_branch
                  %1111 = sbr.rel target = $region221
                $region226: #{custom-call.22} parent=218 // loop_exit
                  _
              $region219: #{custom-call.22} parent=203 // pred_fallthru
                _
              // Predicated region
              $region227: #{custom-call.22} parent=203 // pred_check
                _
              $region228: #{custom-call.22} parent=203 // pred_check_branch
                %1122 = sbr.rel target = $region230
              $region229: #{custom-call.22} parent=203 // pred_region
                _
              $region230: #{custom-call.22} parent=203 // pred_fallthru
                _
            $region204: #{custom-call.22} parent=199 // pred_fallthru
              _
            // Predicated region
            $region205: #{custom-call.22} parent=199 // pred_check
              _
            $region206: #{custom-call.22} parent=199 // pred_check_branch
              %1096 = sbr.rel target = $region208
            $region207: #{custom-call.22} parent=199 // pred_region
              %s1098 = ssub.s32 256, 1
              loop: start=0, step=1, limit=1
              $region209: #{custom-call.22} parent=207 // loop_pre_header
                _
              $region210: #{custom-call.22} parent=207 // loop_header
                %s1100 = sphi 0, %s1104
                %p1101 = scmp.ge.s32.totalorder %s1100, 1
                %s1105 = sphi %s1027, %s1027
                %s1106 = sphi %s1090, %s1090
              $region211: #{custom-call.22} parent=207 // loop_header_branch
                %1103 = sbr.rel (%p1101) target = $region215
              $region212: #{custom-call.22} parent=207 // loop_body
                %v1107 = vld [vmem:[%s1105] sm:%s1098]
                %1108 = vst [vmem:[%s1106] sm:%s1098] %v1107
              $region213: #{custom-call.22} parent=207 // loop_footer
                %s1104 = sadd.s32 1, %s1100
              $region214: #{custom-call.22} parent=207 // loop_footer_branch
                %1099 = sbr.rel target = $region210
              $region215: #{custom-call.22} parent=207 // loop_exit
                _
            $region208: #{custom-call.22} parent=199 // pred_fallthru
              _
          $region200: #{custom-call.22} parent=195 // pred_fallthru
            _
          %1123 = vnop
        $region196: #{custom-call.22} parent=139 // pred_fallthru
          _
        %s1124 = smul.addr %s21, 8
        %s1125 = sadd.s32 %s22, %s1124
        %s1126 = smul.addr %s1125, 2
        %s1127 = scalar_lea.vmem %s6, %s1126
        // Predicated region
        $region231: #{custom-call.22} parent=139 // pred_check
          _
        $region232: #{custom-call.22} parent=139 // pred_check_branch
          %1129 = sbr.rel (0) target = $region234
        $region233: #{custom-call.22} parent=139 // pred_region
          // Predicated region
          $region235: #{custom-call.22} parent=233 // pred_check
            _
          $region236: #{custom-call.22} parent=233 // pred_check_branch
            %1131 = sbr.rel target = $region238
          $region237: #{custom-call.22} parent=233 // pred_region
            // Predicated region
            $region250: #{custom-call.22} parent=237 // pred_check
              _
            $region251: #{custom-call.22} parent=237 // pred_check_branch
              %1147 = sbr.rel (0) target = $region253
            $region252: #{custom-call.22} parent=237 // pred_region
              %s1149 = ssub.s32 4, 1
              loop: start=0, step=1, limit=1
              $region254: #{custom-call.22} parent=252 // loop_pre_header
                _
              $region255: #{custom-call.22} parent=252 // loop_header
                %s1151 = sphi 0, %s1155
                %p1152 = scmp.ge.s32.totalorder %s1151, 1
                %s1156 = sphi %s1031, %s1031
                %s1157 = sphi %s1127, %s1127
              $region256: #{custom-call.22} parent=252 // loop_header_branch
                %1154 = sbr.rel (%p1152) target = $region260
              $region257: #{custom-call.22} parent=252 // loop_body
                %v1158 = vld [vmem:[%s1156] sm:%s1149]
                %1159 = vst [vmem:[%s1157] sm:%s1149] %v1158
              $region258: #{custom-call.22} parent=252 // loop_footer
                %s1155 = sadd.s32 1, %s1151
              $region259: #{custom-call.22} parent=252 // loop_footer_branch
                %1150 = sbr.rel target = $region255
              $region260: #{custom-call.22} parent=252 // loop_exit
                _
            $region253: #{custom-call.22} parent=237 // pred_fallthru
              _
          $region238: #{custom-call.22} parent=233 // pred_fallthru
            _
          // Predicated region
          $region239: #{custom-call.22} parent=233 // pred_check
            _
          $region240: #{custom-call.22} parent=233 // pred_check_branch
            %1133 = sbr.rel (0) target = $region242
          $region241: #{custom-call.22} parent=233 // pred_region
            %s1135 = ssub.s32 4, 1
            loop: start=0, step=1, limit=1
            $region243: #{custom-call.22} parent=241 // loop_pre_header
              _
            $region244: #{custom-call.22} parent=241 // loop_header
              %s1137 = sphi 0, %s1141
              %p1138 = scmp.ge.s32.totalorder %s1137, 1
              %s1142 = sphi %s1031, %s1031
              %s1143 = sphi %s1127, %s1127
            $region245: #{custom-call.22} parent=241 // loop_header_branch
              %1140 = sbr.rel (%p1138) target = $region249
            $region246: #{custom-call.22} parent=241 // loop_body
              %v1144 = vld [vmem:[%s1142] sm:%s1135]
              %1145 = vst [vmem:[%s1143] sm:%s1135] %v1144
            $region247: #{custom-call.22} parent=241 // loop_footer
              %s1141 = sadd.s32 1, %s1137
            $region248: #{custom-call.22} parent=241 // loop_footer_branch
              %1136 = sbr.rel target = $region244
            $region249: #{custom-call.22} parent=241 // loop_exit
              _
          $region242: #{custom-call.22} parent=233 // pred_fallthru
            _
        $region234: #{custom-call.22} parent=139 // pred_fallthru
          _
        %1160 = vnop
        %s1161 = smul.addr %s21, 8
        %s1162 = sadd.s32 %s22, %s1161
        %s1163 = smul.addr %s1162, 2
        %s1164 = scalar_lea.vmem %s7, %s1163
        // Predicated region
        $region261: #{custom-call.22} parent=139 // pred_check
          _
        $region262: #{custom-call.22} parent=139 // pred_check_branch
          %1166 = sbr.rel (0) target = $region264
        $region263: #{custom-call.22} parent=139 // pred_region
          // Predicated region
          $region265: #{custom-call.22} parent=263 // pred_check
            _
          $region266: #{custom-call.22} parent=263 // pred_check_branch
            %1168 = sbr.rel target = $region268
          $region267: #{custom-call.22} parent=263 // pred_region
            // Predicated region
            $region280: #{custom-call.22} parent=267 // pred_check
              _
            $region281: #{custom-call.22} parent=267 // pred_check_branch
              %1184 = sbr.rel (0) target = $region283
            $region282: #{custom-call.22} parent=267 // pred_region
              %s1186 = ssub.s32 4, 1
              loop: start=0, step=1, limit=1
              $region284: #{custom-call.22} parent=282 // loop_pre_header
                _
              $region285: #{custom-call.22} parent=282 // loop_header
                %s1188 = sphi 0, %s1192
                %p1189 = scmp.ge.s32.totalorder %s1188, 1
                %s1193 = sphi %s1035, %s1035
                %s1194 = sphi %s1164, %s1164
              $region286: #{custom-call.22} parent=282 // loop_header_branch
                %1191 = sbr.rel (%p1189) target = $region290
              $region287: #{custom-call.22} parent=282 // loop_body
                %v1195 = vld [vmem:[%s1193] sm:%s1186]
                %1196 = vst [vmem:[%s1194] sm:%s1186] %v1195
              $region288: #{custom-call.22} parent=282 // loop_footer
                %s1192 = sadd.s32 1, %s1188
              $region289: #{custom-call.22} parent=282 // loop_footer_branch
                %1187 = sbr.rel target = $region285
              $region290: #{custom-call.22} parent=282 // loop_exit
                _
            $region283: #{custom-call.22} parent=267 // pred_fallthru
              _
          $region268: #{custom-call.22} parent=263 // pred_fallthru
            _
          // Predicated region
          $region269: #{custom-call.22} parent=263 // pred_check
            _
          $region270: #{custom-call.22} parent=263 // pred_check_branch
            %1170 = sbr.rel (0) target = $region272
          $region271: #{custom-call.22} parent=263 // pred_region
            %s1172 = ssub.s32 4, 1
            loop: start=0, step=1, limit=1
            $region273: #{custom-call.22} parent=271 // loop_pre_header
              _
            $region274: #{custom-call.22} parent=271 // loop_header
              %s1174 = sphi 0, %s1178
              %p1175 = scmp.ge.s32.totalorder %s1174, 1
              %s1179 = sphi %s1035, %s1035
              %s1180 = sphi %s1164, %s1164
            $region275: #{custom-call.22} parent=271 // loop_header_branch
              %1177 = sbr.rel (%p1175) target = $region279
            $region276: #{custom-call.22} parent=271 // loop_body
              %v1181 = vld [vmem:[%s1179] sm:%s1172]
              %1182 = vst [vmem:[%s1180] sm:%s1172] %v1181
            $region277: #{custom-call.22} parent=271 // loop_footer
              %s1178 = sadd.s32 1, %s1174
            $region278: #{custom-call.22} parent=271 // loop_footer_branch
              %1173 = sbr.rel target = $region274
            $region279: #{custom-call.22} parent=271 // loop_exit
              _
          $region272: #{custom-call.22} parent=263 // pred_fallthru
            _
        $region264: #{custom-call.22} parent=139 // pred_fallthru
          _
        %1197 = vnop
        %s1198 = smul.addr %s21, 8
        %s1199 = sadd.s32 %s22, %s1198
        %s1200 = smul.addr %s1199, 2
        %s1201 = scalar_lea.vmem %s8, %s1200
        // Predicated region
        $region291: #{custom-call.22} parent=139 // pred_check
          _
        $region292: #{custom-call.22} parent=139 // pred_check_branch
          %1203 = sbr.rel (0) target = $region294
        $region293: #{custom-call.22} parent=139 // pred_region
          // Predicated region
          $region295: #{custom-call.22} parent=293 // pred_check
            _
          $region296: #{custom-call.22} parent=293 // pred_check_branch
            %1205 = sbr.rel target = $region298
          $region297: #{custom-call.22} parent=293 // pred_region
            // Predicated region
            $region310: #{custom-call.22} parent=297 // pred_check
              _
            $region311: #{custom-call.22} parent=297 // pred_check_branch
              %1221 = sbr.rel (0) target = $region313
            $region312: #{custom-call.22} parent=297 // pred_region
              %s1223 = ssub.s32 4, 1
              loop: start=0, step=1, limit=1
              $region314: #{custom-call.22} parent=312 // loop_pre_header
                _
              $region315: #{custom-call.22} parent=312 // loop_header
                %s1225 = sphi 0, %s1229
                %p1226 = scmp.ge.s32.totalorder %s1225, 1
                %s1230 = sphi %s1039, %s1039
                %s1231 = sphi %s1201, %s1201
              $region316: #{custom-call.22} parent=312 // loop_header_branch
                %1228 = sbr.rel (%p1226) target = $region320
              $region317: #{custom-call.22} parent=312 // loop_body
                %v1232 = vld [vmem:[%s1230] sm:%s1223]
                %1233 = vst [vmem:[%s1231] sm:%s1223] %v1232
              $region318: #{custom-call.22} parent=312 // loop_footer
                %s1229 = sadd.s32 1, %s1225
              $region319: #{custom-call.22} parent=312 // loop_footer_branch
                %1224 = sbr.rel target = $region315
              $region320: #{custom-call.22} parent=312 // loop_exit
                _
            $region313: #{custom-call.22} parent=297 // pred_fallthru
              _
          $region298: #{custom-call.22} parent=293 // pred_fallthru
            _
          // Predicated region
          $region299: #{custom-call.22} parent=293 // pred_check
            _
          $region300: #{custom-call.22} parent=293 // pred_check_branch
            %1207 = sbr.rel (0) target = $region302
          $region301: #{custom-call.22} parent=293 // pred_region
            %s1209 = ssub.s32 4, 1
            loop: start=0, step=1, limit=1
            $region303: #{custom-call.22} parent=301 // loop_pre_header
              _
            $region304: #{custom-call.22} parent=301 // loop_header
              %s1211 = sphi 0, %s1215
              %p1212 = scmp.ge.s32.totalorder %s1211, 1
              %s1216 = sphi %s1039, %s1039
              %s1217 = sphi %s1201, %s1201
            $region305: #{custom-call.22} parent=301 // loop_header_branch
              %1214 = sbr.rel (%p1212) target = $region309
            $region306: #{custom-call.22} parent=301 // loop_body
              %v1218 = vld [vmem:[%s1216] sm:%s1209]
              %1219 = vst [vmem:[%s1217] sm:%s1209] %v1218
            $region307: #{custom-call.22} parent=301 // loop_footer
              %s1215 = sadd.s32 1, %s1211
            $region308: #{custom-call.22} parent=301 // loop_footer_branch
              %1210 = sbr.rel target = $region304
            $region309: #{custom-call.22} parent=301 // loop_exit
              _
          $region302: #{custom-call.22} parent=293 // pred_fallthru
            _
        $region294: #{custom-call.22} parent=139 // pred_fallthru
          _
        %1234 = vnop
        %s1235 = smul.addr %s21, 8
        %s1236 = sadd.s32 %s22, %s1235
        %s1237 = smul.addr %s1236, 2
        %s1238 = scalar_lea.vmem %s9, %s1237
        // Predicated region
        $region321: #{custom-call.22} parent=139 // pred_check
          _
        $region322: #{custom-call.22} parent=139 // pred_check_branch
          %1240 = sbr.rel (0) target = $region324
        $region323: #{custom-call.22} parent=139 // pred_region
          // Predicated region
          $region325: #{custom-call.22} parent=323 // pred_check
            _
          $region326: #{custom-call.22} parent=323 // pred_check_branch
            %1242 = sbr.rel target = $region328
          $region327: #{custom-call.22} parent=323 // pred_region
            // Predicated region
            $region340: #{custom-call.22} parent=327 // pred_check
              _
            $region341: #{custom-call.22} parent=327 // pred_check_branch
              %1258 = sbr.rel (0) target = $region343
            $region342: #{custom-call.22} parent=327 // pred_region
              %s1260 = ssub.s32 4, 1
              loop: start=0, step=1, limit=1
              $region344: #{custom-call.22} parent=342 // loop_pre_header
                _
              $region345: #{custom-call.22} parent=342 // loop_header
                %s1262 = sphi 0, %s1266
                %p1263 = scmp.ge.s32.totalorder %s1262, 1
                %s1267 = sphi %s1043, %s1043
                %s1268 = sphi %s1238, %s1238
              $region346: #{custom-call.22} parent=342 // loop_header_branch
                %1265 = sbr.rel (%p1263) target = $region350
              $region347: #{custom-call.22} parent=342 // loop_body
                %v1269 = vld [vmem:[%s1267] sm:%s1260]
                %1270 = vst [vmem:[%s1268] sm:%s1260] %v1269
              $region348: #{custom-call.22} parent=342 // loop_footer
                %s1266 = sadd.s32 1, %s1262
              $region349: #{custom-call.22} parent=342 // loop_footer_branch
                %1261 = sbr.rel target = $region345
              $region350: #{custom-call.22} parent=342 // loop_exit
                _
            $region343: #{custom-call.22} parent=327 // pred_fallthru
              _
          $region328: #{custom-call.22} parent=323 // pred_fallthru
            _
          // Predicated region
          $region329: #{custom-call.22} parent=323 // pred_check
            _
          $region330: #{custom-call.22} parent=323 // pred_check_branch
            %1244 = sbr.rel (0) target = $region332
          $region331: #{custom-call.22} parent=323 // pred_region
            %s1246 = ssub.s32 4, 1
            loop: start=0, step=1, limit=1
            $region333: #{custom-call.22} parent=331 // loop_pre_header
              _
            $region334: #{custom-call.22} parent=331 // loop_header
              %s1248 = sphi 0, %s1252
              %p1249 = scmp.ge.s32.totalorder %s1248, 1
              %s1253 = sphi %s1043, %s1043
              %s1254 = sphi %s1238, %s1238
            $region335: #{custom-call.22} parent=331 // loop_header_branch
              %1251 = sbr.rel (%p1249) target = $region339
            $region336: #{custom-call.22} parent=331 // loop_body
              %v1255 = vld [vmem:[%s1253] sm:%s1246]
              %1256 = vst [vmem:[%s1254] sm:%s1246] %v1255
            $region337: #{custom-call.22} parent=331 // loop_footer
              %s1252 = sadd.s32 1, %s1248
            $region338: #{custom-call.22} parent=331 // loop_footer_branch
              %1247 = sbr.rel target = $region334
            $region339: #{custom-call.22} parent=331 // loop_exit
              _
          $region332: #{custom-call.22} parent=323 // pred_fallthru
            _
        $region324: #{custom-call.22} parent=139 // pred_fallthru
          _
        %1271 = vnop
      $region140: #{custom-call.22} parent=5 // pred_fallthru
        _
      %p1272 = scmp.le.s32.totalorder 2, %s12
      // Predicated region
      $region351: #{custom-call.22} parent=5 // pred_check
        %p1273 = pneg %p1272
      $region352: #{custom-call.22} parent=5 // pred_check_branch
        %1275 = sbr.rel (%p1273) target = $region354
      $region353: #{custom-call.22} parent=5 // pred_region
        %s1276 = ssub.s32 %s12, 2
        // Predicated region
        $region355: #{custom-call.22} parent=353 // pred_check
          %p1277 = pneg %p57
        $region356: #{custom-call.22} parent=353 // pred_check_branch
          %1279 = sbr.rel (%p1277) target = $region358
        $region357: #{custom-call.22} parent=353 // pred_region
          %s1280 = sand.u32 %s42, 1
          %s1281 = sand.u32 %s42, 1
          %s1282 = smul.addr %s1281, 8
          %s1283 = scalar_lea.vmem [#allocation8], %s1282
        $region358: #{custom-call.22} parent=353 // pred_fallthru
          _
        // Predicated region
        $region359: #{custom-call.22} parent=353 // pred_check
          %p1284 = pneg %p87
        $region360: #{custom-call.22} parent=353 // pred_check_branch
          %1286 = sbr.rel (%p1284) target = $region362
        $region361: #{custom-call.22} parent=353 // pred_region
          %s1287 = sand.u32 %s72, 1
          %s1288 = sand.u32 %s72, 1
          %s1289 = smul.addr %s1288, 8
          %s1290 = scalar_lea.vmem [#allocation9], %s1289
        $region362: #{custom-call.22} parent=353 // pred_fallthru
          _
        %s1291 = sand.u32 %s18, 1
        %s1292 = sand.u32 %s18, 1
        %s1293 = smul.addr %s1292, 2
        %s1294 = scalar_lea.vmem [#allocation11], %s1293
        %s1295 = sand.u32 %s18, 1
        %s1296 = sand.u32 %s18, 1
        %s1297 = smul.addr %s1296, 2
        %s1298 = scalar_lea.vmem [#allocation13], %s1297
        %s1299 = sand.u32 %s18, 1
        %s1300 = sand.u32 %s18, 1
        %s1301 = smul.addr %s1300, 2
        %s1302 = scalar_lea.vmem [#allocation15], %s1301
        %s1303 = sand.u32 %s18, 1
        %s1304 = sand.u32 %s18, 1
        %s1305 = smul.addr %s1304, 2
        %s1306 = scalar_lea.vmem [#allocation17], %s1305
      $region354: #{custom-call.22} parent=5 // pred_fallthru
        _
    $region6: #{custom-call.22} parent=1 // loop_footer
      %s16 = sadd.s32 1, %s12
    $region7: #{custom-call.22} parent=1 // loop_footer_branch
      %11 = sbr.rel target = $region3
    $region8: #{custom-call.22} parent=1 // loop_exit
      _

// kernel: reverse
$region0: #{reverse}
  %s0 = inlined_call_operand.vmem [shape: f32[2,8,4], index: 0, kind: input, shape index: {}]
  %s1 = inlined_call_operand.vmem [shape: f32[2,8,4], index: 1, kind: output, shape index: {}]
  %v2 = vlaneseq
  %v3 = vsub.s32 3, %v2
  %4 = vset.pattern.permute.xlu0 %v3
  $region1: #{reverse} parent=0
    #allocation0 [shape = 'u8[8192]{0}', space=vmem, size = 0x2000, scoped, tag = 'operand span for operand 0']
    #allocation1 [shape = 'u8[8192]{0}', space=vmem, size = 0x2000, scoped, tag = 'operand span for operand 1']
    // Predicated region
    $region2: #{reverse} parent=1 // pred_check
      _
    $region3: #{reverse} parent=1 // pred_check_branch
      %6 = sbr.rel (0) target = $region5
    $region4: #{reverse} parent=1 // pred_region
      // Predicated region
      $region6: #{reverse} parent=4 // pred_check
        _
      $region7: #{reverse} parent=4 // pred_check_branch
        %8 = sbr.rel (0) target = $region9
      $region8: #{reverse} parent=4 // pred_region
        // Predicated region
        $region21: #{reverse} parent=8 // pred_check
          _
        $region22: #{reverse} parent=8 // pred_check_branch
          %26 = sbr.rel (0) target = $region24
        $region23: #{reverse} parent=8 // pred_region
          loop: start=0, step=1, limit=1
          $region25: #{reverse} parent=23 // loop_pre_header
            _
          $region26: #{reverse} parent=23 // loop_header
            %s28 = sphi 0, %s32
            %p29 = scmp.ge.s32.totalorder %s28, 1
            %s33 = sphi %s0, %s0
            %s34 = sphi [#allocation0], [#allocation0]
          $region27: #{reverse} parent=23 // loop_header_branch
            %31 = sbr.rel (%p29) target = $region31
          $region28: #{reverse} parent=23 // loop_body
            %v35 = vld [vmem:[%s33] sm:$0xff]
            %36 = vst [vmem:[%s34] sm:$0xff] %v35
            %v37 = vld [vmem:[%s33 + $0x8] sm:$0xff]
            %38 = vst [vmem:[%s34 + $0x8] sm:$0xff] %v37
          $region29: #{reverse} parent=23 // loop_footer
            %s32 = sadd.s32 1, %s28
          $region30: #{reverse} parent=23 // loop_footer_branch
            %27 = sbr.rel target = $region26
          $region31: #{reverse} parent=23 // loop_exit
            _
        $region24: #{reverse} parent=8 // pred_fallthru
          _
        // Predicated region
        $region32: #{reverse} parent=8 // pred_check
          _
        $region33: #{reverse} parent=8 // pred_check_branch
          %40 = sbr.rel target = $region35
        $region34: #{reverse} parent=8 // pred_region
          _
        $region35: #{reverse} parent=8 // pred_fallthru
          _
      $region9: #{reverse} parent=4 // pred_fallthru
        _
      // Predicated region
      $region10: #{reverse} parent=4 // pred_check
        _
      $region11: #{reverse} parent=4 // pred_check_branch
        %10 = sbr.rel target = $region13
      $region12: #{reverse} parent=4 // pred_region
        %s12 = ssub.s32 256, 1
        loop: start=0, step=1, limit=1
        $region14: #{reverse} parent=12 // loop_pre_header
          _
        $region15: #{reverse} parent=12 // loop_header
          %s14 = sphi 0, %s18
          %p15 = scmp.ge.s32.totalorder %s14, 1
          %s19 = sphi %s0, %s0
          %s20 = sphi [#allocation0], [#allocation0]
        $region16: #{reverse} parent=12 // loop_header_branch
          %17 = sbr.rel (%p15) target = $region20
        $region17: #{reverse} parent=12 // loop_body
          %v21 = vld [vmem:[%s19] sm:%s12]
          %22 = vst [vmem:[%s20] sm:%s12] %v21
          %v23 = vld [vmem:[%s19 + $0x8] sm:%s12]
          %24 = vst [vmem:[%s20 + $0x8] sm:%s12] %v23
        $region18: #{reverse} parent=12 // loop_footer
          %s18 = sadd.s32 1, %s14
        $region19: #{reverse} parent=12 // loop_footer_branch
          %13 = sbr.rel target = $region15
        $region20: #{reverse} parent=12 // loop_exit
          _
      $region13: #{reverse} parent=4 // pred_fallthru
        _
    $region5: #{reverse} parent=1 // pred_fallthru
      _
    %41 = vnop
    %v42 = vld [vmem:[#allocation0] sm:$0xff]
    %43 = vperm.xlu0 %4, %v42
    %v44 = vpop.permute.xlu0 %43
    %45 = vst [vmem:[#allocation1] sm:$0xff] %v44
    %s46 = scalar_lea.vmem [#allocation1], 8
    %s47 = scalar_lea.vmem [#allocation0], 8
    %v48 = vld [vmem:[%s47] sm:$0xff]
    %49 = vperm.xlu0 %4, %v48
    %v50 = vpop.permute.xlu0 %49
    %51 = vst [vmem:[%s46] sm:$0xff] %v50
    // Predicated region
    $region36: #{reverse} parent=1 // pred_check
      _
    $region37: #{reverse} parent=1 // pred_check_branch
      %53 = sbr.rel (0) target = $region39
    $region38: #{reverse} parent=1 // pred_region
      // Predicated region
      $region40: #{reverse} parent=38 // pred_check
        _
      $region41: #{reverse} parent=38 // pred_check_branch
        %55 = sbr.rel (0) target = $region43
      $region42: #{reverse} parent=38 // pred_region
        // Predicated region
        $region55: #{reverse} parent=42 // pred_check
          _
        $region56: #{reverse} parent=42 // pred_check_branch
          %73 = sbr.rel (0) target = $region58
        $region57: #{reverse} parent=42 // pred_region
          loop: start=0, step=1, limit=1
          $region59: #{reverse} parent=57 // loop_pre_header
            _
          $region60: #{reverse} parent=57 // loop_header
            %s75 = sphi 0, %s79
            %p76 = scmp.ge.s32.totalorder %s75, 1
            %s80 = sphi [#allocation1], [#allocation1]
            %s81 = sphi %s1, %s1
          $region61: #{reverse} parent=57 // loop_header_branch
            %78 = sbr.rel (%p76) target = $region65
          $region62: #{reverse} parent=57 // loop_body
            %v82 = vld [vmem:[%s80] sm:$0xff]
            %83 = vst [vmem:[%s81] sm:$0xff] %v82
            %v84 = vld [vmem:[%s80 + $0x8] sm:$0xff]
            %85 = vst [vmem:[%s81 + $0x8] sm:$0xff] %v84
          $region63: #{reverse} parent=57 // loop_footer
            %s79 = sadd.s32 1, %s75
          $region64: #{reverse} parent=57 // loop_footer_branch
            %74 = sbr.rel target = $region60
          $region65: #{reverse} parent=57 // loop_exit
            _
        $region58: #{reverse} parent=42 // pred_fallthru
          _
        // Predicated region
        $region66: #{reverse} parent=42 // pred_check
          _
        $region67: #{reverse} parent=42 // pred_check_branch
          %87 = sbr.rel target = $region69
        $region68: #{reverse} parent=42 // pred_region
          _
        $region69: #{reverse} parent=42 // pred_fallthru
          _
      $region43: #{reverse} parent=38 // pred_fallthru
        _
      // Predicated region
      $region44: #{reverse} parent=38 // pred_check
        _
      $region45: #{reverse} parent=38 // pred_check_branch
        %57 = sbr.rel target = $region47
      $region46: #{reverse} parent=38 // pred_region
        %s59 = ssub.s32 256, 1
        loop: start=0, step=1, limit=1
        $region48: #{reverse} parent=46 // loop_pre_header
          _
        $region49: #{reverse} parent=46 // loop_header
          %s61 = sphi 0, %s65
          %p62 = scmp.ge.s32.totalorder %s61, 1
          %s66 = sphi [#allocation1], [#allocation1]
          %s67 = sphi %s1, %s1
        $region50: #{reverse} parent=46 // loop_header_branch
          %64 = sbr.rel (%p62) target = $region54
        $region51: #{reverse} parent=46 // loop_body
          %v68 = vld [vmem:[%s66] sm:%s59]
          %69 = vst [vmem:[%s67] sm:%s59] %v68
          %v70 = vld [vmem:[%s66 + $0x8] sm:%s59]
          %71 = vst [vmem:[%s67 + $0x8] sm:%s59] %v70
        $region52: #{reverse} parent=46 // loop_footer
          %s65 = sadd.s32 1, %s61
        $region53: #{reverse} parent=46 // loop_footer_branch
          %60 = sbr.rel target = $region49
        $region54: #{reverse} parent=46 // loop_exit
          _
      $region47: #{reverse} parent=38 // pred_fallthru
        _
    $region39: #{reverse} parent=1 // pred_fallthru
      _
    %88 = vnop

</llo_original>
